<compile_context>
chip_gen: v5e
topology: v5e:2x2
jax: 0.10.0
libtpu: 0.0.40
codegen_flags: <defaults>
</compile_context>

<pallas_src>
import jax
import jax.numpy as jnp
import numpy as np
from jax import lax
from jax.experimental import pallas as pl
from jax.experimental.pallas import tpu as pltpu

SUBLANE = 8  # f32 sublane tile; batch is padded up to this.


# -----------------------------------------------------------------------------
# Fused kernel: Conv1d(k=3,pad=1) + BN(folded) + ReLU -> LSTM -> folded Linear
# -----------------------------------------------------------------------------
def fused_cnn_lstm_kernel(x_ref, cw_ref, lstm_ref, cls_ref, o_ref,
                          gxi_sc, gxf_sc, gxg_sc, gxo_sc):
    # x_ref   : (L*Bp, Cin)      time-major rows, row r = t*Bp + b (Bp padded batch)
    # cw_ref  : (3*CA+1, Cout)   rows [tap0 | tap1 | tap2 | bias], each tap block
    #                            starts at a multiple of 8 rows; BN folded in.
    # lstm_ref: (Cout+H+1, 4H)   rows [w_ih | w_hh | b_ih+b_hh], gates i,f,g,o.
    # cls_ref : (H+1, nc)        rows [w1@w2 | b1@w2+b2] (no activation between
    #                            the two classifier Linears -> exact fold).
    # o_ref   : (Bp, nc)
    # gx*_sc  : (L*Bp, H) VMEM scratch, one per gate (hoisted input projection).
    Bp = o_ref.shape[0]
    LB, Cin = x_ref.shape
    H = gxi_sc.shape[1]
    Cout = cw_ref.shape[1]
    L = LB // Bp
    CA = ((Cin + SUBLANE - 1) // SUBLANE) * SUBLANE      # aligned tap-row stride

    x2 = x_ref[...]                                       # (LB, Cin)

    # --- Conv1d(k=3, pad=1): time shifts realised as tile-aligned static
    # --- sublane slices + zero blocks (Bp == one or more whole sublane tiles),
    # --- replacing the previous O(LB^2) shift-matrix matmuls.  Exact.
    zpad = jnp.zeros((Bp, Cin), jnp.float32)
    x_prev = jnp.concatenate([zpad, x2[:LB - Bp, :]], axis=0)   # row r <- x[t-1]
    x_next = jnp.concatenate([x2[Bp:, :], zpad], axis=0)        # row r <- x[t+1]

    w_t0 = cw_ref[0 * CA:0 * CA + Cin, :]                 # (Cin, Cout)
    w_t1 = cw_ref[1 * CA:1 * CA + Cin, :]
    w_t2 = cw_ref[2 * CA:2 * CA + Cin, :]
    b_c = cw_ref[3 * CA:3 * CA + 1, :]                    # (1, Cout)
    # TODO(synk): a single (LB, 3*Cin+1) @ (3*Cin+1, Cout) matmul (lane-concat
    #             of the three taps plus a ones column) would save two MXU
    #             pushes; kept as three K=Cin matmuls for guaranteed lowering.
    acc = (jnp.dot(x_prev, w_t0, preferred_element_type=jnp.float32)
           + jnp.dot(x2, w_t1, preferred_element_type=jnp.float32)
           + jnp.dot(x_next, w_t2, preferred_element_type=jnp.float32)
           + b_c)
    y = jnp.maximum(acc, 0.0)                             # (LB, Cout)

    # --- LSTM: hoist the input projection out of the recurrence as one
    # --- lane-dense (LB, 4H) matmul, then split per gate ONCE so the serial
    # --- loop never lane-cuts a vreg.
    w_ih = lstm_ref[0:Cout, :]                            # (Cout, 4H)
    w_hh = lstm_ref[Cout:Cout + H, :]                     # (H, 4H)
    b_l = lstm_ref[Cout + H:Cout + H + 1, :]              # (1, 4H)
    gx = jnp.dot(y, w_ih, preferred_element_type=jnp.float32) + b_l   # (LB, 4H)
    gxi_sc[...] = gx[:, 0 * H:1 * H]
    gxf_sc[...] = gx[:, 1 * H:2 * H]
    gxg_sc[...] = gx[:, 2 * H:3 * H]
    gxo_sc[...] = gx[:, 3 * H:4 * H]

    # Per-gate recurrent weight blocks, sliced once outside the loop.
    whh_i = w_hh[:, 0 * H:1 * H]
    whh_f = w_hh[:, 1 * H:2 * H]
    whh_g = w_hh[:, 2 * H:3 * H]
    whh_o = w_hh[:, 3 * H:4 * H]

    def step(t, carry):
        h, c = carry                                      # (Bp, H) vreg carries
        r0 = pl.multiple_of(t * Bp, Bp)                   # sublane-aligned (Bp % 8 == 0)
        i_g = jax.nn.sigmoid(
            gxi_sc[pl.ds(r0, Bp), :]
            + jnp.dot(h, whh_i, preferred_element_type=jnp.float32))
        f_g = jax.nn.sigmoid(
            gxf_sc[pl.ds(r0, Bp), :]
            + jnp.dot(h, whh_f, preferred_element_type=jnp.float32))
        g_g = jnp.tanh(
            gxg_sc[pl.ds(r0, Bp), :]
            + jnp.dot(h, whh_g, preferred_element_type=jnp.float32))
        o_g = jax.nn.sigmoid(
            gxo_sc[pl.ds(r0, Bp), :]
            + jnp.dot(h, whh_o, preferred_element_type=jnp.float32))
        c = f_g * c + i_g * g_g
        h = o_g * jnp.tanh(c)
        return (h, c)

    h0 = jnp.zeros((Bp, H), jnp.float32)
    c0 = jnp.zeros((Bp, H), jnp.float32)
    # TODO(synk): for large L use partial unroll (4..8) to keep vreg pressure
    #             bounded; full unroll is right for L <= ~32.
    h, _ = lax.fori_loop(0, L, step, (h0, c0), unroll=True)

    # --- classifier: both Linears folded into a single (H, nc) matmul + bias.
    w12 = cls_ref[0:H, :]
    b12 = cls_ref[H:H + 1, :]
    o_ref[...] = jnp.dot(h, w12, preferred_element_type=jnp.float32) + b12


def cnn_lstm_forward(x, params):
    # x: (B, L, in_dim) float32 (batch_first, matching the PyTorch module).
    B, L, Cin = x.shape
    conv_pack = params["conv_pack"]
    lstm_pack = params["lstm_pack"]
    cls_pack = params["cls_pack"]
    Cout = conv_pack.shape[1]
    H = lstm_pack.shape[0] - Cout - 1
    nc = cls_pack.shape[1]

    Bp = ((B + SUBLANE - 1) // SUBLANE) * SUBLANE
    # Layout plumbing only: pad batch to the sublane tile (padded rows never
    # mix with real rows anywhere in the network) and go time-major so each
    # timestep is one aligned (Bp, *) sublane group.
    xp = jnp.pad(x, ((0, Bp - B), (0, 0), (0, 0)))
    x_tm = jnp.transpose(xp, (1, 0, 2)).reshape(L * Bp, Cin)

    vmem = pl.BlockSpec(memory_space=pltpu.MemorySpace.VMEM)
    out = pl.pallas_call(
        fused_cnn_lstm_kernel,
        out_shape=jax.ShapeDtypeStruct((Bp, nc), jnp.float32),
        in_specs=[vmem] * 4,
        out_specs=vmem,
        scratch_shapes=[pltpu.VMEM((L * Bp, H), jnp.float32)] * 4,
        compiler_params=pltpu.CompilerParams(
            vmem_limit_bytes=32 * 1024 * 1024),
    )(x_tm, conv_pack, lstm_pack, cls_pack)
    return out[:B]


# -----------------------------------------------------------------------------
# Pure-JAX reference (unfolded weights; for correctness check only)
# -----------------------------------------------------------------------------
def ref_forward(x, params):
    B, L, Cin = x.shape
    w, b = params["w_conv_eff"], params["b_conv_eff"]
    xp = jnp.pad(x, ((0, 0), (1, 1), (0, 0)))
    y = sum(jnp.einsum("blc,cd->bld", xp[:, k:k + L, :], w[k]) for k in range(3))
    y = jnp.maximum(y + b[None], 0.0)                     # (B, L, Cout)

    H = params["w_hh"].shape[0]
    h = jnp.zeros((B, H), jnp.float32)
    c = jnp.zeros((B, H), jnp.float32)

    def step(carry, x_t):
        h, c = carry
        gates = x_t @ params["w_ih"] + h @ params["w_hh"] + params["b_lstm"]
        i_g = jax.nn.sigmoid(gates[:, 0:H])
        f_g = jax.nn.sigmoid(gates[:, H:2 * H])
        g_g = jnp.tanh(gates[:, 2 * H:3 * H])
        o_g = jax.nn.sigmoid(gates[:, 3 * H:4 * H])
        c = f_g * c + i_g * g_g
        h = o_g * jnp.tanh(c)
        return (h, c), None

    (h, c), _ = lax.scan(step, (h, c), jnp.transpose(y, (1, 0, 2)))
    hid = h @ params["w1"] + params["b1"]
    return hid @ params["w2"] + params["b2"]


# -----------------------------------------------------------------------------
# Deterministic parameter construction (synthetic, no checkpoint)
# -----------------------------------------------------------------------------
def make_params(key, in_dim, adjust_dim, hidden_size, n_classes):
    ks = jax.random.split(key, 10)
    s = 0.1
    # Conv1d weight (PyTorch: (Cout, Cin, 3)) stored here as (3, Cin, Cout).
    w_conv = jax.random.normal(ks[0], (3, in_dim, adjust_dim), jnp.float32) * s
    b_conv = jax.random.normal(ks[1], (adjust_dim,), jnp.float32) * s
    # BatchNorm1d (eval-style: running_mean=0, running_var=1) folded into conv.
    gamma = jnp.ones((adjust_dim,), jnp.float32)
    beta = jnp.zeros((adjust_dim,), jnp.float32)
    mean = jnp.zeros((adjust_dim,), jnp.float32)
    var = jnp.ones((adjust_dim,), jnp.float32)
    eps = 1e-5
    scale = gamma / jnp.sqrt(var + eps)
    w_conv_eff = w_conv * scale[None, None, :]
    b_conv_eff = (scale * (b_conv - mean) + beta)[None, :]      # (1, Cout)

    H = hidden_size
    # PyTorch LSTM weights are (4H, in); stored transposed here for x @ W.
    w_ih = jax.random.normal(ks[2], (adjust_dim, 4 * H), jnp.float32) * s
    w_hh = jax.random.normal(ks[3], (H, 4 * H), jnp.float32) * s
    b_ih = jax.random.normal(ks[4], (4 * H,), jnp.float32) * s
    b_hh = jax.random.normal(ks[5], (4 * H,), jnp.float32) * s
    b_lstm = (b_ih + b_hh)[None, :]                             # (1, 4H)

    w1 = jax.random.normal(ks[6], (H, H), jnp.float32) * s
    b1 = jax.random.normal(ks[7], (H,), jnp.float32)[None, :] * s
    w2 = jax.random.normal(ks[8], (H, n_classes), jnp.float32) * s
    b2 = jax.random.normal(ks[9], (n_classes,), jnp.float32)[None, :] * s

    # --- kernel-side packing (fewer, denser parameter DMAs) -------------------
    CA = ((in_dim + SUBLANE - 1) // SUBLANE) * SUBLANE

    def _pad_rows(a, rows):
        return jnp.pad(a, ((0, rows - a.shape[0]), (0, 0)))

    # rows [k*CA : k*CA+Cin] = tap k (8-row aligned), row 3*CA = folded bias.
    conv_pack = jnp.concatenate(
        [_pad_rows(w_conv_eff[k], CA) for k in range(3)] + [b_conv_eff], axis=0)
    # rows [0:Cout]=w_ih, [Cout:Cout+H]=w_hh, [Cout+H]=b_ih+b_hh.
    lstm_pack = jnp.concatenate([w_ih, w_hh, b_lstm], axis=0)
    # Classifier Linears have no activation between them -> exact fold.
    cls_pack = jnp.concatenate([w1 @ w2, b1 @ w2 + b2], axis=0)

    return dict(
        # raw (reference)
        w_conv_eff=w_conv_eff, b_conv_eff=b_conv_eff,
        w_ih=w_ih, w_hh=w_hh, b_lstm=b_lstm, w1=w1, b1=b1, w2=w2, b2=b2,
        # packed (kernel)
        conv_pack=conv_pack, lstm_pack=lstm_pack, cls_pack=cls_pack)


if __name__ == "__main__":
    B, L, in_dim = 2, 16, 4
    adjust_dim, hidden_size, n_classes = 16, 32, 8

    key = jax.random.PRNGKey(0)
    kx, kp = jax.random.split(key)
    x = jax.random.normal(kx, (B, L, in_dim), jnp.float32)
    params = make_params(kp, in_dim, adjust_dim, hidden_size, n_classes)

    out = jax.jit(cnn_lstm_forward)(x, params)
    out = jax.block_until_ready(out)

    ref = ref_forward(x, params)
    np.testing.assert_allclose(np.asarray(out), np.asarray(ref),
                               rtol=2e-4, atol=2e-4)
    assert out.shape == (B, n_classes)

    print("KERNEL_OK")
</pallas_src>

<mosaic_0001>
module attributes {stable_mosaic.version = 11 : i64} {
  func.func @fused_cnn_lstm_kernel(%arg0: memref<128x4xf32, #tpu.memory_space<vmem>>, %arg1: memref<25x16xf32, #tpu.memory_space<vmem>>, %arg2: memref<49x128xf32, #tpu.memory_space<vmem>>, %arg3: memref<33x8xf32, #tpu.memory_space<vmem>>, %arg4: memref<8x8xf32, #tpu.memory_space<vmem>>, %arg5: memref<128x32xf32, #tpu.memory_space<vmem>>, %arg6: memref<128x32xf32, #tpu.memory_space<vmem>>, %arg7: memref<128x32xf32, #tpu.memory_space<vmem>>, %arg8: memref<128x32xf32, #tpu.memory_space<vmem>>) attributes {dimension_semantics = [], scalar_prefetch = 0 : i64, scratch_operands = 4 : i64, tpu.core_type = #tpu.core_type<tc>} {
    %c0 = arith.constant 0 : index
    %c0_0 = arith.constant 0 : index
    %0 = vector.load %arg0[%c0, %c0_0] : memref<128x4xf32, #tpu.memory_space<vmem>>, vector<128x4xf32>
    %cst = arith.constant 0.000000e+00 : f32
    %1 = vector.broadcast %cst : f32 to vector<8x4xf32>
    %2 = vector.extract_strided_slice %0 {offsets = [0, 0], sizes = [120, 4], strides = [1, 1]} : vector<128x4xf32> to vector<120x4xf32>
    %3 = tpu.concatenate %1, %2 in 0 : vector<8x4xf32>, vector<120x4xf32> -> vector<128x4xf32>
    %4 = vector.extract_strided_slice %0 {offsets = [8, 0], sizes = [120, 4], strides = [1, 1]} : vector<128x4xf32> to vector<120x4xf32>
    %5 = tpu.concatenate %4, %1 in 0 : vector<120x4xf32>, vector<8x4xf32> -> vector<128x4xf32>
    %c0_1 = arith.constant 0 : index
    %c0_2 = arith.constant 0 : index
    %6 = vector.load %arg1[%c0_1, %c0_2] : memref<25x16xf32, #tpu.memory_space<vmem>>, vector<4x16xf32>
    %c8 = arith.constant 8 : index
    %c0_3 = arith.constant 0 : index
    %7 = vector.load %arg1[%c8, %c0_3] : memref<25x16xf32, #tpu.memory_space<vmem>>, vector<4x16xf32>
    %c16 = arith.constant 16 : index
    %c0_4 = arith.constant 0 : index
    %8 = vector.load %arg1[%c16, %c0_4] : memref<25x16xf32, #tpu.memory_space<vmem>>, vector<4x16xf32>
    %c24 = arith.constant 24 : index
    %c0_5 = arith.constant 0 : index
    %9 = vector.load %arg1[%c24, %c0_5] : memref<25x16xf32, #tpu.memory_space<vmem>>, vector<1x16xf32>
    %cst_6 = arith.constant dense<0.000000e+00> : vector<128x16xf32>
    %10 = tpu.matmul %3, %6, %cst_6 {dimension_numbers = #tpu.dot_dimension_numbers<[1], [0], [0], [1], [0, 0, 1, 1], [], []>} : vector<128x4xf32>, vector<4x16xf32>, vector<128x16xf32> -> vector<128x16xf32>
    %cst_7 = arith.constant dense<0.000000e+00> : vector<128x16xf32>
    %11 = tpu.matmul %0, %7, %cst_7 {dimension_numbers = #tpu.dot_dimension_numbers<[1], [0], [0], [1], [0, 0, 1, 1], [], []>} : vector<128x4xf32>, vector<4x16xf32>, vector<128x16xf32> -> vector<128x16xf32>
    %12 = arith.addf %10, %11 : vector<128x16xf32>
    %cst_8 = arith.constant dense<0.000000e+00> : vector<128x16xf32>
    %13 = tpu.matmul %5, %8, %cst_8 {dimension_numbers = #tpu.dot_dimension_numbers<[1], [0], [0], [1], [0, 0, 1, 1], [], []>} : vector<128x4xf32>, vector<4x16xf32>, vector<128x16xf32> -> vector<128x16xf32>
    %14 = arith.addf %12, %13 : vector<128x16xf32>
    %15 = vector.broadcast %9 : vector<1x16xf32> to vector<128x16xf32>
    %16 = arith.addf %14, %15 : vector<128x16xf32>
    %cst_9 = arith.constant 0.000000e+00 : f32
    %17 = vector.broadcast %cst_9 : f32 to vector<128x16xf32>
    %18 = arith.maximumf %16, %17 : vector<128x16xf32>
    %c0_10 = arith.constant 0 : index
    %c0_11 = arith.constant 0 : index
    %19 = vector.load %arg2[%c0_10, %c0_11] : memref<49x128xf32, #tpu.memory_space<vmem>>, vector<16x128xf32>
    %c16_12 = arith.constant 16 : index
    %c0_13 = arith.constant 0 : index
    %20 = vector.load %arg2[%c16_12, %c0_13] : memref<49x128xf32, #tpu.memory_space<vmem>>, vector<32x128xf32>
    %c48 = arith.constant 48 : index
    %c0_14 = arith.constant 0 : index
    %21 = vector.load %arg2[%c48, %c0_14] : memref<49x128xf32, #tpu.memory_space<vmem>>, vector<1x128xf32>
    %cst_15 = arith.constant dense<0.000000e+00> : vector<128x128xf32>
    %22 = tpu.matmul %18, %19, %cst_15 {dimension_numbers = #tpu.dot_dimension_numbers<[1], [0], [0], [1], [0, 0, 1, 1], [], []>} : vector<128x16xf32>, vector<16x128xf32>, vector<128x128xf32> -> vector<128x128xf32>
    %23 = vector.broadcast %21 : vector<1x128xf32> to vector<128x128xf32>
    %24 = arith.addf %22, %23 : vector<128x128xf32>
    %25 = vector.extract_strided_slice %24 {offsets = [0, 0], sizes = [128, 32], strides = [1, 1]} : vector<128x128xf32> to vector<128x32xf32>
    %c0_16 = arith.constant 0 : index
    %c0_17 = arith.constant 0 : index
    %26 = vector.load %arg5[%c0_16, %c0_17] : memref<128x32xf32, #tpu.memory_space<vmem>>, vector<128x32xf32>
    tpu.vector_store %arg5[%c0_16, %c0_17], %25 {strides = array<i32>} : memref<128x32xf32, #tpu.memory_space<vmem>>, vector<128x32xf32>,
    %27 = vector.extract_strided_slice %24 {offsets = [0, 32], sizes = [128, 32], strides = [1, 1]} : vector<128x128xf32> to vector<128x32xf32>
    %c0_18 = arith.constant 0 : index
    %c0_19 = arith.constant 0 : index
    %28 = vector.load %arg6[%c0_18, %c0_19] : memref<128x32xf32, #tpu.memory_space<vmem>>, vector<128x32xf32>
    tpu.vector_store %arg6[%c0_18, %c0_19], %27 {strides = array<i32>} : memref<128x32xf32, #tpu.memory_space<vmem>>, vector<128x32xf32>,
    %29 = vector.extract_strided_slice %24 {offsets = [0, 64], sizes = [128, 32], strides = [1, 1]} : vector<128x128xf32> to vector<128x32xf32>
    %c0_20 = arith.constant 0 : index
    %c0_21 = arith.constant 0 : index
    %30 = vector.load %arg7[%c0_20, %c0_21] : memref<128x32xf32, #tpu.memory_space<vmem>>, vector<128x32xf32>
    tpu.vector_store %arg7[%c0_20, %c0_21], %29 {strides = array<i32>} : memref<128x32xf32, #tpu.memory_space<vmem>>, vector<128x32xf32>,
    %31 = vector.extract_strided_slice %24 {offsets = [0, 96], sizes = [128, 32], strides = [1, 1]} : vector<128x128xf32> to vector<128x32xf32>
    %c0_22 = arith.constant 0 : index
    %c0_23 = arith.constant 0 : index
    %32 = vector.load %arg8[%c0_22, %c0_23] : memref<128x32xf32, #tpu.memory_space<vmem>>, vector<128x32xf32>
    tpu.vector_store %arg8[%c0_22, %c0_23], %31 {strides = array<i32>} : memref<128x32xf32, #tpu.memory_space<vmem>>, vector<128x32xf32>,
    %33 = vector.extract_strided_slice %20 {offsets = [0, 0], sizes = [32, 32], strides = [1, 1]} : vector<32x128xf32> to vector<32x32xf32>
    %34 = vector.extract_strided_slice %20 {offsets = [0, 32], sizes = [32, 32], strides = [1, 1]} : vector<32x128xf32> to vector<32x32xf32>
    %35 = vector.extract_strided_slice %20 {offsets = [0, 64], sizes = [32, 32], strides = [1, 1]} : vector<32x128xf32> to vector<32x32xf32>
    %36 = vector.extract_strided_slice %20 {offsets = [0, 96], sizes = [32, 32], strides = [1, 1]} : vector<32x128xf32> to vector<32x32xf32>
    %cst_24 = arith.constant 0.000000e+00 : f32
    %37 = vector.broadcast %cst_24 : f32 to vector<8x32xf32>
    %cst_25 = arith.constant 0.000000e+00 : f32
    %38 = vector.broadcast %cst_25 : f32 to vector<8x32xf32>
    %c0_i32 = arith.constant 0 : i32
    %c8_i32 = arith.constant 8 : i32
    %39 = arith.muli %c0_i32, %c8_i32 : i32
    %40 = tpu.assume_multiple %39, 8 : i32
    %41 = arith.index_cast %40 : i32 to index
    %c0_26 = arith.constant 0 : index
    %42 = vector.load %arg5[%41, %c0_26] : memref<128x32xf32, #tpu.memory_space<vmem>>, vector<8x32xf32>
    %cst_27 = arith.constant dense<0.000000e+00> : vector<8x32xf32>
    %43 = tpu.matmul %37, %33, %cst_27 {dimension_numbers = #tpu.dot_dimension_numbers<[1], [0], [0], [1], [0, 0, 1, 1], [], []>} : vector<8x32xf32>, vector<32x32xf32>, vector<8x32xf32> -> vector<8x32xf32>
    %44 = arith.addf %42, %43 : vector<8x32xf32>
    %45 = arith.negf %44 : vector<8x32xf32>
    %46 = math.exp %45 : vector<8x32xf32>
    %cst_28 = arith.constant 1.000000e+00 : f32
    %47 = vector.broadcast %cst_28 : f32 to vector<8x32xf32>
    %48 = arith.addf %47, %46 : vector<8x32xf32>
    %49 = arith.divf %47, %48 : vector<8x32xf32>
    %50 = arith.index_cast %40 : i32 to index
    %c0_29 = arith.constant 0 : index
    %51 = vector.load %arg6[%50, %c0_29] : memref<128x32xf32, #tpu.memory_space<vmem>>, vector<8x32xf32>
    %cst_30 = arith.constant dense<0.000000e+00> : vector<8x32xf32>
    %52 = tpu.matmul %37, %34, %cst_30 {dimension_numbers = #tpu.dot_dimension_numbers<[1], [0], [0], [1], [0, 0, 1, 1], [], []>} : vector<8x32xf32>, vector<32x32xf32>, vector<8x32xf32> -> vector<8x32xf32>
    %53 = arith.addf %51, %52 : vector<8x32xf32>
    %54 = arith.negf %53 : vector<8x32xf32>
    %55 = math.exp %54 : vector<8x32xf32>
    %cst_31 = arith.constant 1.000000e+00 : f32
    %56 = vector.broadcast %cst_31 : f32 to vector<8x32xf32>
    %57 = arith.addf %56, %55 : vector<8x32xf32>
    %58 = arith.divf %56, %57 : vector<8x32xf32>
    %59 = arith.index_cast %40 : i32 to index
    %c0_32 = arith.constant 0 : index
    %60 = vector.load %arg7[%59, %c0_32] : memref<128x32xf32, #tpu.memory_space<vmem>>, vector<8x32xf32>
    %cst_33 = arith.constant dense<0.000000e+00> : vector<8x32xf32>
    %61 = tpu.matmul %37, %35, %cst_33 {dimension_numbers = #tpu.dot_dimension_numbers<[1], [0], [0], [1], [0, 0, 1, 1], [], []>} : vector<8x32xf32>, vector<32x32xf32>, vector<8x32xf32> -> vector<8x32xf32>
    %62 = arith.addf %60, %61 : vector<8x32xf32>
    %63 = math.tanh %62 : vector<8x32xf32>
    %64 = arith.index_cast %40 : i32 to index
    %c0_34 = arith.constant 0 : index
    %65 = vector.load %arg8[%64, %c0_34] : memref<128x32xf32, #tpu.memory_space<vmem>>, vector<8x32xf32>
    %cst_35 = arith.constant dense<0.000000e+00> : vector<8x32xf32>
    %66 = tpu.matmul %37, %36, %cst_35 {dimension_numbers = #tpu.dot_dimension_numbers<[1], [0], [0], [1], [0, 0, 1, 1], [], []>} : vector<8x32xf32>, vector<32x32xf32>, vector<8x32xf32> -> vector<8x32xf32>
    %67 = arith.addf %65, %66 : vector<8x32xf32>
    %68 = arith.negf %67 : vector<8x32xf32>
    %69 = math.exp %68 : vector<8x32xf32>
    %cst_36 = arith.constant 1.000000e+00 : f32
    %70 = vector.broadcast %cst_36 : f32 to vector<8x32xf32>
    %71 = arith.addf %70, %69 : vector<8x32xf32>
    %72 = arith.divf %70, %71 : vector<8x32xf32>
    %73 = arith.mulf %58, %38 : vector<8x32xf32>
    %74 = arith.mulf %49, %63 : vector<8x32xf32>
    %75 = arith.addf %73, %74 : vector<8x32xf32>
    %76 = math.tanh %75 : vector<8x32xf32>
    %77 = arith.mulf %72, %76 : vector<8x32xf32>
    %c1_i32 = arith.constant 1 : i32
    %c8_i32_37 = arith.constant 8 : i32
    %78 = arith.muli %c1_i32, %c8_i32_37 : i32
    %79 = tpu.assume_multiple %78, 8 : i32
    %80 = arith.index_cast %79 : i32 to index
    %c0_38 = arith.constant 0 : index
    %81 = vector.load %arg5[%80, %c0_38] : memref<128x32xf32, #tpu.memory_space<vmem>>, vector<8x32xf32>
    %cst_39 = arith.constant dense<0.000000e+00> : vector<8x32xf32>
    %82 = tpu.matmul %77, %33, %cst_39 {dimension_numbers = #tpu.dot_dimension_numbers<[1], [0], [0], [1], [0, 0, 1, 1], [], []>} : vector<8x32xf32>, vector<32x32xf32>, vector<8x32xf32> -> vector<8x32xf32>
    %83 = arith.addf %81, %82 : vector<8x32xf32>
    %84 = arith.negf %83 : vector<8x32xf32>
    %85 = math.exp %84 : vector<8x32xf32>
    %cst_40 = arith.constant 1.000000e+00 : f32
    %86 = vector.broadcast %cst_40 : f32 to vector<8x32xf32>
    %87 = arith.addf %86, %85 : vector<8x32xf32>
    %88 = arith.divf %86, %87 : vector<8x32xf32>
    %89 = arith.index_cast %79 : i32 to index
    %c0_41 = arith.constant 0 : index
    %90 = vector.load %arg6[%89, %c0_41] : memref<128x32xf32, #tpu.memory_space<vmem>>, vector<8x32xf32>
    %cst_42 = arith.constant dense<0.000000e+00> : vector<8x32xf32>
    %91 = tpu.matmul %77, %34, %cst_42 {dimension_numbers = #tpu.dot_dimension_numbers<[1], [0], [0], [1], [0, 0, 1, 1], [], []>} : vector<8x32xf32>, vector<32x32xf32>, vector<8x32xf32> -> vector<8x32xf32>
    %92 = arith.addf %90, %91 : vector<8x32xf32>
    %93 = arith.negf %92 : vector<8x32xf32>
    %94 = math.exp %93 : vector<8x32xf32>
    %cst_43 = arith.constant 1.000000e+00 : f32
    %95 = vector.broadcast %cst_43 : f32 to vector<8x32xf32>
    %96 = arith.addf %95, %94 : vector<8x32xf32>
    %97 = arith.divf %95, %96 : vector<8x32xf32>
    %98 = arith.index_cast %79 : i32 to index
    %c0_44 = arith.constant 0 : index
    %99 = vector.load %arg7[%98, %c0_44] : memref<128x32xf32, #tpu.memory_space<vmem>>, vector<8x32xf32>
    %cst_45 = arith.constant dense<0.000000e+00> : vector<8x32xf32>
    %100 = tpu.matmul %77, %35, %cst_45 {dimension_numbers = #tpu.dot_dimension_numbers<[1], [0], [0], [1], [0, 0, 1, 1], [], []>} : vector<8x32xf32>, vector<32x32xf32>, vector<8x32xf32> -> vector<8x32xf32>
    %101 = arith.addf %99, %100 : vector<8x32xf32>
    %102 = math.tanh %101 : vector<8x32xf32>
    %103 = arith.index_cast %79 : i32 to index
    %c0_46 = arith.constant 0 : index
    %104 = vector.load %arg8[%103, %c0_46] : memref<128x32xf32, #tpu.memory_space<vmem>>, vector<8x32xf32>
    %cst_47 = arith.constant dense<0.000000e+00> : vector<8x32xf32>
    %105 = tpu.matmul %77, %36, %cst_47 {dimension_numbers = #tpu.dot_dimension_numbers<[1], [0], [0], [1], [0, 0, 1, 1], [], []>} : vector<8x32xf32>, vector<32x32xf32>, vector<8x32xf32> -> vector<8x32xf32>
    %106 = arith.addf %104, %105 : vector<8x32xf32>
    %107 = arith.negf %106 : vector<8x32xf32>
    %108 = math.exp %107 : vector<8x32xf32>
    %cst_48 = arith.constant 1.000000e+00 : f32
    %109 = vector.broadcast %cst_48 : f32 to vector<8x32xf32>
    %110 = arith.addf %109, %108 : vector<8x32xf32>
    %111 = arith.divf %109, %110 : vector<8x32xf32>
    %112 = arith.mulf %97, %75 : vector<8x32xf32>
    %113 = arith.mulf %88, %102 : vector<8x32xf32>
    %114 = arith.addf %112, %113 : vector<8x32xf32>
    %115 = math.tanh %114 : vector<8x32xf32>
    %116 = arith.mulf %111, %115 : vector<8x32xf32>
    %c2_i32 = arith.constant 2 : i32
    %c8_i32_49 = arith.constant 8 : i32
    %117 = arith.muli %c2_i32, %c8_i32_49 : i32
    %118 = tpu.assume_multiple %117, 8 : i32
    %119 = arith.index_cast %118 : i32 to index
    %c0_50 = arith.constant 0 : index
    %120 = vector.load %arg5[%119, %c0_50] : memref<128x32xf32, #tpu.memory_space<vmem>>, vector<8x32xf32>
    %cst_51 = arith.constant dense<0.000000e+00> : vector<8x32xf32>
    %121 = tpu.matmul %116, %33, %cst_51 {dimension_numbers = #tpu.dot_dimension_numbers<[1], [0], [0], [1], [0, 0, 1, 1], [], []>} : vector<8x32xf32>, vector<32x32xf32>, vector<8x32xf32> -> vector<8x32xf32>
    %122 = arith.addf %120, %121 : vector<8x32xf32>
    %123 = arith.negf %122 : vector<8x32xf32>
    %124 = math.exp %123 : vector<8x32xf32>
    %cst_52 = arith.constant 1.000000e+00 : f32
    %125 = vector.broadcast %cst_52 : f32 to vector<8x32xf32>
    %126 = arith.addf %125, %124 : vector<8x32xf32>
    %127 = arith.divf %125, %126 : vector<8x32xf32>
    %128 = arith.index_cast %118 : i32 to index
    %c0_53 = arith.constant 0 : index
    %129 = vector.load %arg6[%128, %c0_53] : memref<128x32xf32, #tpu.memory_space<vmem>>, vector<8x32xf32>
    %cst_54 = arith.constant dense<0.000000e+00> : vector<8x32xf32>
    %130 = tpu.matmul %116, %34, %cst_54 {dimension_numbers = #tpu.dot_dimension_numbers<[1], [0], [0], [1], [0, 0, 1, 1], [], []>} : vector<8x32xf32>, vector<32x32xf32>, vector<8x32xf32> -> vector<8x32xf32>
    %131 = arith.addf %129, %130 : vector<8x32xf32>
    %132 = arith.negf %131 : vector<8x32xf32>
    %133 = math.exp %132 : vector<8x32xf32>
    %cst_55 = arith.constant 1.000000e+00 : f32
    %134 = vector.broadcast %cst_55 : f32 to vector<8x32xf32>
    %135 = arith.addf %134, %133 : vector<8x32xf32>
    %136 = arith.divf %134, %135 : vector<8x32xf32>
    %137 = arith.index_cast %118 : i32 to index
    %c0_56 = arith.constant 0 : index
    %138 = vector.load %arg7[%137, %c0_56] : memref<128x32xf32, #tpu.memory_space<vmem>>, vector<8x32xf32>
    %cst_57 = arith.constant dense<0.000000e+00> : vector<8x32xf32>
    %139 = tpu.matmul %116, %35, %cst_57 {dimension_numbers = #tpu.dot_dimension_numbers<[1], [0], [0], [1], [0, 0, 1, 1], [], []>} : vector<8x32xf32>, vector<32x32xf32>, vector<8x32xf32> -> vector<8x32xf32>
    %140 = arith.addf %138, %139 : vector<8x32xf32>
    %141 = math.tanh %140 : vector<8x32xf32>
    %142 = arith.index_cast %118 : i32 to index
    %c0_58 = arith.constant 0 : index
    %143 = vector.load %arg8[%142, %c0_58] : memref<128x32xf32, #tpu.memory_space<vmem>>, vector<8x32xf32>
    %cst_59 = arith.constant dense<0.000000e+00> : vector<8x32xf32>
    %144 = tpu.matmul %116, %36, %cst_59 {dimension_numbers = #tpu.dot_dimension_numbers<[1], [0], [0], [1], [0, 0, 1, 1], [], []>} : vector<8x32xf32>, vector<32x32xf32>, vector<8x32xf32> -> vector<8x32xf32>
    %145 = arith.addf %143, %144 : vector<8x32xf32>
    %146 = arith.negf %145 : vector<8x32xf32>
    %147 = math.exp %146 : vector<8x32xf32>
    %cst_60 = arith.constant 1.000000e+00 : f32
    %148 = vector.broadcast %cst_60 : f32 to vector<8x32xf32>
    %149 = arith.addf %148, %147 : vector<8x32xf32>
    %150 = arith.divf %148, %149 : vector<8x32xf32>
    %151 = arith.mulf %136, %114 : vector<8x32xf32>
    %152 = arith.mulf %127, %141 : vector<8x32xf32>
    %153 = arith.addf %151, %152 : vector<8x32xf32>
    %154 = math.tanh %153 : vector<8x32xf32>
    %155 = arith.mulf %150, %154 : vector<8x32xf32>
    %c3_i32 = arith.constant 3 : i32
    %c8_i32_61 = arith.constant 8 : i32
    %156 = arith.muli %c3_i32, %c8_i32_61 : i32
    %157 = tpu.assume_multiple %156, 8 : i32
    %158 = arith.index_cast %157 : i32 to index
    %c0_62 = arith.constant 0 : index
    %159 = vector.load %arg5[%158, %c0_62] : memref<128x32xf32, #tpu.memory_space<vmem>>, vector<8x32xf32>
    %cst_63 = arith.constant dense<0.000000e+00> : vector<8x32xf32>
    %160 = tpu.matmul %155, %33, %cst_63 {dimension_numbers = #tpu.dot_dimension_numbers<[1], [0], [0], [1], [0, 0, 1, 1], [], []>} : vector<8x32xf32>, vector<32x32xf32>, vector<8x32xf32> -> vector<8x32xf32>
    %161 = arith.addf %159, %160 : vector<8x32xf32>
    %162 = arith.negf %161 : vector<8x32xf32>
    %163 = math.exp %162 : vector<8x32xf32>
    %cst_64 = arith.constant 1.000000e+00 : f32
    %164 = vector.broadcast %cst_64 : f32 to vector<8x32xf32>
    %165 = arith.addf %164, %163 : vector<8x32xf32>
    %166 = arith.divf %164, %165 : vector<8x32xf32>
    %167 = arith.index_cast %157 : i32 to index
    %c0_65 = arith.constant 0 : index
    %168 = vector.load %arg6[%167, %c0_65] : memref<128x32xf32, #tpu.memory_space<vmem>>, vector<8x32xf32>
    %cst_66 = arith.constant dense<0.000000e+00> : vector<8x32xf32>
    %169 = tpu.matmul %155, %34, %cst_66 {dimension_numbers = #tpu.dot_dimension_numbers<[1], [0], [0], [1], [0, 0, 1, 1], [], []>} : vector<8x32xf32>, vector<32x32xf32>, vector<8x32xf32> -> vector<8x32xf32>
    %170 = arith.addf %168, %169 : vector<8x32xf32>
    %171 = arith.negf %170 : vector<8x32xf32>
    %172 = math.exp %171 : vector<8x32xf32>
    %cst_67 = arith.constant 1.000000e+00 : f32
    %173 = vector.broadcast %cst_67 : f32 to vector<8x32xf32>
    %174 = arith.addf %173, %172 : vector<8x32xf32>
    %175 = arith.divf %173, %174 : vector<8x32xf32>
    %176 = arith.index_cast %157 : i32 to index
    %c0_68 = arith.constant 0 : index
    %177 = vector.load %arg7[%176, %c0_68] : memref<128x32xf32, #tpu.memory_space<vmem>>, vector<8x32xf32>
    %cst_69 = arith.constant dense<0.000000e+00> : vector<8x32xf32>
    %178 = tpu.matmul %155, %35, %cst_69 {dimension_numbers = #tpu.dot_dimension_numbers<[1], [0], [0], [1], [0, 0, 1, 1], [], []>} : vector<8x32xf32>, vector<32x32xf32>, vector<8x32xf32> -> vector<8x32xf32>
    %179 = arith.addf %177, %178 : vector<8x32xf32>
    %180 = math.tanh %179 : vector<8x32xf32>
    %181 = arith.index_cast %157 : i32 to index
    %c0_70 = arith.constant 0 : index
    %182 = vector.load %arg8[%181, %c0_70] : memref<128x32xf32, #tpu.memory_space<vmem>>, vector<8x32xf32>
    %cst_71 = arith.constant dense<0.000000e+00> : vector<8x32xf32>
    %183 = tpu.matmul %155, %36, %cst_71 {dimension_numbers = #tpu.dot_dimension_numbers<[1], [0], [0], [1], [0, 0, 1, 1], [], []>} : vector<8x32xf32>, vector<32x32xf32>, vector<8x32xf32> -> vector<8x32xf32>
    %184 = arith.addf %182, %183 : vector<8x32xf32>
    %185 = arith.negf %184 : vector<8x32xf32>
    %186 = math.exp %185 : vector<8x32xf32>
    %cst_72 = arith.constant 1.000000e+00 : f32
    %187 = vector.broadcast %cst_72 : f32 to vector<8x32xf32>
    %188 = arith.addf %187, %186 : vector<8x32xf32>
    %189 = arith.divf %187, %188 : vector<8x32xf32>
    %190 = arith.mulf %175, %153 : vector<8x32xf32>
    %191 = arith.mulf %166, %180 : vector<8x32xf32>
    %192 = arith.addf %190, %191 : vector<8x32xf32>
    %193 = math.tanh %192 : vector<8x32xf32>
    %194 = arith.mulf %189, %193 : vector<8x32xf32>
    %c4_i32 = arith.constant 4 : i32
    %c8_i32_73 = arith.constant 8 : i32
    %195 = arith.muli %c4_i32, %c8_i32_73 : i32
    %196 = tpu.assume_multiple %195, 8 : i32
    %197 = arith.index_cast %196 : i32 to index
    %c0_74 = arith.constant 0 : index
    %198 = vector.load %arg5[%197, %c0_74] : memref<128x32xf32, #tpu.memory_space<vmem>>, vector<8x32xf32>
    %cst_75 = arith.constant dense<0.000000e+00> : vector<8x32xf32>
    %199 = tpu.matmul %194, %33, %cst_75 {dimension_numbers = #tpu.dot_dimension_numbers<[1], [0], [0], [1], [0, 0, 1, 1], [], []>} : vector<8x32xf32>, vector<32x32xf32>, vector<8x32xf32> -> vector<8x32xf32>
    %200 = arith.addf %198, %199 : vector<8x32xf32>
    %201 = arith.negf %200 : vector<8x32xf32>
    %202 = math.exp %201 : vector<8x32xf32>
    %cst_76 = arith.constant 1.000000e+00 : f32
    %203 = vector.broadcast %cst_76 : f32 to vector<8x32xf32>
    %204 = arith.addf %203, %202 : vector<8x32xf32>
    %205 = arith.divf %203, %204 : vector<8x32xf32>
    %206 = arith.index_cast %196 : i32 to index
    %c0_77 = arith.constant 0 : index
    %207 = vector.load %arg6[%206, %c0_77] : memref<128x32xf32, #tpu.memory_space<vmem>>, vector<8x32xf32>
    %cst_78 = arith.constant dense<0.000000e+00> : vector<8x32xf32>
    %208 = tpu.matmul %194, %34, %cst_78 {dimension_numbers = #tpu.dot_dimension_numbers<[1], [0], [0], [1], [0, 0, 1, 1], [], []>} : vector<8x32xf32>, vector<32x32xf32>, vector<8x32xf32> -> vector<8x32xf32>
    %209 = arith.addf %207, %208 : vector<8x32xf32>
    %210 = arith.negf %209 : vector<8x32xf32>
    %211 = math.exp %210 : vector<8x32xf32>
    %cst_79 = arith.constant 1.000000e+00 : f32
    %212 = vector.broadcast %cst_79 : f32 to vector<8x32xf32>
    %213 = arith.addf %212, %211 : vector<8x32xf32>
    %214 = arith.divf %212, %213 : vector<8x32xf32>
    %215 = arith.index_cast %196 : i32 to index
    %c0_80 = arith.constant 0 : index
    %216 = vector.load %arg7[%215, %c0_80] : memref<128x32xf32, #tpu.memory_space<vmem>>, vector<8x32xf32>
    %cst_81 = arith.constant dense<0.000000e+00> : vector<8x32xf32>
    %217 = tpu.matmul %194, %35, %cst_81 {dimension_numbers = #tpu.dot_dimension_numbers<[1], [0], [0], [1], [0, 0, 1, 1], [], []>} : vector<8x32xf32>, vector<32x32xf32>, vector<8x32xf32> -> vector<8x32xf32>
    %218 = arith.addf %216, %217 : vector<8x32xf32>
    %219 = math.tanh %218 : vector<8x32xf32>
    %220 = arith.index_cast %196 : i32 to index
    %c0_82 = arith.constant 0 : index
    %221 = vector.load %arg8[%220, %c0_82] : memref<128x32xf32, #tpu.memory_space<vmem>>, vector<8x32xf32>
    %cst_83 = arith.constant dense<0.000000e+00> : vector<8x32xf32>
    %222 = tpu.matmul %194, %36, %cst_83 {dimension_numbers = #tpu.dot_dimension_numbers<[1], [0], [0], [1], [0, 0, 1, 1], [], []>} : vector<8x32xf32>, vector<32x32xf32>, vector<8x32xf32> -> vector<8x32xf32>
    %223 = arith.addf %221, %222 : vector<8x32xf32>
    %224 = arith.negf %223 : vector<8x32xf32>
    %225 = math.exp %224 : vector<8x32xf32>
    %cst_84 = arith.constant 1.000000e+00 : f32
    %226 = vector.broadcast %cst_84 : f32 to vector<8x32xf32>
    %227 = arith.addf %226, %225 : vector<8x32xf32>
    %228 = arith.divf %226, %227 : vector<8x32xf32>
    %229 = arith.mulf %214, %192 : vector<8x32xf32>
    %230 = arith.mulf %205, %219 : vector<8x32xf32>
    %231 = arith.addf %229, %230 : vector<8x32xf32>
    %232 = math.tanh %231 : vector<8x32xf32>
    %233 = arith.mulf %228, %232 : vector<8x32xf32>
    %c5_i32 = arith.constant 5 : i32
    %c8_i32_85 = arith.constant 8 : i32
    %234 = arith.muli %c5_i32, %c8_i32_85 : i32
    %235 = tpu.assume_multiple %234, 8 : i32
    %236 = arith.index_cast %235 : i32 to index
    %c0_86 = arith.constant 0 : index
    %237 = vector.load %arg5[%236, %c0_86] : memref<128x32xf32, #tpu.memory_space<vmem>>, vector<8x32xf32>
    %cst_87 = arith.constant dense<0.000000e+00> : vector<8x32xf32>
    %238 = tpu.matmul %233, %33, %cst_87 {dimension_numbers = #tpu.dot_dimension_numbers<[1], [0], [0], [1], [0, 0, 1, 1], [], []>} : vector<8x32xf32>, vector<32x32xf32>, vector<8x32xf32> -> vector<8x32xf32>
    %239 = arith.addf %237, %238 : vector<8x32xf32>
    %240 = arith.negf %239 : vector<8x32xf32>
    %241 = math.exp %240 : vector<8x32xf32>
    %cst_88 = arith.constant 1.000000e+00 : f32
    %242 = vector.broadcast %cst_88 : f32 to vector<8x32xf32>
    %243 = arith.addf %242, %241 : vector<8x32xf32>
    %244 = arith.divf %242, %243 : vector<8x32xf32>
    %245 = arith.index_cast %235 : i32 to index
    %c0_89 = arith.constant 0 : index
    %246 = vector.load %arg6[%245, %c0_89] : memref<128x32xf32, #tpu.memory_space<vmem>>, vector<8x32xf32>
    %cst_90 = arith.constant dense<0.000000e+00> : vector<8x32xf32>
    %247 = tpu.matmul %233, %34, %cst_90 {dimension_numbers = #tpu.dot_dimension_numbers<[1], [0], [0], [1], [0, 0, 1, 1], [], []>} : vector<8x32xf32>, vector<32x32xf32>, vector<8x32xf32> -> vector<8x32xf32>
    %248 = arith.addf %246, %247 : vector<8x32xf32>
    %249 = arith.negf %248 : vector<8x32xf32>
    %250 = math.exp %249 : vector<8x32xf32>
    %cst_91 = arith.constant 1.000000e+00 : f32
    %251 = vector.broadcast %cst_91 : f32 to vector<8x32xf32>
    %252 = arith.addf %251, %250 : vector<8x32xf32>
    %253 = arith.divf %251, %252 : vector<8x32xf32>
    %254 = arith.index_cast %235 : i32 to index
    %c0_92 = arith.constant 0 : index
    %255 = vector.load %arg7[%254, %c0_92] : memref<128x32xf32, #tpu.memory_space<vmem>>, vector<8x32xf32>
    %cst_93 = arith.constant dense<0.000000e+00> : vector<8x32xf32>
    %256 = tpu.matmul %233, %35, %cst_93 {dimension_numbers = #tpu.dot_dimension_numbers<[1], [0], [0], [1], [0, 0, 1, 1], [], []>} : vector<8x32xf32>, vector<32x32xf32>, vector<8x32xf32> -> vector<8x32xf32>
    %257 = arith.addf %255, %256 : vector<8x32xf32>
    %258 = math.tanh %257 : vector<8x32xf32>
    %259 = arith.index_cast %235 : i32 to index
    %c0_94 = arith.constant 0 : index
    %260 = vector.load %arg8[%259, %c0_94] : memref<128x32xf32, #tpu.memory_space<vmem>>, vector<8x32xf32>
    %cst_95 = arith.constant dense<0.000000e+00> : vector<8x32xf32>
    %261 = tpu.matmul %233, %36, %cst_95 {dimension_numbers = #tpu.dot_dimension_numbers<[1], [0], [0], [1], [0, 0, 1, 1], [], []>} : vector<8x32xf32>, vector<32x32xf32>, vector<8x32xf32> -> vector<8x32xf32>
    %262 = arith.addf %260, %261 : vector<8x32xf32>
    %263 = arith.negf %262 : vector<8x32xf32>
    %264 = math.exp %263 : vector<8x32xf32>
    %cst_96 = arith.constant 1.000000e+00 : f32
    %265 = vector.broadcast %cst_96 : f32 to vector<8x32xf32>
    %266 = arith.addf %265, %264 : vector<8x32xf32>
    %267 = arith.divf %265, %266 : vector<8x32xf32>
    %268 = arith.mulf %253, %231 : vector<8x32xf32>
    %269 = arith.mulf %244, %258 : vector<8x32xf32>
    %270 = arith.addf %268, %269 : vector<8x32xf32>
    %271 = math.tanh %270 : vector<8x32xf32>
    %272 = arith.mulf %267, %271 : vector<8x32xf32>
    %c6_i32 = arith.constant 6 : i32
    %c8_i32_97 = arith.constant 8 : i32
    %273 = arith.muli %c6_i32, %c8_i32_97 : i32
    %274 = tpu.assume_multiple %273, 8 : i32
    %275 = arith.index_cast %274 : i32 to index
    %c0_98 = arith.constant 0 : index
    %276 = vector.load %arg5[%275, %c0_98] : memref<128x32xf32, #tpu.memory_space<vmem>>, vector<8x32xf32>
    %cst_99 = arith.constant dense<0.000000e+00> : vector<8x32xf32>
    %277 = tpu.matmul %272, %33, %cst_99 {dimension_numbers = #tpu.dot_dimension_numbers<[1], [0], [0], [1], [0, 0, 1, 1], [], []>} : vector<8x32xf32>, vector<32x32xf32>, vector<8x32xf32> -> vector<8x32xf32>
    %278 = arith.addf %276, %277 : vector<8x32xf32>
    %279 = arith.negf %278 : vector<8x32xf32>
    %280 = math.exp %279 : vector<8x32xf32>
    %cst_100 = arith.constant 1.000000e+00 : f32
    %281 = vector.broadcast %cst_100 : f32 to vector<8x32xf32>
    %282 = arith.addf %281, %280 : vector<8x32xf32>
    %283 = arith.divf %281, %282 : vector<8x32xf32>
    %284 = arith.index_cast %274 : i32 to index
    %c0_101 = arith.constant 0 : index
    %285 = vector.load %arg6[%284, %c0_101] : memref<128x32xf32, #tpu.memory_space<vmem>>, vector<8x32xf32>
    %cst_102 = arith.constant dense<0.000000e+00> : vector<8x32xf32>
    %286 = tpu.matmul %272, %34, %cst_102 {dimension_numbers = #tpu.dot_dimension_numbers<[1], [0], [0], [1], [0, 0, 1, 1], [], []>} : vector<8x32xf32>, vector<32x32xf32>, vector<8x32xf32> -> vector<8x32xf32>
    %287 = arith.addf %285, %286 : vector<8x32xf32>
    %288 = arith.negf %287 : vector<8x32xf32>
    %289 = math.exp %288 : vector<8x32xf32>
    %cst_103 = arith.constant 1.000000e+00 : f32
    %290 = vector.broadcast %cst_103 : f32 to vector<8x32xf32>
    %291 = arith.addf %290, %289 : vector<8x32xf32>
    %292 = arith.divf %290, %291 : vector<8x32xf32>
    %293 = arith.index_cast %274 : i32 to index
    %c0_104 = arith.constant 0 : index
    %294 = vector.load %arg7[%293, %c0_104] : memref<128x32xf32, #tpu.memory_space<vmem>>, vector<8x32xf32>
    %cst_105 = arith.constant dense<0.000000e+00> : vector<8x32xf32>
    %295 = tpu.matmul %272, %35, %cst_105 {dimension_numbers = #tpu.dot_dimension_numbers<[1], [0], [0], [1], [0, 0, 1, 1], [], []>} : vector<8x32xf32>, vector<32x32xf32>, vector<8x32xf32> -> vector<8x32xf32>
    %296 = arith.addf %294, %295 : vector<8x32xf32>
    %297 = math.tanh %296 : vector<8x32xf32>
    %298 = arith.index_cast %274 : i32 to index
    %c0_106 = arith.constant 0 : index
    %299 = vector.load %arg8[%298, %c0_106] : memref<128x32xf32, #tpu.memory_space<vmem>>, vector<8x32xf32>
    %cst_107 = arith.constant dense<0.000000e+00> : vector<8x32xf32>
    %300 = tpu.matmul %272, %36, %cst_107 {dimension_numbers = #tpu.dot_dimension_numbers<[1], [0], [0], [1], [0, 0, 1, 1], [], []>} : vector<8x32xf32>, vector<32x32xf32>, vector<8x32xf32> -> vector<8x32xf32>
    %301 = arith.addf %299, %300 : vector<8x32xf32>
    %302 = arith.negf %301 : vector<8x32xf32>
    %303 = math.exp %302 : vector<8x32xf32>
    %cst_108 = arith.constant 1.000000e+00 : f32
    %304 = vector.broadcast %cst_108 : f32 to vector<8x32xf32>
    %305 = arith.addf %304, %303 : vector<8x32xf32>
    %306 = arith.divf %304, %305 : vector<8x32xf32>
    %307 = arith.mulf %292, %270 : vector<8x32xf32>
    %308 = arith.mulf %283, %297 : vector<8x32xf32>
    %309 = arith.addf %307, %308 : vector<8x32xf32>
    %310 = math.tanh %309 : vector<8x32xf32>
    %311 = arith.mulf %306, %310 : vector<8x32xf32>
    %c7_i32 = arith.constant 7 : i32
    %c8_i32_109 = arith.constant 8 : i32
    %312 = arith.muli %c7_i32, %c8_i32_109 : i32
    %313 = tpu.assume_multiple %312, 8 : i32
    %314 = arith.index_cast %313 : i32 to index
    %c0_110 = arith.constant 0 : index
    %315 = vector.load %arg5[%314, %c0_110] : memref<128x32xf32, #tpu.memory_space<vmem>>, vector<8x32xf32>
    %cst_111 = arith.constant dense<0.000000e+00> : vector<8x32xf32>
    %316 = tpu.matmul %311, %33, %cst_111 {dimension_numbers = #tpu.dot_dimension_numbers<[1], [0], [0], [1], [0, 0, 1, 1], [], []>} : vector<8x32xf32>, vector<32x32xf32>, vector<8x32xf32> -> vector<8x32xf32>
    %317 = arith.addf %315, %316 : vector<8x32xf32>
    %318 = arith.negf %317 : vector<8x32xf32>
    %319 = math.exp %318 : vector<8x32xf32>
    %cst_112 = arith.constant 1.000000e+00 : f32
    %320 = vector.broadcast %cst_112 : f32 to vector<8x32xf32>
    %321 = arith.addf %320, %319 : vector<8x32xf32>
    %322 = arith.divf %320, %321 : vector<8x32xf32>
    %323 = arith.index_cast %313 : i32 to index
    %c0_113 = arith.constant 0 : index
    %324 = vector.load %arg6[%323, %c0_113] : memref<128x32xf32, #tpu.memory_space<vmem>>, vector<8x32xf32>
    %cst_114 = arith.constant dense<0.000000e+00> : vector<8x32xf32>
    %325 = tpu.matmul %311, %34, %cst_114 {dimension_numbers = #tpu.dot_dimension_numbers<[1], [0], [0], [1], [0, 0, 1, 1], [], []>} : vector<8x32xf32>, vector<32x32xf32>, vector<8x32xf32> -> vector<8x32xf32>
    %326 = arith.addf %324, %325 : vector<8x32xf32>
    %327 = arith.negf %326 : vector<8x32xf32>
    %328 = math.exp %327 : vector<8x32xf32>
    %cst_115 = arith.constant 1.000000e+00 : f32
    %329 = vector.broadcast %cst_115 : f32 to vector<8x32xf32>
    %330 = arith.addf %329, %328 : vector<8x32xf32>
    %331 = arith.divf %329, %330 : vector<8x32xf32>
    %332 = arith.index_cast %313 : i32 to index
    %c0_116 = arith.constant 0 : index
    %333 = vector.load %arg7[%332, %c0_116] : memref<128x32xf32, #tpu.memory_space<vmem>>, vector<8x32xf32>
    %cst_117 = arith.constant dense<0.000000e+00> : vector<8x32xf32>
    %334 = tpu.matmul %311, %35, %cst_117 {dimension_numbers = #tpu.dot_dimension_numbers<[1], [0], [0], [1], [0, 0, 1, 1], [], []>} : vector<8x32xf32>, vector<32x32xf32>, vector<8x32xf32> -> vector<8x32xf32>
    %335 = arith.addf %333, %334 : vector<8x32xf32>
    %336 = math.tanh %335 : vector<8x32xf32>
    %337 = arith.index_cast %313 : i32 to index
    %c0_118 = arith.constant 0 : index
    %338 = vector.load %arg8[%337, %c0_118] : memref<128x32xf32, #tpu.memory_space<vmem>>, vector<8x32xf32>
    %cst_119 = arith.constant dense<0.000000e+00> : vector<8x32xf32>
    %339 = tpu.matmul %311, %36, %cst_119 {dimension_numbers = #tpu.dot_dimension_numbers<[1], [0], [0], [1], [0, 0, 1, 1], [], []>} : vector<8x32xf32>, vector<32x32xf32>, vector<8x32xf32> -> vector<8x32xf32>
    %340 = arith.addf %338, %339 : vector<8x32xf32>
    %341 = arith.negf %340 : vector<8x32xf32>
    %342 = math.exp %341 : vector<8x32xf32>
    %cst_120 = arith.constant 1.000000e+00 : f32
    %343 = vector.broadcast %cst_120 : f32 to vector<8x32xf32>
    %344 = arith.addf %343, %342 : vector<8x32xf32>
    %345 = arith.divf %343, %344 : vector<8x32xf32>
    %346 = arith.mulf %331, %309 : vector<8x32xf32>
    %347 = arith.mulf %322, %336 : vector<8x32xf32>
    %348 = arith.addf %346, %347 : vector<8x32xf32>
    %349 = math.tanh %348 : vector<8x32xf32>
    %350 = arith.mulf %345, %349 : vector<8x32xf32>
    %c8_i32_121 = arith.constant 8 : i32
    %c8_i32_122 = arith.constant 8 : i32
    %351 = arith.muli %c8_i32_121, %c8_i32_122 : i32
    %352 = tpu.assume_multiple %351, 8 : i32
    %353 = arith.index_cast %352 : i32 to index
    %c0_123 = arith.constant 0 : index
    %354 = vector.load %arg5[%353, %c0_123] : memref<128x32xf32, #tpu.memory_space<vmem>>, vector<8x32xf32>
    %cst_124 = arith.constant dense<0.000000e+00> : vector<8x32xf32>
    %355 = tpu.matmul %350, %33, %cst_124 {dimension_numbers = #tpu.dot_dimension_numbers<[1], [0], [0], [1], [0, 0, 1, 1], [], []>} : vector<8x32xf32>, vector<32x32xf32>, vector<8x32xf32> -> vector<8x32xf32>
    %356 = arith.addf %354, %355 : vector<8x32xf32>
    %357 = arith.negf %356 : vector<8x32xf32>
    %358 = math.exp %357 : vector<8x32xf32>
    %cst_125 = arith.constant 1.000000e+00 : f32
    %359 = vector.broadcast %cst_125 : f32 to vector<8x32xf32>
    %360 = arith.addf %359, %358 : vector<8x32xf32>
    %361 = arith.divf %359, %360 : vector<8x32xf32>
    %362 = arith.index_cast %352 : i32 to index
    %c0_126 = arith.constant 0 : index
    %363 = vector.load %arg6[%362, %c0_126] : memref<128x32xf32, #tpu.memory_space<vmem>>, vector<8x32xf32>
    %cst_127 = arith.constant dense<0.000000e+00> : vector<8x32xf32>
    %364 = tpu.matmul %350, %34, %cst_127 {dimension_numbers = #tpu.dot_dimension_numbers<[1], [0], [0], [1], [0, 0, 1, 1], [], []>} : vector<8x32xf32>, vector<32x32xf32>, vector<8x32xf32> -> vector<8x32xf32>
    %365 = arith.addf %363, %364 : vector<8x32xf32>
    %366 = arith.negf %365 : vector<8x32xf32>
    %367 = math.exp %366 : vector<8x32xf32>
    %cst_128 = arith.constant 1.000000e+00 : f32
    %368 = vector.broadcast %cst_128 : f32 to vector<8x32xf32>
    %369 = arith.addf %368, %367 : vector<8x32xf32>
    %370 = arith.divf %368, %369 : vector<8x32xf32>
    %371 = arith.index_cast %352 : i32 to index
    %c0_129 = arith.constant 0 : index
    %372 = vector.load %arg7[%371, %c0_129] : memref<128x32xf32, #tpu.memory_space<vmem>>, vector<8x32xf32>
    %cst_130 = arith.constant dense<0.000000e+00> : vector<8x32xf32>
    %373 = tpu.matmul %350, %35, %cst_130 {dimension_numbers = #tpu.dot_dimension_numbers<[1], [0], [0], [1], [0, 0, 1, 1], [], []>} : vector<8x32xf32>, vector<32x32xf32>, vector<8x32xf32> -> vector<8x32xf32>
    %374 = arith.addf %372, %373 : vector<8x32xf32>
    %375 = math.tanh %374 : vector<8x32xf32>
    %376 = arith.index_cast %352 : i32 to index
    %c0_131 = arith.constant 0 : index
    %377 = vector.load %arg8[%376, %c0_131] : memref<128x32xf32, #tpu.memory_space<vmem>>, vector<8x32xf32>
    %cst_132 = arith.constant dense<0.000000e+00> : vector<8x32xf32>
    %378 = tpu.matmul %350, %36, %cst_132 {dimension_numbers = #tpu.dot_dimension_numbers<[1], [0], [0], [1], [0, 0, 1, 1], [], []>} : vector<8x32xf32>, vector<32x32xf32>, vector<8x32xf32> -> vector<8x32xf32>
    %379 = arith.addf %377, %378 : vector<8x32xf32>
    %380 = arith.negf %379 : vector<8x32xf32>
    %381 = math.exp %380 : vector<8x32xf32>
    %cst_133 = arith.constant 1.000000e+00 : f32
    %382 = vector.broadcast %cst_133 : f32 to vector<8x32xf32>
    %383 = arith.addf %382, %381 : vector<8x32xf32>
    %384 = arith.divf %382, %383 : vector<8x32xf32>
    %385 = arith.mulf %370, %348 : vector<8x32xf32>
    %386 = arith.mulf %361, %375 : vector<8x32xf32>
    %387 = arith.addf %385, %386 : vector<8x32xf32>
    %388 = math.tanh %387 : vector<8x32xf32>
    %389 = arith.mulf %384, %388 : vector<8x32xf32>
    %c9_i32 = arith.constant 9 : i32
    %c8_i32_134 = arith.constant 8 : i32
    %390 = arith.muli %c9_i32, %c8_i32_134 : i32
    %391 = tpu.assume_multiple %390, 8 : i32
    %392 = arith.index_cast %391 : i32 to index
    %c0_135 = arith.constant 0 : index
    %393 = vector.load %arg5[%392, %c0_135] : memref<128x32xf32, #tpu.memory_space<vmem>>, vector<8x32xf32>
    %cst_136 = arith.constant dense<0.000000e+00> : vector<8x32xf32>
    %394 = tpu.matmul %389, %33, %cst_136 {dimension_numbers = #tpu.dot_dimension_numbers<[1], [0], [0], [1], [0, 0, 1, 1], [], []>} : vector<8x32xf32>, vector<32x32xf32>, vector<8x32xf32> -> vector<8x32xf32>
    %395 = arith.addf %393, %394 : vector<8x32xf32>
    %396 = arith.negf %395 : vector<8x32xf32>
    %397 = math.exp %396 : vector<8x32xf32>
    %cst_137 = arith.constant 1.000000e+00 : f32
    %398 = vector.broadcast %cst_137 : f32 to vector<8x32xf32>
    %399 = arith.addf %398, %397 : vector<8x32xf32>
    %400 = arith.divf %398, %399 : vector<8x32xf32>
    %401 = arith.index_cast %391 : i32 to index
    %c0_138 = arith.constant 0 : index
    %402 = vector.load %arg6[%401, %c0_138] : memref<128x32xf32, #tpu.memory_space<vmem>>, vector<8x32xf32>
    %cst_139 = arith.constant dense<0.000000e+00> : vector<8x32xf32>
    %403 = tpu.matmul %389, %34, %cst_139 {dimension_numbers = #tpu.dot_dimension_numbers<[1], [0], [0], [1], [0, 0, 1, 1], [], []>} : vector<8x32xf32>, vector<32x32xf32>, vector<8x32xf32> -> vector<8x32xf32>
    %404 = arith.addf %402, %403 : vector<8x32xf32>
    %405 = arith.negf %404 : vector<8x32xf32>
    %406 = math.exp %405 : vector<8x32xf32>
    %cst_140 = arith.constant 1.000000e+00 : f32
    %407 = vector.broadcast %cst_140 : f32 to vector<8x32xf32>
    %408 = arith.addf %407, %406 : vector<8x32xf32>
    %409 = arith.divf %407, %408 : vector<8x32xf32>
    %410 = arith.index_cast %391 : i32 to index
    %c0_141 = arith.constant 0 : index
    %411 = vector.load %arg7[%410, %c0_141] : memref<128x32xf32, #tpu.memory_space<vmem>>, vector<8x32xf32>
    %cst_142 = arith.constant dense<0.000000e+00> : vector<8x32xf32>
    %412 = tpu.matmul %389, %35, %cst_142 {dimension_numbers = #tpu.dot_dimension_numbers<[1], [0], [0], [1], [0, 0, 1, 1], [], []>} : vector<8x32xf32>, vector<32x32xf32>, vector<8x32xf32> -> vector<8x32xf32>
    %413 = arith.addf %411, %412 : vector<8x32xf32>
    %414 = math.tanh %413 : vector<8x32xf32>
    %415 = arith.index_cast %391 : i32 to index
    %c0_143 = arith.constant 0 : index
    %416 = vector.load %arg8[%415, %c0_143] : memref<128x32xf32, #tpu.memory_space<vmem>>, vector<8x32xf32>
    %cst_144 = arith.constant dense<0.000000e+00> : vector<8x32xf32>
    %417 = tpu.matmul %389, %36, %cst_144 {dimension_numbers = #tpu.dot_dimension_numbers<[1], [0], [0], [1], [0, 0, 1, 1], [], []>} : vector<8x32xf32>, vector<32x32xf32>, vector<8x32xf32> -> vector<8x32xf32>
    %418 = arith.addf %416, %417 : vector<8x32xf32>
    %419 = arith.negf %418 : vector<8x32xf32>
    %420 = math.exp %419 : vector<8x32xf32>
    %cst_145 = arith.constant 1.000000e+00 : f32
    %421 = vector.broadcast %cst_145 : f32 to vector<8x32xf32>
    %422 = arith.addf %421, %420 : vector<8x32xf32>
    %423 = arith.divf %421, %422 : vector<8x32xf32>
    %424 = arith.mulf %409, %387 : vector<8x32xf32>
    %425 = arith.mulf %400, %414 : vector<8x32xf32>
    %426 = arith.addf %424, %425 : vector<8x32xf32>
    %427 = math.tanh %426 : vector<8x32xf32>
    %428 = arith.mulf %423, %427 : vector<8x32xf32>
    %c10_i32 = arith.constant 10 : i32
    %c8_i32_146 = arith.constant 8 : i32
    %429 = arith.muli %c10_i32, %c8_i32_146 : i32
    %430 = tpu.assume_multiple %429, 8 : i32
    %431 = arith.index_cast %430 : i32 to index
    %c0_147 = arith.constant 0 : index
    %432 = vector.load %arg5[%431, %c0_147] : memref<128x32xf32, #tpu.memory_space<vmem>>, vector<8x32xf32>
    %cst_148 = arith.constant dense<0.000000e+00> : vector<8x32xf32>
    %433 = tpu.matmul %428, %33, %cst_148 {dimension_numbers = #tpu.dot_dimension_numbers<[1], [0], [0], [1], [0, 0, 1, 1], [], []>} : vector<8x32xf32>, vector<32x32xf32>, vector<8x32xf32> -> vector<8x32xf32>
    %434 = arith.addf %432, %433 : vector<8x32xf32>
    %435 = arith.negf %434 : vector<8x32xf32>
    %436 = math.exp %435 : vector<8x32xf32>
    %cst_149 = arith.constant 1.000000e+00 : f32
    %437 = vector.broadcast %cst_149 : f32 to vector<8x32xf32>
    %438 = arith.addf %437, %436 : vector<8x32xf32>
    %439 = arith.divf %437, %438 : vector<8x32xf32>
    %440 = arith.index_cast %430 : i32 to index
    %c0_150 = arith.constant 0 : index
    %441 = vector.load %arg6[%440, %c0_150] : memref<128x32xf32, #tpu.memory_space<vmem>>, vector<8x32xf32>
    %cst_151 = arith.constant dense<0.000000e+00> : vector<8x32xf32>
    %442 = tpu.matmul %428, %34, %cst_151 {dimension_numbers = #tpu.dot_dimension_numbers<[1], [0], [0], [1], [0, 0, 1, 1], [], []>} : vector<8x32xf32>, vector<32x32xf32>, vector<8x32xf32> -> vector<8x32xf32>
    %443 = arith.addf %441, %442 : vector<8x32xf32>
    %444 = arith.negf %443 : vector<8x32xf32>
    %445 = math.exp %444 : vector<8x32xf32>
    %cst_152 = arith.constant 1.000000e+00 : f32
    %446 = vector.broadcast %cst_152 : f32 to vector<8x32xf32>
    %447 = arith.addf %446, %445 : vector<8x32xf32>
    %448 = arith.divf %446, %447 : vector<8x32xf32>
    %449 = arith.index_cast %430 : i32 to index
    %c0_153 = arith.constant 0 : index
    %450 = vector.load %arg7[%449, %c0_153] : memref<128x32xf32, #tpu.memory_space<vmem>>, vector<8x32xf32>
    %cst_154 = arith.constant dense<0.000000e+00> : vector<8x32xf32>
    %451 = tpu.matmul %428, %35, %cst_154 {dimension_numbers = #tpu.dot_dimension_numbers<[1], [0], [0], [1], [0, 0, 1, 1], [], []>} : vector<8x32xf32>, vector<32x32xf32>, vector<8x32xf32> -> vector<8x32xf32>
    %452 = arith.addf %450, %451 : vector<8x32xf32>
    %453 = math.tanh %452 : vector<8x32xf32>
    %454 = arith.index_cast %430 : i32 to index
    %c0_155 = arith.constant 0 : index
    %455 = vector.load %arg8[%454, %c0_155] : memref<128x32xf32, #tpu.memory_space<vmem>>, vector<8x32xf32>
    %cst_156 = arith.constant dense<0.000000e+00> : vector<8x32xf32>
    %456 = tpu.matmul %428, %36, %cst_156 {dimension_numbers = #tpu.dot_dimension_numbers<[1], [0], [0], [1], [0, 0, 1, 1], [], []>} : vector<8x32xf32>, vector<32x32xf32>, vector<8x32xf32> -> vector<8x32xf32>
    %457 = arith.addf %455, %456 : vector<8x32xf32>
    %458 = arith.negf %457 : vector<8x32xf32>
    %459 = math.exp %458 : vector<8x32xf32>
    %cst_157 = arith.constant 1.000000e+00 : f32
    %460 = vector.broadcast %cst_157 : f32 to vector<8x32xf32>
    %461 = arith.addf %460, %459 : vector<8x32xf32>
    %462 = arith.divf %460, %461 : vector<8x32xf32>
    %463 = arith.mulf %448, %426 : vector<8x32xf32>
    %464 = arith.mulf %439, %453 : vector<8x32xf32>
    %465 = arith.addf %463, %464 : vector<8x32xf32>
    %466 = math.tanh %465 : vector<8x32xf32>
    %467 = arith.mulf %462, %466 : vector<8x32xf32>
    %c11_i32 = arith.constant 11 : i32
    %c8_i32_158 = arith.constant 8 : i32
    %468 = arith.muli %c11_i32, %c8_i32_158 : i32
    %469 = tpu.assume_multiple %468, 8 : i32
    %470 = arith.index_cast %469 : i32 to index
    %c0_159 = arith.constant 0 : index
    %471 = vector.load %arg5[%470, %c0_159] : memref<128x32xf32, #tpu.memory_space<vmem>>, vector<8x32xf32>
    %cst_160 = arith.constant dense<0.000000e+00> : vector<8x32xf32>
    %472 = tpu.matmul %467, %33, %cst_160 {dimension_numbers = #tpu.dot_dimension_numbers<[1], [0], [0], [1], [0, 0, 1, 1], [], []>} : vector<8x32xf32>, vector<32x32xf32>, vector<8x32xf32> -> vector<8x32xf32>
    %473 = arith.addf %471, %472 : vector<8x32xf32>
    %474 = arith.negf %473 : vector<8x32xf32>
    %475 = math.exp %474 : vector<8x32xf32>
    %cst_161 = arith.constant 1.000000e+00 : f32
    %476 = vector.broadcast %cst_161 : f32 to vector<8x32xf32>
    %477 = arith.addf %476, %475 : vector<8x32xf32>
    %478 = arith.divf %476, %477 : vector<8x32xf32>
    %479 = arith.index_cast %469 : i32 to index
    %c0_162 = arith.constant 0 : index
    %480 = vector.load %arg6[%479, %c0_162] : memref<128x32xf32, #tpu.memory_space<vmem>>, vector<8x32xf32>
    %cst_163 = arith.constant dense<0.000000e+00> : vector<8x32xf32>
    %481 = tpu.matmul %467, %34, %cst_163 {dimension_numbers = #tpu.dot_dimension_numbers<[1], [0], [0], [1], [0, 0, 1, 1], [], []>} : vector<8x32xf32>, vector<32x32xf32>, vector<8x32xf32> -> vector<8x32xf32>
    %482 = arith.addf %480, %481 : vector<8x32xf32>
    %483 = arith.negf %482 : vector<8x32xf32>
    %484 = math.exp %483 : vector<8x32xf32>
    %cst_164 = arith.constant 1.000000e+00 : f32
    %485 = vector.broadcast %cst_164 : f32 to vector<8x32xf32>
    %486 = arith.addf %485, %484 : vector<8x32xf32>
    %487 = arith.divf %485, %486 : vector<8x32xf32>
    %488 = arith.index_cast %469 : i32 to index
    %c0_165 = arith.constant 0 : index
    %489 = vector.load %arg7[%488, %c0_165] : memref<128x32xf32, #tpu.memory_space<vmem>>, vector<8x32xf32>
    %cst_166 = arith.constant dense<0.000000e+00> : vector<8x32xf32>
    %490 = tpu.matmul %467, %35, %cst_166 {dimension_numbers = #tpu.dot_dimension_numbers<[1], [0], [0], [1], [0, 0, 1, 1], [], []>} : vector<8x32xf32>, vector<32x32xf32>, vector<8x32xf32> -> vector<8x32xf32>
    %491 = arith.addf %489, %490 : vector<8x32xf32>
    %492 = math.tanh %491 : vector<8x32xf32>
    %493 = arith.index_cast %469 : i32 to index
    %c0_167 = arith.constant 0 : index
    %494 = vector.load %arg8[%493, %c0_167] : memref<128x32xf32, #tpu.memory_space<vmem>>, vector<8x32xf32>
    %cst_168 = arith.constant dense<0.000000e+00> : vector<8x32xf32>
    %495 = tpu.matmul %467, %36, %cst_168 {dimension_numbers = #tpu.dot_dimension_numbers<[1], [0], [0], [1], [0, 0, 1, 1], [], []>} : vector<8x32xf32>, vector<32x32xf32>, vector<8x32xf32> -> vector<8x32xf32>
    %496 = arith.addf %494, %495 : vector<8x32xf32>
    %497 = arith.negf %496 : vector<8x32xf32>
    %498 = math.exp %497 : vector<8x32xf32>
    %cst_169 = arith.constant 1.000000e+00 : f32
    %499 = vector.broadcast %cst_169 : f32 to vector<8x32xf32>
    %500 = arith.addf %499, %498 : vector<8x32xf32>
    %501 = arith.divf %499, %500 : vector<8x32xf32>
    %502 = arith.mulf %487, %465 : vector<8x32xf32>
    %503 = arith.mulf %478, %492 : vector<8x32xf32>
    %504 = arith.addf %502, %503 : vector<8x32xf32>
    %505 = math.tanh %504 : vector<8x32xf32>
    %506 = arith.mulf %501, %505 : vector<8x32xf32>
    %c12_i32 = arith.constant 12 : i32
    %c8_i32_170 = arith.constant 8 : i32
    %507 = arith.muli %c12_i32, %c8_i32_170 : i32
    %508 = tpu.assume_multiple %507, 8 : i32
    %509 = arith.index_cast %508 : i32 to index
    %c0_171 = arith.constant 0 : index
    %510 = vector.load %arg5[%509, %c0_171] : memref<128x32xf32, #tpu.memory_space<vmem>>, vector<8x32xf32>
    %cst_172 = arith.constant dense<0.000000e+00> : vector<8x32xf32>
    %511 = tpu.matmul %506, %33, %cst_172 {dimension_numbers = #tpu.dot_dimension_numbers<[1], [0], [0], [1], [0, 0, 1, 1], [], []>} : vector<8x32xf32>, vector<32x32xf32>, vector<8x32xf32> -> vector<8x32xf32>
    %512 = arith.addf %510, %511 : vector<8x32xf32>
    %513 = arith.negf %512 : vector<8x32xf32>
    %514 = math.exp %513 : vector<8x32xf32>
    %cst_173 = arith.constant 1.000000e+00 : f32
    %515 = vector.broadcast %cst_173 : f32 to vector<8x32xf32>
    %516 = arith.addf %515, %514 : vector<8x32xf32>
    %517 = arith.divf %515, %516 : vector<8x32xf32>
    %518 = arith.index_cast %508 : i32 to index
    %c0_174 = arith.constant 0 : index
    %519 = vector.load %arg6[%518, %c0_174] : memref<128x32xf32, #tpu.memory_space<vmem>>, vector<8x32xf32>
    %cst_175 = arith.constant dense<0.000000e+00> : vector<8x32xf32>
    %520 = tpu.matmul %506, %34, %cst_175 {dimension_numbers = #tpu.dot_dimension_numbers<[1], [0], [0], [1], [0, 0, 1, 1], [], []>} : vector<8x32xf32>, vector<32x32xf32>, vector<8x32xf32> -> vector<8x32xf32>
    %521 = arith.addf %519, %520 : vector<8x32xf32>
    %522 = arith.negf %521 : vector<8x32xf32>
    %523 = math.exp %522 : vector<8x32xf32>
    %cst_176 = arith.constant 1.000000e+00 : f32
    %524 = vector.broadcast %cst_176 : f32 to vector<8x32xf32>
    %525 = arith.addf %524, %523 : vector<8x32xf32>
    %526 = arith.divf %524, %525 : vector<8x32xf32>
    %527 = arith.index_cast %508 : i32 to index
    %c0_177 = arith.constant 0 : index
    %528 = vector.load %arg7[%527, %c0_177] : memref<128x32xf32, #tpu.memory_space<vmem>>, vector<8x32xf32>
    %cst_178 = arith.constant dense<0.000000e+00> : vector<8x32xf32>
    %529 = tpu.matmul %506, %35, %cst_178 {dimension_numbers = #tpu.dot_dimension_numbers<[1], [0], [0], [1], [0, 0, 1, 1], [], []>} : vector<8x32xf32>, vector<32x32xf32>, vector<8x32xf32> -> vector<8x32xf32>
    %530 = arith.addf %528, %529 : vector<8x32xf32>
    %531 = math.tanh %530 : vector<8x32xf32>
    %532 = arith.index_cast %508 : i32 to index
    %c0_179 = arith.constant 0 : index
    %533 = vector.load %arg8[%532, %c0_179] : memref<128x32xf32, #tpu.memory_space<vmem>>, vector<8x32xf32>
    %cst_180 = arith.constant dense<0.000000e+00> : vector<8x32xf32>
    %534 = tpu.matmul %506, %36, %cst_180 {dimension_numbers = #tpu.dot_dimension_numbers<[1], [0], [0], [1], [0, 0, 1, 1], [], []>} : vector<8x32xf32>, vector<32x32xf32>, vector<8x32xf32> -> vector<8x32xf32>
    %535 = arith.addf %533, %534 : vector<8x32xf32>
    %536 = arith.negf %535 : vector<8x32xf32>
    %537 = math.exp %536 : vector<8x32xf32>
    %cst_181 = arith.constant 1.000000e+00 : f32
    %538 = vector.broadcast %cst_181 : f32 to vector<8x32xf32>
    %539 = arith.addf %538, %537 : vector<8x32xf32>
    %540 = arith.divf %538, %539 : vector<8x32xf32>
    %541 = arith.mulf %526, %504 : vector<8x32xf32>
    %542 = arith.mulf %517, %531 : vector<8x32xf32>
    %543 = arith.addf %541, %542 : vector<8x32xf32>
    %544 = math.tanh %543 : vector<8x32xf32>
    %545 = arith.mulf %540, %544 : vector<8x32xf32>
    %c13_i32 = arith.constant 13 : i32
    %c8_i32_182 = arith.constant 8 : i32
    %546 = arith.muli %c13_i32, %c8_i32_182 : i32
    %547 = tpu.assume_multiple %546, 8 : i32
    %548 = arith.index_cast %547 : i32 to index
    %c0_183 = arith.constant 0 : index
    %549 = vector.load %arg5[%548, %c0_183] : memref<128x32xf32, #tpu.memory_space<vmem>>, vector<8x32xf32>
    %cst_184 = arith.constant dense<0.000000e+00> : vector<8x32xf32>
    %550 = tpu.matmul %545, %33, %cst_184 {dimension_numbers = #tpu.dot_dimension_numbers<[1], [0], [0], [1], [0, 0, 1, 1], [], []>} : vector<8x32xf32>, vector<32x32xf32>, vector<8x32xf32> -> vector<8x32xf32>
    %551 = arith.addf %549, %550 : vector<8x32xf32>
    %552 = arith.negf %551 : vector<8x32xf32>
    %553 = math.exp %552 : vector<8x32xf32>
    %cst_185 = arith.constant 1.000000e+00 : f32
    %554 = vector.broadcast %cst_185 : f32 to vector<8x32xf32>
    %555 = arith.addf %554, %553 : vector<8x32xf32>
    %556 = arith.divf %554, %555 : vector<8x32xf32>
    %557 = arith.index_cast %547 : i32 to index
    %c0_186 = arith.constant 0 : index
    %558 = vector.load %arg6[%557, %c0_186] : memref<128x32xf32, #tpu.memory_space<vmem>>, vector<8x32xf32>
    %cst_187 = arith.constant dense<0.000000e+00> : vector<8x32xf32>
    %559 = tpu.matmul %545, %34, %cst_187 {dimension_numbers = #tpu.dot_dimension_numbers<[1], [0], [0], [1], [0, 0, 1, 1], [], []>} : vector<8x32xf32>, vector<32x32xf32>, vector<8x32xf32> -> vector<8x32xf32>
    %560 = arith.addf %558, %559 : vector<8x32xf32>
    %561 = arith.negf %560 : vector<8x32xf32>
    %562 = math.exp %561 : vector<8x32xf32>
    %cst_188 = arith.constant 1.000000e+00 : f32
    %563 = vector.broadcast %cst_188 : f32 to vector<8x32xf32>
    %564 = arith.addf %563, %562 : vector<8x32xf32>
    %565 = arith.divf %563, %564 : vector<8x32xf32>
    %566 = arith.index_cast %547 : i32 to index
    %c0_189 = arith.constant 0 : index
    %567 = vector.load %arg7[%566, %c0_189] : memref<128x32xf32, #tpu.memory_space<vmem>>, vector<8x32xf32>
    %cst_190 = arith.constant dense<0.000000e+00> : vector<8x32xf32>
    %568 = tpu.matmul %545, %35, %cst_190 {dimension_numbers = #tpu.dot_dimension_numbers<[1], [0], [0], [1], [0, 0, 1, 1], [], []>} : vector<8x32xf32>, vector<32x32xf32>, vector<8x32xf32> -> vector<8x32xf32>
    %569 = arith.addf %567, %568 : vector<8x32xf32>
    %570 = math.tanh %569 : vector<8x32xf32>
    %571 = arith.index_cast %547 : i32 to index
    %c0_191 = arith.constant 0 : index
    %572 = vector.load %arg8[%571, %c0_191] : memref<128x32xf32, #tpu.memory_space<vmem>>, vector<8x32xf32>
    %cst_192 = arith.constant dense<0.000000e+00> : vector<8x32xf32>
    %573 = tpu.matmul %545, %36, %cst_192 {dimension_numbers = #tpu.dot_dimension_numbers<[1], [0], [0], [1], [0, 0, 1, 1], [], []>} : vector<8x32xf32>, vector<32x32xf32>, vector<8x32xf32> -> vector<8x32xf32>
    %574 = arith.addf %572, %573 : vector<8x32xf32>
    %575 = arith.negf %574 : vector<8x32xf32>
    %576 = math.exp %575 : vector<8x32xf32>
    %cst_193 = arith.constant 1.000000e+00 : f32
    %577 = vector.broadcast %cst_193 : f32 to vector<8x32xf32>
    %578 = arith.addf %577, %576 : vector<8x32xf32>
    %579 = arith.divf %577, %578 : vector<8x32xf32>
    %580 = arith.mulf %565, %543 : vector<8x32xf32>
    %581 = arith.mulf %556, %570 : vector<8x32xf32>
    %582 = arith.addf %580, %581 : vector<8x32xf32>
    %583 = math.tanh %582 : vector<8x32xf32>
    %584 = arith.mulf %579, %583 : vector<8x32xf32>
    %c14_i32 = arith.constant 14 : i32
    %c8_i32_194 = arith.constant 8 : i32
    %585 = arith.muli %c14_i32, %c8_i32_194 : i32
    %586 = tpu.assume_multiple %585, 8 : i32
    %587 = arith.index_cast %586 : i32 to index
    %c0_195 = arith.constant 0 : index
    %588 = vector.load %arg5[%587, %c0_195] : memref<128x32xf32, #tpu.memory_space<vmem>>, vector<8x32xf32>
    %cst_196 = arith.constant dense<0.000000e+00> : vector<8x32xf32>
    %589 = tpu.matmul %584, %33, %cst_196 {dimension_numbers = #tpu.dot_dimension_numbers<[1], [0], [0], [1], [0, 0, 1, 1], [], []>} : vector<8x32xf32>, vector<32x32xf32>, vector<8x32xf32> -> vector<8x32xf32>
    %590 = arith.addf %588, %589 : vector<8x32xf32>
    %591 = arith.negf %590 : vector<8x32xf32>
    %592 = math.exp %591 : vector<8x32xf32>
    %cst_197 = arith.constant 1.000000e+00 : f32
    %593 = vector.broadcast %cst_197 : f32 to vector<8x32xf32>
    %594 = arith.addf %593, %592 : vector<8x32xf32>
    %595 = arith.divf %593, %594 : vector<8x32xf32>
    %596 = arith.index_cast %586 : i32 to index
    %c0_198 = arith.constant 0 : index
    %597 = vector.load %arg6[%596, %c0_198] : memref<128x32xf32, #tpu.memory_space<vmem>>, vector<8x32xf32>
    %cst_199 = arith.constant dense<0.000000e+00> : vector<8x32xf32>
    %598 = tpu.matmul %584, %34, %cst_199 {dimension_numbers = #tpu.dot_dimension_numbers<[1], [0], [0], [1], [0, 0, 1, 1], [], []>} : vector<8x32xf32>, vector<32x32xf32>, vector<8x32xf32> -> vector<8x32xf32>
    %599 = arith.addf %597, %598 : vector<8x32xf32>
    %600 = arith.negf %599 : vector<8x32xf32>
    %601 = math.exp %600 : vector<8x32xf32>
    %cst_200 = arith.constant 1.000000e+00 : f32
    %602 = vector.broadcast %cst_200 : f32 to vector<8x32xf32>
    %603 = arith.addf %602, %601 : vector<8x32xf32>
    %604 = arith.divf %602, %603 : vector<8x32xf32>
    %605 = arith.index_cast %586 : i32 to index
    %c0_201 = arith.constant 0 : index
    %606 = vector.load %arg7[%605, %c0_201] : memref<128x32xf32, #tpu.memory_space<vmem>>, vector<8x32xf32>
    %cst_202 = arith.constant dense<0.000000e+00> : vector<8x32xf32>
    %607 = tpu.matmul %584, %35, %cst_202 {dimension_numbers = #tpu.dot_dimension_numbers<[1], [0], [0], [1], [0, 0, 1, 1], [], []>} : vector<8x32xf32>, vector<32x32xf32>, vector<8x32xf32> -> vector<8x32xf32>
    %608 = arith.addf %606, %607 : vector<8x32xf32>
    %609 = math.tanh %608 : vector<8x32xf32>
    %610 = arith.index_cast %586 : i32 to index
    %c0_203 = arith.constant 0 : index
    %611 = vector.load %arg8[%610, %c0_203] : memref<128x32xf32, #tpu.memory_space<vmem>>, vector<8x32xf32>
    %cst_204 = arith.constant dense<0.000000e+00> : vector<8x32xf32>
    %612 = tpu.matmul %584, %36, %cst_204 {dimension_numbers = #tpu.dot_dimension_numbers<[1], [0], [0], [1], [0, 0, 1, 1], [], []>} : vector<8x32xf32>, vector<32x32xf32>, vector<8x32xf32> -> vector<8x32xf32>
    %613 = arith.addf %611, %612 : vector<8x32xf32>
    %614 = arith.negf %613 : vector<8x32xf32>
    %615 = math.exp %614 : vector<8x32xf32>
    %cst_205 = arith.constant 1.000000e+00 : f32
    %616 = vector.broadcast %cst_205 : f32 to vector<8x32xf32>
    %617 = arith.addf %616, %615 : vector<8x32xf32>
    %618 = arith.divf %616, %617 : vector<8x32xf32>
    %619 = arith.mulf %604, %582 : vector<8x32xf32>
    %620 = arith.mulf %595, %609 : vector<8x32xf32>
    %621 = arith.addf %619, %620 : vector<8x32xf32>
    %622 = math.tanh %621 : vector<8x32xf32>
    %623 = arith.mulf %618, %622 : vector<8x32xf32>
    %c15_i32 = arith.constant 15 : i32
    %c8_i32_206 = arith.constant 8 : i32
    %624 = arith.muli %c15_i32, %c8_i32_206 : i32
    %625 = tpu.assume_multiple %624, 8 : i32
    %626 = arith.index_cast %625 : i32 to index
    %c0_207 = arith.constant 0 : index
    %627 = vector.load %arg5[%626, %c0_207] : memref<128x32xf32, #tpu.memory_space<vmem>>, vector<8x32xf32>
    %cst_208 = arith.constant dense<0.000000e+00> : vector<8x32xf32>
    %628 = tpu.matmul %623, %33, %cst_208 {dimension_numbers = #tpu.dot_dimension_numbers<[1], [0], [0], [1], [0, 0, 1, 1], [], []>} : vector<8x32xf32>, vector<32x32xf32>, vector<8x32xf32> -> vector<8x32xf32>
    %629 = arith.addf %627, %628 : vector<8x32xf32>
    %630 = arith.negf %629 : vector<8x32xf32>
    %631 = math.exp %630 : vector<8x32xf32>
    %cst_209 = arith.constant 1.000000e+00 : f32
    %632 = vector.broadcast %cst_209 : f32 to vector<8x32xf32>
    %633 = arith.addf %632, %631 : vector<8x32xf32>
    %634 = arith.divf %632, %633 : vector<8x32xf32>
    %635 = arith.index_cast %625 : i32 to index
    %c0_210 = arith.constant 0 : index
    %636 = vector.load %arg6[%635, %c0_210] : memref<128x32xf32, #tpu.memory_space<vmem>>, vector<8x32xf32>
    %cst_211 = arith.constant dense<0.000000e+00> : vector<8x32xf32>
    %637 = tpu.matmul %623, %34, %cst_211 {dimension_numbers = #tpu.dot_dimension_numbers<[1], [0], [0], [1], [0, 0, 1, 1], [], []>} : vector<8x32xf32>, vector<32x32xf32>, vector<8x32xf32> -> vector<8x32xf32>
    %638 = arith.addf %636, %637 : vector<8x32xf32>
    %639 = arith.negf %638 : vector<8x32xf32>
    %640 = math.exp %639 : vector<8x32xf32>
    %cst_212 = arith.constant 1.000000e+00 : f32
    %641 = vector.broadcast %cst_212 : f32 to vector<8x32xf32>
    %642 = arith.addf %641, %640 : vector<8x32xf32>
    %643 = arith.divf %641, %642 : vector<8x32xf32>
    %644 = arith.index_cast %625 : i32 to index
    %c0_213 = arith.constant 0 : index
    %645 = vector.load %arg7[%644, %c0_213] : memref<128x32xf32, #tpu.memory_space<vmem>>, vector<8x32xf32>
    %cst_214 = arith.constant dense<0.000000e+00> : vector<8x32xf32>
    %646 = tpu.matmul %623, %35, %cst_214 {dimension_numbers = #tpu.dot_dimension_numbers<[1], [0], [0], [1], [0, 0, 1, 1], [], []>} : vector<8x32xf32>, vector<32x32xf32>, vector<8x32xf32> -> vector<8x32xf32>
    %647 = arith.addf %645, %646 : vector<8x32xf32>
    %648 = math.tanh %647 : vector<8x32xf32>
    %649 = arith.index_cast %625 : i32 to index
    %c0_215 = arith.constant 0 : index
    %650 = vector.load %arg8[%649, %c0_215] : memref<128x32xf32, #tpu.memory_space<vmem>>, vector<8x32xf32>
    %cst_216 = arith.constant dense<0.000000e+00> : vector<8x32xf32>
    %651 = tpu.matmul %623, %36, %cst_216 {dimension_numbers = #tpu.dot_dimension_numbers<[1], [0], [0], [1], [0, 0, 1, 1], [], []>} : vector<8x32xf32>, vector<32x32xf32>, vector<8x32xf32> -> vector<8x32xf32>
    %652 = arith.addf %650, %651 : vector<8x32xf32>
    %653 = arith.negf %652 : vector<8x32xf32>
    %654 = math.exp %653 : vector<8x32xf32>
    %cst_217 = arith.constant 1.000000e+00 : f32
    %655 = vector.broadcast %cst_217 : f32 to vector<8x32xf32>
    %656 = arith.addf %655, %654 : vector<8x32xf32>
    %657 = arith.divf %655, %656 : vector<8x32xf32>
    %658 = arith.mulf %643, %621 : vector<8x32xf32>
    %659 = arith.mulf %634, %648 : vector<8x32xf32>
    %660 = arith.addf %658, %659 : vector<8x32xf32>
    %661 = math.tanh %660 : vector<8x32xf32>
    %662 = arith.mulf %657, %661 : vector<8x32xf32>
    %c16_i32 = arith.constant 16 : i32
    %c0_218 = arith.constant 0 : index
    %c0_219 = arith.constant 0 : index
    %663 = vector.load %arg3[%c0_218, %c0_219] : memref<33x8xf32, #tpu.memory_space<vmem>>, vector<32x8xf32>
    %c32 = arith.constant 32 : index
    %c0_220 = arith.constant 0 : index
    %664 = vector.load %arg3[%c32, %c0_220] : memref<33x8xf32, #tpu.memory_space<vmem>>, vector<1x8xf32>
    %cst_221 = arith.constant dense<0.000000e+00> : vector<8x8xf32>
    %665 = tpu.matmul %662, %663, %cst_221 {dimension_numbers = #tpu.dot_dimension_numbers<[1], [0], [0], [1], [0, 0, 1, 1], [], []>} : vector<8x32xf32>, vector<32x8xf32>, vector<8x8xf32> -> vector<8x8xf32>
    %666 = vector.broadcast %664 : vector<1x8xf32> to vector<8x8xf32>
    %667 = arith.addf %665, %666 : vector<8x8xf32>
    %c0_222 = arith.constant 0 : index
    %c0_223 = arith.constant 0 : index
    %668 = vector.load %arg4[%c0_222, %c0_223] : memref<8x8xf32, #tpu.memory_space<vmem>>, vector<8x8xf32>
    tpu.vector_store %arg4[%c0_222, %c0_223], %667 {strides = array<i32>} : memref<8x8xf32, #tpu.memory_space<vmem>>, vector<8x8xf32>,
    return
  }
}

</mosaic_0001>

<llo_original>
// kernel: cnn_lstm_forward.1
$region0: #{cnn_lstm_forward.1}
  #allocation0 [shape = 'u32[]', space=smem, size = 0x4, offset = 0x4, fixed_abs, tag = 'smem constant byte address 0x4 - core index']
  #allocation1 [shape = 'u32[72,128]{1,0:T(1,128)}', space=vmem, size = 0x9000, scoped, tag = 'internal scratch']
  #allocation2 [shape = 'f32[128,32]{1,0:T(8,128)}', space=vmem, size = 0x10000, scoped, tag = 'scratch operand']
  #allocation3 [shape = 'f32[128,32]{1,0:T(8,128)}', space=vmem, size = 0x10000, scoped, tag = 'scratch operand']
  #allocation4 [shape = 'f32[128,32]{1,0:T(8,128)}', space=vmem, size = 0x10000, scoped, tag = 'scratch operand']
  #allocation5 [shape = 'f32[128,32]{1,0:T(8,128)}', space=vmem, size = 0x10000, scoped, tag = 'scratch operand']
  %s0 = inlined_call_operand.vmem [shape: f32[128,4], index: 0, kind: input, shape index: {}]
  %s1 = inlined_call_operand.vmem [shape: f32[25,16], index: 1, kind: input, shape index: {}]
  %s2 = inlined_call_operand.vmem [shape: f32[49,128], index: 2, kind: input, shape index: {}]
  %s3 = inlined_call_operand.vmem [shape: f32[33,8], index: 3, kind: input, shape index: {}]
  %s4 = inlined_call_operand.vmem [shape: f32[8,8], index: 4, kind: output, shape index: {}]
  %s5 = sld [smem:[#allocation0]]
  $region26: #{cnn_lstm_forward.1} parent=0
    _
  %s7 = ssub.s32 1, %s5
  %s8 = scalar_select 0, %s7, %s5
  // Predicated region
  $region2: #{cnn_lstm_forward.1} parent=0 // pred_check
    _
  $region3: #{cnn_lstm_forward.1} parent=0 // pred_check_branch
    %10 = sbr.rel (0) target = $region5
  $region4: #{cnn_lstm_forward.1} parent=0 // pred_region
    _
  $region5: #{cnn_lstm_forward.1} parent=0 // pred_fallthru
    _
  // Predicated region
  $region6: #{cnn_lstm_forward.1} parent=0 // pred_check
    _
  $region7: #{cnn_lstm_forward.1} parent=0 // pred_check_branch
    %12 = sbr.rel (0) target = $region9
  $region8: #{cnn_lstm_forward.1} parent=0 // pred_region
    _
  $region9: #{cnn_lstm_forward.1} parent=0 // pred_fallthru
    _
  // Predicated region
  $region10: #{cnn_lstm_forward.1} parent=0 // pred_check
    _
  $region11: #{cnn_lstm_forward.1} parent=0 // pred_check_branch
    %14 = sbr.rel (0) target = $region13
  $region12: #{cnn_lstm_forward.1} parent=0 // pred_region
    _
  $region13: #{cnn_lstm_forward.1} parent=0 // pred_fallthru
    _
  // Predicated region
  $region14: #{cnn_lstm_forward.1} parent=0 // pred_check
    _
  $region15: #{cnn_lstm_forward.1} parent=0 // pred_check_branch
    %16 = sbr.rel (0) target = $region17
  $region16: #{cnn_lstm_forward.1} parent=0 // pred_region
    _
  $region17: #{cnn_lstm_forward.1} parent=0 // pred_fallthru
    _
  %v17 = vld [vmem:[%s0] sm:$0xff]
  %v18 = vld [vmem:[%s0 + $0x8] sm:$0xff]
  %v19 = vld [vmem:[%s0 + $0x10] sm:$0xff]
  %v20 = vld [vmem:[%s0 + $0x18] sm:$0xff]
  %v21 = vld [vmem:[%s0 + $0x20] sm:$0xff]
  %v22 = vld [vmem:[%s0 + $0x28] sm:$0xff]
  %v23 = vld [vmem:[%s0 + $0x30] sm:$0xff]
  %v24 = vld [vmem:[%s0 + $0x38] sm:$0xff]
  %v25 = vld [vmem:[%s0 + $0x40] sm:$0xff]
  %v26 = vld [vmem:[%s0 + $0x48] sm:$0xff]
  %v27 = vld [vmem:[%s0 + $0x50] sm:$0xff]
  %v28 = vld [vmem:[%s0 + $0x58] sm:$0xff]
  %v29 = vld [vmem:[%s0 + $0x60] sm:$0xff]
  %v30 = vld [vmem:[%s0 + $0x68] sm:$0xff]
  %v31 = vld [vmem:[%s0 + $0x70] sm:$0xff]
  %v32 = vld [vmem:[%s0 + $0x78] sm:$0xff]
  %v33 = vld [vmem:[%s1] sm:$0xf]
  %v34 = vld [vmem:[%s1 + $0x8] sm:$0xf]
  %v35 = vld [vmem:[%s1 + $0x10] sm:$0xf]
  %v36 = vld [vmem:[%s1 + $0x18] sm:$0x1]
  %vm37 = vcmask 31744
  %v39 = vsel %vm37, %v17, 0
  %v42 = vsel %vm37, %v18, 0
  %v45 = vsel %vm37, %v19, 0
  %v48 = vsel %vm37, %v20, 0
  %v51 = vsel %vm37, %v21, 0
  %v54 = vsel %vm37, %v22, 0
  %v57 = vsel %vm37, %v23, 0
  %v60 = vsel %vm37, %v24, 0
  %v63 = vsel %vm37, %v25, 0
  %v66 = vsel %vm37, %v26, 0
  %v69 = vsel %vm37, %v27, 0
  %v72 = vsel %vm37, %v28, 0
  %v75 = vsel %vm37, %v29, 0
  %v78 = vsel %vm37, %v30, 0
  %v81 = vsel %vm37, %v31, 0
  %v84 = vsel %vm37, %v32, 0
  %vm86 = vcmask 1043456
  %v88 = vsel %vm86, %v34, 0
  %90 = vmatpush.msra.mxu0 0.0
  %91 = vmatpush.msra.mxu0 0.0
  %92 = vmatpush.msra.mxu0 0.0
  %93 = vmatpush.msra.mxu0 0.0
  %94 = vmatpush.msra.mxu0 0.0
  %95 = vmatpush.msra.mxu0 0.0
  %96 = vmatpush.msra.mxu0 0.0
  %97 = vmatpush.msra.mxu0 0.0
  %98 = vmatpush.msra.mxu0 0.0
  %99 = vmatpush.msra.mxu0 0.0
  %100 = vmatpush.msra.mxu0 0.0
  %101 = vmatpush.msra.mxu0 0.0
  %102 = vmatpush.msra.mxu0 0.0
  %103 = vmatpush.msra.mxu0 0.0
  %104 = vmatpush.msra.mxu0 0.0
  %105 = vmatpush.msra.mxu0 %v88
  %106 = vmatmul.f32.gmra.mxu0 %v39
  %v107 = vpop.f32.mrf.mxu0
  %v108 = vadd.f32 0.0, %v107
  %109 = vmatmul.f32.gmra.mxu0 %v42
  %v110 = vpop.f32.mrf.mxu0
  %v111 = vadd.f32 0.0, %v110
  %112 = vmatmul.f32.gmra.mxu0 %v45
  %v113 = vpop.f32.mrf.mxu0
  %v114 = vadd.f32 0.0, %v113
  %115 = vmatmul.f32.gmra.mxu0 %v48
  %v116 = vpop.f32.mrf.mxu0
  %v117 = vadd.f32 0.0, %v116
  %118 = vmatmul.f32.gmra.mxu0 %v51
  %v119 = vpop.f32.mrf.mxu0
  %v120 = vadd.f32 0.0, %v119
  %121 = vmatmul.f32.gmra.mxu0 %v54
  %v122 = vpop.f32.mrf.mxu0
  %v123 = vadd.f32 0.0, %v122
  %124 = vmatmul.f32.gmra.mxu0 %v57
  %v125 = vpop.f32.mrf.mxu0
  %v126 = vadd.f32 0.0, %v125
  %127 = vmatmul.f32.gmra.mxu0 %v60
  %v128 = vpop.f32.mrf.mxu0
  %v129 = vadd.f32 0.0, %v128
  %130 = vmatmul.f32.gmra.mxu0 %v63
  %v131 = vpop.f32.mrf.mxu0
  %v132 = vadd.f32 0.0, %v131
  %133 = vmatmul.f32.gmra.mxu0 %v66
  %v134 = vpop.f32.mrf.mxu0
  %v135 = vadd.f32 0.0, %v134
  %136 = vmatmul.f32.gmra.mxu0 %v69
  %v137 = vpop.f32.mrf.mxu0
  %v138 = vadd.f32 0.0, %v137
  %139 = vmatmul.f32.gmra.mxu0 %v72
  %v140 = vpop.f32.mrf.mxu0
  %v141 = vadd.f32 0.0, %v140
  %142 = vmatmul.f32.gmra.mxu0 %v75
  %v143 = vpop.f32.mrf.mxu0
  %v144 = vadd.f32 0.0, %v143
  %145 = vmatmul.f32.gmra.mxu0 %v78
  %v146 = vpop.f32.mrf.mxu0
  %v147 = vadd.f32 0.0, %v146
  %148 = vmatmul.f32.gmra.mxu0 %v81
  %v149 = vpop.f32.mrf.mxu0
  %v150 = vadd.f32 0.0, %v149
  %151 = vmatmul.f32.gmra.mxu0 %v84
  %v152 = vpop.f32.mrf.mxu0
  %v153 = vadd.f32 0.0, %v152
  %154 = vdwg.mxu0
  %v156 = vsel %vm37, 0.0, 0
  %v159 = vsel %vm86, %v33, 0
  %161 = vmatpush.msra.mxu0 0.0
  %162 = vmatpush.msra.mxu0 0.0
  %163 = vmatpush.msra.mxu0 0.0
  %164 = vmatpush.msra.mxu0 0.0
  %165 = vmatpush.msra.mxu0 0.0
  %166 = vmatpush.msra.mxu0 0.0
  %167 = vmatpush.msra.mxu0 0.0
  %168 = vmatpush.msra.mxu0 0.0
  %169 = vmatpush.msra.mxu0 0.0
  %170 = vmatpush.msra.mxu0 0.0
  %171 = vmatpush.msra.mxu0 0.0
  %172 = vmatpush.msra.mxu0 0.0
  %173 = vmatpush.msra.mxu0 0.0
  %174 = vmatpush.msra.mxu0 0.0
  %175 = vmatpush.msra.mxu0 0.0
  %176 = vmatpush.msra.mxu0 %v159
  %177 = vmatmul.f32.gmra.mxu0 %v156
  %v178 = vpop.f32.mrf.mxu0
  %v179 = vadd.f32 %v108, %v178
  %180 = vmatmul.f32.gmra.mxu0 %v39
  %v181 = vpop.f32.mrf.mxu0
  %v182 = vadd.f32 %v111, %v181
  %183 = vmatmul.f32.gmra.mxu0 %v42
  %v184 = vpop.f32.mrf.mxu0
  %v185 = vadd.f32 %v114, %v184
  %186 = vmatmul.f32.gmra.mxu0 %v45
  %v187 = vpop.f32.mrf.mxu0
  %v188 = vadd.f32 %v117, %v187
  %189 = vmatmul.f32.gmra.mxu0 %v48
  %v190 = vpop.f32.mrf.mxu0
  %v191 = vadd.f32 %v120, %v190
  %192 = vmatmul.f32.gmra.mxu0 %v51
  %v193 = vpop.f32.mrf.mxu0
  %v194 = vadd.f32 %v123, %v193
  %195 = vmatmul.f32.gmra.mxu0 %v54
  %v196 = vpop.f32.mrf.mxu0
  %v197 = vadd.f32 %v126, %v196
  %198 = vmatmul.f32.gmra.mxu0 %v57
  %v199 = vpop.f32.mrf.mxu0
  %v200 = vadd.f32 %v129, %v199
  %201 = vmatmul.f32.gmra.mxu0 %v60
  %v202 = vpop.f32.mrf.mxu0
  %v203 = vadd.f32 %v132, %v202
  %204 = vmatmul.f32.gmra.mxu0 %v63
  %v205 = vpop.f32.mrf.mxu0
  %v206 = vadd.f32 %v135, %v205
  %207 = vmatmul.f32.gmra.mxu0 %v66
  %v208 = vpop.f32.mrf.mxu0
  %v209 = vadd.f32 %v138, %v208
  %210 = vmatmul.f32.gmra.mxu0 %v69
  %v211 = vpop.f32.mrf.mxu0
  %v212 = vadd.f32 %v141, %v211
  %213 = vmatmul.f32.gmra.mxu0 %v72
  %v214 = vpop.f32.mrf.mxu0
  %v215 = vadd.f32 %v144, %v214
  %216 = vmatmul.f32.gmra.mxu0 %v75
  %v217 = vpop.f32.mrf.mxu0
  %v218 = vadd.f32 %v147, %v217
  %219 = vmatmul.f32.gmra.mxu0 %v78
  %v220 = vpop.f32.mrf.mxu0
  %v221 = vadd.f32 %v150, %v220
  %222 = vmatmul.f32.gmra.mxu0 %v81
  %v223 = vpop.f32.mrf.mxu0
  %v224 = vadd.f32 %v153, %v223
  %225 = vdwg.mxu0
  %v227 = vsel %vm86, %v35, 0
  %229 = vmatpush.msra.mxu0 0.0
  %230 = vmatpush.msra.mxu0 0.0
  %231 = vmatpush.msra.mxu0 0.0
  %232 = vmatpush.msra.mxu0 0.0
  %233 = vmatpush.msra.mxu0 0.0
  %234 = vmatpush.msra.mxu0 0.0
  %235 = vmatpush.msra.mxu0 0.0
  %236 = vmatpush.msra.mxu0 0.0
  %237 = vmatpush.msra.mxu0 0.0
  %238 = vmatpush.msra.mxu0 0.0
  %239 = vmatpush.msra.mxu0 0.0
  %240 = vmatpush.msra.mxu0 0.0
  %241 = vmatpush.msra.mxu0 0.0
  %242 = vmatpush.msra.mxu0 0.0
  %243 = vmatpush.msra.mxu0 0.0
  %244 = vmatpush.msra.mxu0 %v227
  %245 = vmatmul.f32.gmra.mxu0 %v42
  %v246 = vpop.f32.mrf.mxu0
  %v247 = vadd.f32 0.0, %v246
  %248 = vmatmul.f32.gmra.mxu0 %v45
  %v249 = vpop.f32.mrf.mxu0
  %v250 = vadd.f32 0.0, %v249
  %251 = vmatmul.f32.gmra.mxu0 %v48
  %v252 = vpop.f32.mrf.mxu0
  %v253 = vadd.f32 0.0, %v252
  %254 = vmatmul.f32.gmra.mxu0 %v51
  %v255 = vpop.f32.mrf.mxu0
  %v256 = vadd.f32 0.0, %v255
  %257 = vmatmul.f32.gmra.mxu0 %v54
  %v258 = vpop.f32.mrf.mxu0
  %v259 = vadd.f32 0.0, %v258
  %260 = vmatmul.f32.gmra.mxu0 %v57
  %v261 = vpop.f32.mrf.mxu0
  %v262 = vadd.f32 0.0, %v261
  %263 = vmatmul.f32.gmra.mxu0 %v60
  %v264 = vpop.f32.mrf.mxu0
  %v265 = vadd.f32 0.0, %v264
  %266 = vmatmul.f32.gmra.mxu0 %v63
  %v267 = vpop.f32.mrf.mxu0
  %v268 = vadd.f32 0.0, %v267
  %269 = vmatmul.f32.gmra.mxu0 %v66
  %v270 = vpop.f32.mrf.mxu0
  %v271 = vadd.f32 0.0, %v270
  %272 = vmatmul.f32.gmra.mxu0 %v69
  %v273 = vpop.f32.mrf.mxu0
  %v274 = vadd.f32 0.0, %v273
  %275 = vmatmul.f32.gmra.mxu0 %v72
  %v276 = vpop.f32.mrf.mxu0
  %v277 = vadd.f32 0.0, %v276
  %278 = vmatmul.f32.gmra.mxu0 %v75
  %v279 = vpop.f32.mrf.mxu0
  %v280 = vadd.f32 0.0, %v279
  %281 = vmatmul.f32.gmra.mxu0 %v78
  %v282 = vpop.f32.mrf.mxu0
  %v283 = vadd.f32 0.0, %v282
  %284 = vmatmul.f32.gmra.mxu0 %v81
  %v285 = vpop.f32.mrf.mxu0
  %v286 = vadd.f32 0.0, %v285
  %287 = vmatmul.f32.gmra.mxu0 %v84
  %v288 = vpop.f32.mrf.mxu0
  %v289 = vadd.f32 0.0, %v288
  %290 = vmatmul.f32.gmra.mxu0 %v156
  %v291 = vpop.f32.mrf.mxu0
  %v292 = vadd.f32 0.0, %v291
  %293 = vdwg.mxu0
  %v294 = vadd.f32 %v179, %v247
  %v295 = vadd.f32 %v182, %v250
  %v296 = vadd.f32 %v185, %v253
  %v297 = vadd.f32 %v188, %v256
  %v298 = vadd.f32 %v191, %v259
  %v299 = vadd.f32 %v194, %v262
  %v300 = vadd.f32 %v197, %v265
  %v301 = vadd.f32 %v200, %v268
  %v302 = vadd.f32 %v203, %v271
  %v303 = vadd.f32 %v206, %v274
  %v304 = vadd.f32 %v209, %v277
  %v305 = vadd.f32 %v212, %v280
  %v306 = vadd.f32 %v215, %v283
  %v307 = vadd.f32 %v218, %v286
  %v308 = vadd.f32 %v221, %v289
  %v309 = vadd.f32 %v224, %v292
  %v310 = vperm.slane %v36, 0
  %v311 = vadd.f32 %v294, %v310
  %v312 = vadd.f32 %v295, %v310
  %v313 = vadd.f32 %v296, %v310
  %v314 = vadd.f32 %v297, %v310
  %v315 = vadd.f32 %v298, %v310
  %v316 = vadd.f32 %v299, %v310
  %v317 = vadd.f32 %v300, %v310
  %v318 = vadd.f32 %v301, %v310
  %v319 = vadd.f32 %v302, %v310
  %v320 = vadd.f32 %v303, %v310
  %v321 = vadd.f32 %v304, %v310
  %v322 = vadd.f32 %v305, %v310
  %v323 = vadd.f32 %v306, %v310
  %v324 = vadd.f32 %v307, %v310
  %v325 = vadd.f32 %v308, %v310
  %v326 = vadd.f32 %v309, %v310
  %v327 = vmax.f32 %v311, 0.0
  %v328 = vmax.f32 %v312, 0.0
  %v329 = vmax.f32 %v313, 0.0
  %v330 = vmax.f32 %v314, 0.0
  %v331 = vmax.f32 %v315, 0.0
  %v332 = vmax.f32 %v316, 0.0
  %v333 = vmax.f32 %v317, 0.0
  %v334 = vmax.f32 %v318, 0.0
  %v335 = vmax.f32 %v319, 0.0
  %v336 = vmax.f32 %v320, 0.0
  %v337 = vmax.f32 %v321, 0.0
  %v338 = vmax.f32 %v322, 0.0
  %v339 = vmax.f32 %v323, 0.0
  %v340 = vmax.f32 %v324, 0.0
  %v341 = vmax.f32 %v325, 0.0
  %v342 = vmax.f32 %v326, 0.0
  %v343 = vld [vmem:[%s2] sm:$0xff]
  %v344 = vld [vmem:[%s2 + $0x8] sm:$0xff]
  %v345 = vld [vmem:[%s2 + $0x10] sm:$0xff]
  %v346 = vld [vmem:[%s2 + $0x18] sm:$0xff]
  %v347 = vld [vmem:[%s2 + $0x20] sm:$0xff]
  %v348 = vld [vmem:[%s2 + $0x28] sm:$0xff]
  %v349 = vld [vmem:[%s2 + $0x30] sm:$0x1]
  %v350 = vperm.slane %v349, 0
  %vm351 = vcmask 130048
  %v353 = vsel %vm351, %v327, 0
  %v356 = vsel %vm351, %v328, 0
  %v359 = vsel %vm351, %v329, 0
  %v362 = vsel %vm351, %v330, 0
  %v365 = vsel %vm351, %v331, 0
  %v368 = vsel %vm351, %v332, 0
  %v371 = vsel %vm351, %v333, 0
  %v374 = vsel %vm351, %v334, 0
  %v377 = vsel %vm351, %v335, 0
  %v380 = vsel %vm351, %v336, 0
  %v383 = vsel %vm351, %v337, 0
  %v386 = vsel %vm351, %v338, 0
  %v389 = vsel %vm351, %v339, 0
  %v392 = vsel %vm351, %v340, 0
  %v395 = vsel %vm351, %v341, 0
  %v398 = vsel %vm351, %v342, 0
  %400 = vmatpush.msra.mxu0 0.0
  %401 = vmatpush.msra.mxu0 0.0
  %402 = vmatpush.msra.mxu0 0.0
  %403 = vmatpush.msra.mxu0 0.0
  %404 = vmatpush.msra.mxu0 0.0
  %405 = vmatpush.msra.mxu0 0.0
  %406 = vmatpush.msra.mxu0 0.0
  %407 = vmatpush.msra.mxu0 0.0
  %408 = vmatpush.msra.mxu0 0.0
  %409 = vmatpush.msra.mxu0 0.0
  %410 = vmatpush.msra.mxu0 0.0
  %411 = vmatpush.msra.mxu0 0.0
  %412 = vmatpush.msra.mxu0 0.0
  %413 = vmatpush.msra.mxu0 0.0
  %414 = vmatpush.msra.mxu0 %v344
  %415 = vmatpush.msra.mxu0 %v343
  %416 = vmatmul.f32.gmra.mxu0 %v353
  %v417 = vpop.f32.mrf.mxu0
  %v418 = vadd.f32 %v350, %v417
  %419 = vmatmul.f32.gmra.mxu0 %v356
  %v420 = vpop.f32.mrf.mxu0
  %v421 = vadd.f32 %v350, %v420
  %422 = vmatmul.f32.gmra.mxu0 %v359
  %v423 = vpop.f32.mrf.mxu0
  %v424 = vadd.f32 %v350, %v423
  %425 = vmatmul.f32.gmra.mxu0 %v362
  %v426 = vpop.f32.mrf.mxu0
  %v427 = vadd.f32 %v350, %v426
  %428 = vmatmul.f32.gmra.mxu0 %v365
  %v429 = vpop.f32.mrf.mxu0
  %v430 = vadd.f32 %v350, %v429
  %431 = vmatmul.f32.gmra.mxu0 %v368
  %v432 = vpop.f32.mrf.mxu0
  %v433 = vadd.f32 %v350, %v432
  %434 = vmatmul.f32.gmra.mxu0 %v371
  %v435 = vpop.f32.mrf.mxu0
  %v436 = vadd.f32 %v350, %v435
  %437 = vmatmul.f32.gmra.mxu0 %v374
  %v438 = vpop.f32.mrf.mxu0
  %v439 = vadd.f32 %v350, %v438
  %440 = vmatmul.f32.gmra.mxu0 %v377
  %v441 = vpop.f32.mrf.mxu0
  %v442 = vadd.f32 %v350, %v441
  %443 = vmatmul.f32.gmra.mxu0 %v380
  %v444 = vpop.f32.mrf.mxu0
  %v445 = vadd.f32 %v350, %v444
  %446 = vmatmul.f32.gmra.mxu0 %v383
  %v447 = vpop.f32.mrf.mxu0
  %v448 = vadd.f32 %v350, %v447
  %449 = vmatmul.f32.gmra.mxu0 %v386
  %v450 = vpop.f32.mrf.mxu0
  %v451 = vadd.f32 %v350, %v450
  %452 = vmatmul.f32.gmra.mxu0 %v389
  %v453 = vpop.f32.mrf.mxu0
  %v454 = vadd.f32 %v350, %v453
  %455 = vmatmul.f32.gmra.mxu0 %v392
  %v456 = vpop.f32.mrf.mxu0
  %v457 = vadd.f32 %v350, %v456
  %458 = vmatmul.f32.gmra.mxu0 %v395
  %v459 = vpop.f32.mrf.mxu0
  %v460 = vadd.f32 %v350, %v459
  %461 = vmatmul.f32.gmra.mxu0 %v398
  %v462 = vpop.f32.mrf.mxu0
  %v463 = vadd.f32 %v350, %v462
  %464 = vdwg.mxu0
  %vm465 = vcmask 261120
  %466 = vst.msk [vmem:[#allocation2] sm:$0xff] %vm465, %v418
  %467 = vst.msk [vmem:[#allocation2 + $0x8] sm:$0xff] %vm465, %v421
  %468 = vst.msk [vmem:[#allocation2 + $0x10] sm:$0xff] %vm465, %v424
  %469 = vst.msk [vmem:[#allocation2 + $0x18] sm:$0xff] %vm465, %v427
  %470 = vst.msk [vmem:[#allocation2 + $0x20] sm:$0xff] %vm465, %v430
  %471 = vst.msk [vmem:[#allocation2 + $0x28] sm:$0xff] %vm465, %v433
  %472 = vst.msk [vmem:[#allocation2 + $0x30] sm:$0xff] %vm465, %v436
  %473 = vst.msk [vmem:[#allocation2 + $0x38] sm:$0xff] %vm465, %v439
  %474 = vst.msk [vmem:[#allocation2 + $0x40] sm:$0xff] %vm465, %v442
  %475 = vst.msk [vmem:[#allocation2 + $0x48] sm:$0xff] %vm465, %v445
  %476 = vst.msk [vmem:[#allocation2 + $0x50] sm:$0xff] %vm465, %v448
  %477 = vst.msk [vmem:[#allocation2 + $0x58] sm:$0xff] %vm465, %v451
  %478 = vst.msk [vmem:[#allocation2 + $0x60] sm:$0xff] %vm465, %v454
  %479 = vst.msk [vmem:[#allocation2 + $0x68] sm:$0xff] %vm465, %v457
  %480 = vst.msk [vmem:[#allocation2 + $0x70] sm:$0xff] %vm465, %v460
  %481 = vst.msk [vmem:[#allocation2 + $0x78] sm:$0xff] %vm465, %v463
  %498 = vrot.lane.b32.xlu0 %v418, 96
  %v499 = vpop.permute.xlu0 %498
  %500 = vrot.lane.b32.xlu0 %v421, 96
  %v501 = vpop.permute.xlu0 %500
  %502 = vrot.lane.b32.xlu0 %v424, 96
  %v503 = vpop.permute.xlu0 %502
  %504 = vrot.lane.b32.xlu0 %v427, 96
  %v505 = vpop.permute.xlu0 %504
  %506 = vrot.lane.b32.xlu0 %v430, 96
  %v507 = vpop.permute.xlu0 %506
  %508 = vrot.lane.b32.xlu0 %v433, 96
  %v509 = vpop.permute.xlu0 %508
  %510 = vrot.lane.b32.xlu0 %v436, 96
  %v511 = vpop.permute.xlu0 %510
  %512 = vrot.lane.b32.xlu0 %v439, 96
  %v513 = vpop.permute.xlu0 %512
  %514 = vrot.lane.b32.xlu0 %v442, 96
  %v515 = vpop.permute.xlu0 %514
  %516 = vrot.lane.b32.xlu0 %v445, 96
  %v517 = vpop.permute.xlu0 %516
  %518 = vrot.lane.b32.xlu0 %v448, 96
  %v519 = vpop.permute.xlu0 %518
  %520 = vrot.lane.b32.xlu0 %v451, 96
  %v521 = vpop.permute.xlu0 %520
  %522 = vrot.lane.b32.xlu0 %v454, 96
  %v523 = vpop.permute.xlu0 %522
  %524 = vrot.lane.b32.xlu0 %v457, 96
  %v525 = vpop.permute.xlu0 %524
  %526 = vrot.lane.b32.xlu0 %v460, 96
  %v527 = vpop.permute.xlu0 %526
  %528 = vrot.lane.b32.xlu0 %v463, 96
  %v529 = vpop.permute.xlu0 %528
  %546 = vst.msk [vmem:[#allocation3] sm:$0xff] %vm465, %v499
  %547 = vst.msk [vmem:[#allocation3 + $0x8] sm:$0xff] %vm465, %v501
  %548 = vst.msk [vmem:[#allocation3 + $0x10] sm:$0xff] %vm465, %v503
  %549 = vst.msk [vmem:[#allocation3 + $0x18] sm:$0xff] %vm465, %v505
  %550 = vst.msk [vmem:[#allocation3 + $0x20] sm:$0xff] %vm465, %v507
  %551 = vst.msk [vmem:[#allocation3 + $0x28] sm:$0xff] %vm465, %v509
  %552 = vst.msk [vmem:[#allocation3 + $0x30] sm:$0xff] %vm465, %v511
  %553 = vst.msk [vmem:[#allocation3 + $0x38] sm:$0xff] %vm465, %v513
  %554 = vst.msk [vmem:[#allocation3 + $0x40] sm:$0xff] %vm465, %v515
  %555 = vst.msk [vmem:[#allocation3 + $0x48] sm:$0xff] %vm465, %v517
  %556 = vst.msk [vmem:[#allocation3 + $0x50] sm:$0xff] %vm465, %v519
  %557 = vst.msk [vmem:[#allocation3 + $0x58] sm:$0xff] %vm465, %v521
  %558 = vst.msk [vmem:[#allocation3 + $0x60] sm:$0xff] %vm465, %v523
  %559 = vst.msk [vmem:[#allocation3 + $0x68] sm:$0xff] %vm465, %v525
  %560 = vst.msk [vmem:[#allocation3 + $0x70] sm:$0xff] %vm465, %v527
  %561 = vst.msk [vmem:[#allocation3 + $0x78] sm:$0xff] %vm465, %v529
  %562 = vrot.lane.b32.xlu0 %v418, 64
  %v563 = vpop.permute.xlu0 %562
  %564 = vrot.lane.b32.xlu0 %v421, 64
  %v565 = vpop.permute.xlu0 %564
  %566 = vrot.lane.b32.xlu0 %v424, 64
  %v567 = vpop.permute.xlu0 %566
  %568 = vrot.lane.b32.xlu0 %v427, 64
  %v569 = vpop.permute.xlu0 %568
  %570 = vrot.lane.b32.xlu0 %v430, 64
  %v571 = vpop.permute.xlu0 %570
  %572 = vrot.lane.b32.xlu0 %v433, 64
  %v573 = vpop.permute.xlu0 %572
  %574 = vrot.lane.b32.xlu0 %v436, 64
  %v575 = vpop.permute.xlu0 %574
  %576 = vrot.lane.b32.xlu0 %v439, 64
  %v577 = vpop.permute.xlu0 %576
  %578 = vrot.lane.b32.xlu0 %v442, 64
  %v579 = vpop.permute.xlu0 %578
  %580 = vrot.lane.b32.xlu0 %v445, 64
  %v581 = vpop.permute.xlu0 %580
  %582 = vrot.lane.b32.xlu0 %v448, 64
  %v583 = vpop.permute.xlu0 %582
  %584 = vrot.lane.b32.xlu0 %v451, 64
  %v585 = vpop.permute.xlu0 %584
  %586 = vrot.lane.b32.xlu0 %v454, 64
  %v587 = vpop.permute.xlu0 %586
  %588 = vrot.lane.b32.xlu0 %v457, 64
  %v589 = vpop.permute.xlu0 %588
  %590 = vrot.lane.b32.xlu0 %v460, 64
  %v591 = vpop.permute.xlu0 %590
  %592 = vrot.lane.b32.xlu0 %v463, 64
  %v593 = vpop.permute.xlu0 %592
  %610 = vst.msk [vmem:[#allocation4] sm:$0xff] %vm465, %v563
  %611 = vst.msk [vmem:[#allocation4 + $0x8] sm:$0xff] %vm465, %v565
  %612 = vst.msk [vmem:[#allocation4 + $0x10] sm:$0xff] %vm465, %v567
  %613 = vst.msk [vmem:[#allocation4 + $0x18] sm:$0xff] %vm465, %v569
  %614 = vst.msk [vmem:[#allocation4 + $0x20] sm:$0xff] %vm465, %v571
  %615 = vst.msk [vmem:[#allocation4 + $0x28] sm:$0xff] %vm465, %v573
  %616 = vst.msk [vmem:[#allocation4 + $0x30] sm:$0xff] %vm465, %v575
  %617 = vst.msk [vmem:[#allocation4 + $0x38] sm:$0xff] %vm465, %v577
  %618 = vst.msk [vmem:[#allocation4 + $0x40] sm:$0xff] %vm465, %v579
  %619 = vst.msk [vmem:[#allocation4 + $0x48] sm:$0xff] %vm465, %v581
  %620 = vst.msk [vmem:[#allocation4 + $0x50] sm:$0xff] %vm465, %v583
  %621 = vst.msk [vmem:[#allocation4 + $0x58] sm:$0xff] %vm465, %v585
  %622 = vst.msk [vmem:[#allocation4 + $0x60] sm:$0xff] %vm465, %v587
  %623 = vst.msk [vmem:[#allocation4 + $0x68] sm:$0xff] %vm465, %v589
  %624 = vst.msk [vmem:[#allocation4 + $0x70] sm:$0xff] %vm465, %v591
  %625 = vst.msk [vmem:[#allocation4 + $0x78] sm:$0xff] %vm465, %v593
  %626 = vrot.lane.b32.xlu0 %v418, 32
  %v627 = vpop.permute.xlu0 %626
  %628 = vrot.lane.b32.xlu0 %v421, 32
  %v629 = vpop.permute.xlu0 %628
  %630 = vrot.lane.b32.xlu0 %v424, 32
  %v631 = vpop.permute.xlu0 %630
  %632 = vrot.lane.b32.xlu0 %v427, 32
  %v633 = vpop.permute.xlu0 %632
  %634 = vrot.lane.b32.xlu0 %v430, 32
  %v635 = vpop.permute.xlu0 %634
  %636 = vrot.lane.b32.xlu0 %v433, 32
  %v637 = vpop.permute.xlu0 %636
  %638 = vrot.lane.b32.xlu0 %v436, 32
  %v639 = vpop.permute.xlu0 %638
  %640 = vrot.lane.b32.xlu0 %v439, 32
  %v641 = vpop.permute.xlu0 %640
  %642 = vrot.lane.b32.xlu0 %v442, 32
  %v643 = vpop.permute.xlu0 %642
  %644 = vrot.lane.b32.xlu0 %v445, 32
  %v645 = vpop.permute.xlu0 %644
  %646 = vrot.lane.b32.xlu0 %v448, 32
  %v647 = vpop.permute.xlu0 %646
  %648 = vrot.lane.b32.xlu0 %v451, 32
  %v649 = vpop.permute.xlu0 %648
  %650 = vrot.lane.b32.xlu0 %v454, 32
  %v651 = vpop.permute.xlu0 %650
  %652 = vrot.lane.b32.xlu0 %v457, 32
  %v653 = vpop.permute.xlu0 %652
  %654 = vrot.lane.b32.xlu0 %v460, 32
  %v655 = vpop.permute.xlu0 %654
  %656 = vrot.lane.b32.xlu0 %v463, 32
  %v657 = vpop.permute.xlu0 %656
  %674 = vst.msk [vmem:[#allocation5] sm:$0xff] %vm465, %v627
  %675 = vst.msk [vmem:[#allocation5 + $0x8] sm:$0xff] %vm465, %v629
  %676 = vst.msk [vmem:[#allocation5 + $0x10] sm:$0xff] %vm465, %v631
  %677 = vst.msk [vmem:[#allocation5 + $0x18] sm:$0xff] %vm465, %v633
  %678 = vst.msk [vmem:[#allocation5 + $0x20] sm:$0xff] %vm465, %v635
  %679 = vst.msk [vmem:[#allocation5 + $0x28] sm:$0xff] %vm465, %v637
  %680 = vst.msk [vmem:[#allocation5 + $0x30] sm:$0xff] %vm465, %v639
  %681 = vst.msk [vmem:[#allocation5 + $0x38] sm:$0xff] %vm465, %v641
  %682 = vst.msk [vmem:[#allocation5 + $0x40] sm:$0xff] %vm465, %v643
  %683 = vst.msk [vmem:[#allocation5 + $0x48] sm:$0xff] %vm465, %v645
  %684 = vst.msk [vmem:[#allocation5 + $0x50] sm:$0xff] %vm465, %v647
  %685 = vst.msk [vmem:[#allocation5 + $0x58] sm:$0xff] %vm465, %v649
  %686 = vst.msk [vmem:[#allocation5 + $0x60] sm:$0xff] %vm465, %v651
  %687 = vst.msk [vmem:[#allocation5 + $0x68] sm:$0xff] %vm465, %v653
  %688 = vst.msk [vmem:[#allocation5 + $0x70] sm:$0xff] %vm465, %v655
  %689 = vst.msk [vmem:[#allocation5 + $0x78] sm:$0xff] %vm465, %v657
  %v690 = vld [vmem:[#allocation2] sm:$0xff]
  %v691 = vsel %vm465, 0.0, 0
  %693 = vmatpush.msra.mxu0 0.0
  %694 = vmatpush.msra.mxu0 0.0
  %695 = vmatpush.msra.mxu0 0.0
  %696 = vmatpush.msra.mxu0 0.0
  %697 = vmatpush.msra.mxu0 0.0
  %698 = vmatpush.msra.mxu0 0.0
  %699 = vmatpush.msra.mxu0 0.0
  %700 = vmatpush.msra.mxu0 0.0
  %701 = vmatpush.msra.mxu0 0.0
  %702 = vmatpush.msra.mxu0 0.0
  %703 = vmatpush.msra.mxu0 0.0
  %704 = vmatpush.msra.mxu0 0.0
  %705 = vmatpush.msra.mxu0 %v348
  %706 = vmatpush.msra.mxu0 %v347
  %707 = vmatpush.msra.mxu0 %v346
  %708 = vmatpush.msra.mxu0 %v345
  %709 = vmatmul.f32.gmra.mxu0 %v691
  %v710 = vpop.f32.mrf.mxu0
  %v711 = vadd.f32 0.0, %v710
  %712 = vdwg.mxu0
  %v713 = vadd.f32 %v690, %v711
  %v714 = vxor.u32 %v713, 2147483648
  %v715 = vmul.f32 %v714, 1.442695
  %v716 = vpow.pop %v715
  %v717 = vadd.f32 %v716, 1.0
  %v718 = vrcp.pop %v717
  %v719 = vmul.f32 %v717, %v718
  %v720 = vsub.f32 1.0, %v719
  %v721 = vmul.f32 %v718, %v720
  %v722 = vadd.f32 %v718, %v721
  %vm723 = vweird.f32 %v717
  %vm724 = vweird.f32 %v718
  %vm725 = vmor %vm723, %vm724
  %v726 = vsel %vm725, %v718, %v722
  %v727 = vand.u32 2147483647, %v717
  %vm728 = vcmp.eq.f32.partialorder %v727, 8.507059e+37
  %v729 = vand.u32 %v717, 2147483648
  %v730 = vor.u32 1.1754944e-38, %v729
  %v731 = vsel %vm728, %v730, %v726
  %v732 = vmul.f32 1.0, %v731
  %v733 = vld [vmem:[#allocation3] sm:$0xff]
  %738 = vrot.lane.b32.xlu0 %v345, 96
  %v739 = vpop.permute.xlu0 %738
  %740 = vrot.lane.b32.xlu0 %v346, 96
  %v741 = vpop.permute.xlu0 %740
  %742 = vrot.lane.b32.xlu0 %v347, 96
  %v743 = vpop.permute.xlu0 %742
  %744 = vrot.lane.b32.xlu0 %v348, 96
  %v745 = vpop.permute.xlu0 %744
  %750 = vmatpush.msra.mxu0 0.0
  %751 = vmatpush.msra.mxu0 0.0
  %752 = vmatpush.msra.mxu0 0.0
  %753 = vmatpush.msra.mxu0 0.0
  %754 = vmatpush.msra.mxu0 0.0
  %755 = vmatpush.msra.mxu0 0.0
  %756 = vmatpush.msra.mxu0 0.0
  %757 = vmatpush.msra.mxu0 0.0
  %758 = vmatpush.msra.mxu0 0.0
  %759 = vmatpush.msra.mxu0 0.0
  %760 = vmatpush.msra.mxu0 0.0
  %761 = vmatpush.msra.mxu0 0.0
  %762 = vmatpush.msra.mxu0 %v745
  %763 = vmatpush.msra.mxu0 %v743
  %764 = vmatpush.msra.mxu0 %v741
  %765 = vmatpush.msra.mxu0 %v739
  %766 = vmatmul.f32.gmra.mxu0 %v691
  %v767 = vpop.f32.mrf.mxu0
  %v768 = vadd.f32 0.0, %v767
  %769 = vdwg.mxu0
  %v770 = vadd.f32 %v733, %v768
  %v771 = vxor.u32 %v770, 2147483648
  %v772 = vmul.f32 %v771, 1.442695
  %v773 = vpow.pop %v772
  %v774 = vadd.f32 %v773, 1.0
  %v775 = vrcp.pop %v774
  %v776 = vmul.f32 %v774, %v775
  %v777 = vsub.f32 1.0, %v776
  %v778 = vmul.f32 %v775, %v777
  %v779 = vadd.f32 %v775, %v778
  %vm780 = vweird.f32 %v774
  %vm781 = vweird.f32 %v775
  %vm782 = vmor %vm780, %vm781
  %v783 = vsel %vm782, %v775, %v779
  %v784 = vand.u32 2147483647, %v774
  %vm785 = vcmp.eq.f32.partialorder %v784, 8.507059e+37
  %v786 = vand.u32 %v774, 2147483648
  %v787 = vor.u32 1.1754944e-38, %v786
  %v788 = vsel %vm785, %v787, %v783
  %v789 = vmul.f32 1.0, %v788
  %v790 = vld [vmem:[#allocation4] sm:$0xff]
  %791 = vrot.lane.b32.xlu0 %v345, 64
  %v792 = vpop.permute.xlu0 %791
  %793 = vrot.lane.b32.xlu0 %v346, 64
  %v794 = vpop.permute.xlu0 %793
  %795 = vrot.lane.b32.xlu0 %v347, 64
  %v796 = vpop.permute.xlu0 %795
  %797 = vrot.lane.b32.xlu0 %v348, 64
  %v798 = vpop.permute.xlu0 %797
  %803 = vmatpush.msra.mxu0 0.0
  %804 = vmatpush.msra.mxu0 0.0
  %805 = vmatpush.msra.mxu0 0.0
  %806 = vmatpush.msra.mxu0 0.0
  %807 = vmatpush.msra.mxu0 0.0
  %808 = vmatpush.msra.mxu0 0.0
  %809 = vmatpush.msra.mxu0 0.0
  %810 = vmatpush.msra.mxu0 0.0
  %811 = vmatpush.msra.mxu0 0.0
  %812 = vmatpush.msra.mxu0 0.0
  %813 = vmatpush.msra.mxu0 0.0
  %814 = vmatpush.msra.mxu0 0.0
  %815 = vmatpush.msra.mxu0 %v798
  %816 = vmatpush.msra.mxu0 %v796
  %817 = vmatpush.msra.mxu0 %v794
  %818 = vmatpush.msra.mxu0 %v792
  %819 = vmatmul.f32.gmra.mxu0 %v691
  %v820 = vpop.f32.mrf.mxu0
  %v821 = vadd.f32 0.0, %v820
  %822 = vdwg.mxu0
  %v823 = vadd.f32 %v790, %v821
  %v824 = vtanh.pop %v823
  %v825 = vld [vmem:[#allocation5] sm:$0xff]
  %826 = vrot.lane.b32.xlu0 %v345, 32
  %v827 = vpop.permute.xlu0 %826
  %828 = vrot.lane.b32.xlu0 %v346, 32
  %v829 = vpop.permute.xlu0 %828
  %830 = vrot.lane.b32.xlu0 %v347, 32
  %v831 = vpop.permute.xlu0 %830
  %832 = vrot.lane.b32.xlu0 %v348, 32
  %v833 = vpop.permute.xlu0 %832
  %838 = vmatpush.msra.mxu0 0.0
  %839 = vmatpush.msra.mxu0 0.0
  %840 = vmatpush.msra.mxu0 0.0
  %841 = vmatpush.msra.mxu0 0.0
  %842 = vmatpush.msra.mxu0 0.0
  %843 = vmatpush.msra.mxu0 0.0
  %844 = vmatpush.msra.mxu0 0.0
  %845 = vmatpush.msra.mxu0 0.0
  %846 = vmatpush.msra.mxu0 0.0
  %847 = vmatpush.msra.mxu0 0.0
  %848 = vmatpush.msra.mxu0 0.0
  %849 = vmatpush.msra.mxu0 0.0
  %850 = vmatpush.msra.mxu0 %v833
  %851 = vmatpush.msra.mxu0 %v831
  %852 = vmatpush.msra.mxu0 %v829
  %853 = vmatpush.msra.mxu0 %v827
  %854 = vmatmul.f32.gmra.mxu0 %v691
  %v855 = vpop.f32.mrf.mxu0
  %v856 = vadd.f32 0.0, %v855
  %857 = vdwg.mxu0
  %v858 = vadd.f32 %v825, %v856
  %v859 = vxor.u32 %v858, 2147483648
  %v860 = vmul.f32 %v859, 1.442695
  %v861 = vpow.pop %v860
  %v862 = vadd.f32 %v861, 1.0
  %v863 = vrcp.pop %v862
  %v864 = vmul.f32 %v862, %v863
  %v865 = vsub.f32 1.0, %v864
  %v866 = vmul.f32 %v863, %v865
  %v867 = vadd.f32 %v863, %v866
  %vm868 = vweird.f32 %v862
  %vm869 = vweird.f32 %v863
  %vm870 = vmor %vm868, %vm869
  %v871 = vsel %vm870, %v863, %v867
  %v872 = vand.u32 2147483647, %v862
  %vm873 = vcmp.eq.f32.partialorder %v872, 8.507059e+37
  %v874 = vand.u32 %v862, 2147483648
  %v875 = vor.u32 1.1754944e-38, %v874
  %v876 = vsel %vm873, %v875, %v871
  %v877 = vmul.f32 1.0, %v876
  %v878 = vmul.f32 %v789, 0.0
  %v879 = vmul.f32 %v732, %v824
  %v880 = vadd.f32 %v878, %v879
  %v881 = vtanh.pop %v880
  %v882 = vmul.f32 %v877, %v881
  %s883 = scalar_lea.vmem [#allocation2], 8
  %v884 = vld [vmem:[%s883] sm:$0xff]
  %v886 = vsel %vm465, %v882, 0
  %888 = vmatpush.msra.mxu0 0.0
  %889 = vmatpush.msra.mxu0 0.0
  %890 = vmatpush.msra.mxu0 0.0
  %891 = vmatpush.msra.mxu0 0.0
  %892 = vmatpush.msra.mxu0 0.0
  %893 = vmatpush.msra.mxu0 0.0
  %894 = vmatpush.msra.mxu0 0.0
  %895 = vmatpush.msra.mxu0 0.0
  %896 = vmatpush.msra.mxu0 0.0
  %897 = vmatpush.msra.mxu0 0.0
  %898 = vmatpush.msra.mxu0 0.0
  %899 = vmatpush.msra.mxu0 0.0
  %900 = vmatpush.msra.mxu0 %v348
  %901 = vmatpush.msra.mxu0 %v347
  %902 = vmatpush.msra.mxu0 %v346
  %903 = vmatpush.msra.mxu0 %v345
  %904 = vmatmul.f32.gmra.mxu0 %v886
  %v905 = vpop.f32.mrf.mxu0
  %v906 = vadd.f32 0.0, %v905
  %907 = vdwg.mxu0
  %v908 = vadd.f32 %v884, %v906
  %v909 = vxor.u32 %v908, 2147483648
  %v910 = vmul.f32 %v909, 1.442695
  %v911 = vpow.pop %v910
  %v912 = vadd.f32 %v911, 1.0
  %v913 = vrcp.pop %v912
  %v914 = vmul.f32 %v912, %v913
  %v915 = vsub.f32 1.0, %v914
  %v916 = vmul.f32 %v913, %v915
  %v917 = vadd.f32 %v913, %v916
  %vm918 = vweird.f32 %v912
  %vm919 = vweird.f32 %v913
  %vm920 = vmor %vm918, %vm919
  %v921 = vsel %vm920, %v913, %v917
  %v922 = vand.u32 2147483647, %v912
  %vm923 = vcmp.eq.f32.partialorder %v922, 8.507059e+37
  %v924 = vand.u32 %v912, 2147483648
  %v925 = vor.u32 1.1754944e-38, %v924
  %v926 = vsel %vm923, %v925, %v921
  %v927 = vmul.f32 1.0, %v926
  %s928 = scalar_lea.vmem [#allocation3], 8
  %v929 = vld [vmem:[%s928] sm:$0xff]
  %930 = vmatpush.msra.mxu0 0.0
  %931 = vmatpush.msra.mxu0 0.0
  %932 = vmatpush.msra.mxu0 0.0
  %933 = vmatpush.msra.mxu0 0.0
  %934 = vmatpush.msra.mxu0 0.0
  %935 = vmatpush.msra.mxu0 0.0
  %936 = vmatpush.msra.mxu0 0.0
  %937 = vmatpush.msra.mxu0 0.0
  %938 = vmatpush.msra.mxu0 0.0
  %939 = vmatpush.msra.mxu0 0.0
  %940 = vmatpush.msra.mxu0 0.0
  %941 = vmatpush.msra.mxu0 0.0
  %942 = vmatpush.msra.mxu0 %v745
  %943 = vmatpush.msra.mxu0 %v743
  %944 = vmatpush.msra.mxu0 %v741
  %945 = vmatpush.msra.mxu0 %v739
  %946 = vmatmul.f32.gmra.mxu0 %v886
  %v947 = vpop.f32.mrf.mxu0
  %v948 = vadd.f32 0.0, %v947
  %949 = vdwg.mxu0
  %v950 = vadd.f32 %v929, %v948
  %v951 = vxor.u32 %v950, 2147483648
  %v952 = vmul.f32 %v951, 1.442695
  %v953 = vpow.pop %v952
  %v954 = vadd.f32 %v953, 1.0
  %v955 = vrcp.pop %v954
  %v956 = vmul.f32 %v954, %v955
  %v957 = vsub.f32 1.0, %v956
  %v958 = vmul.f32 %v955, %v957
  %v959 = vadd.f32 %v955, %v958
  %vm960 = vweird.f32 %v954
  %vm961 = vweird.f32 %v955
  %vm962 = vmor %vm960, %vm961
  %v963 = vsel %vm962, %v955, %v959
  %v964 = vand.u32 2147483647, %v954
  %vm965 = vcmp.eq.f32.partialorder %v964, 8.507059e+37
  %v966 = vand.u32 %v954, 2147483648
  %v967 = vor.u32 1.1754944e-38, %v966
  %v968 = vsel %vm965, %v967, %v963
  %v969 = vmul.f32 1.0, %v968
  %s970 = scalar_lea.vmem [#allocation4], 8
  %v971 = vld [vmem:[%s970] sm:$0xff]
  %972 = vmatpush.msra.mxu0 0.0
  %973 = vmatpush.msra.mxu0 0.0
  %974 = vmatpush.msra.mxu0 0.0
  %975 = vmatpush.msra.mxu0 0.0
  %976 = vmatpush.msra.mxu0 0.0
  %977 = vmatpush.msra.mxu0 0.0
  %978 = vmatpush.msra.mxu0 0.0
  %979 = vmatpush.msra.mxu0 0.0
  %980 = vmatpush.msra.mxu0 0.0
  %981 = vmatpush.msra.mxu0 0.0
  %982 = vmatpush.msra.mxu0 0.0
  %983 = vmatpush.msra.mxu0 0.0
  %984 = vmatpush.msra.mxu0 %v798
  %985 = vmatpush.msra.mxu0 %v796
  %986 = vmatpush.msra.mxu0 %v794
  %987 = vmatpush.msra.mxu0 %v792
  %988 = vmatmul.f32.gmra.mxu0 %v886
  %v989 = vpop.f32.mrf.mxu0
  %v990 = vadd.f32 0.0, %v989
  %991 = vdwg.mxu0
  %v992 = vadd.f32 %v971, %v990
  %v993 = vtanh.pop %v992
  %s994 = scalar_lea.vmem [#allocation5], 8
  %v995 = vld [vmem:[%s994] sm:$0xff]
  %996 = vmatpush.msra.mxu0 0.0
  %997 = vmatpush.msra.mxu0 0.0
  %998 = vmatpush.msra.mxu0 0.0
  %999 = vmatpush.msra.mxu0 0.0
  %1000 = vmatpush.msra.mxu0 0.0
  %1001 = vmatpush.msra.mxu0 0.0
  %1002 = vmatpush.msra.mxu0 0.0
  %1003 = vmatpush.msra.mxu0 0.0
  %1004 = vmatpush.msra.mxu0 0.0
  %1005 = vmatpush.msra.mxu0 0.0
  %1006 = vmatpush.msra.mxu0 0.0
  %1007 = vmatpush.msra.mxu0 0.0
  %1008 = vmatpush.msra.mxu0 %v833
  %1009 = vmatpush.msra.mxu0 %v831
  %1010 = vmatpush.msra.mxu0 %v829
  %1011 = vmatpush.msra.mxu0 %v827
  %1012 = vmatmul.f32.gmra.mxu0 %v886
  %v1013 = vpop.f32.mrf.mxu0
  %v1014 = vadd.f32 0.0, %v1013
  %1015 = vdwg.mxu0
  %v1016 = vadd.f32 %v995, %v1014
  %v1017 = vxor.u32 %v1016, 2147483648
  %v1018 = vmul.f32 %v1017, 1.442695
  %v1019 = vpow.pop %v1018
  %v1020 = vadd.f32 %v1019, 1.0
  %v1021 = vrcp.pop %v1020
  %v1022 = vmul.f32 %v1020, %v1021
  %v1023 = vsub.f32 1.0, %v1022
  %v1024 = vmul.f32 %v1021, %v1023
  %v1025 = vadd.f32 %v1021, %v1024
  %vm1026 = vweird.f32 %v1020
  %vm1027 = vweird.f32 %v1021
  %vm1028 = vmor %vm1026, %vm1027
  %v1029 = vsel %vm1028, %v1021, %v1025
  %v1030 = vand.u32 2147483647, %v1020
  %vm1031 = vcmp.eq.f32.partialorder %v1030, 8.507059e+37
  %v1032 = vand.u32 %v1020, 2147483648
  %v1033 = vor.u32 1.1754944e-38, %v1032
  %v1034 = vsel %vm1031, %v1033, %v1029
  %v1035 = vmul.f32 1.0, %v1034
  %v1036 = vmul.f32 %v969, %v880
  %v1037 = vmul.f32 %v927, %v993
  %v1038 = vadd.f32 %v1036, %v1037
  %v1039 = vtanh.pop %v1038
  %v1040 = vmul.f32 %v1035, %v1039
  %s1041 = scalar_lea.vmem [#allocation2], 16
  %v1042 = vld [vmem:[%s1041] sm:$0xff]
  %v1044 = vsel %vm465, %v1040, 0
  %1046 = vmatpush.msra.mxu0 0.0
  %1047 = vmatpush.msra.mxu0 0.0
  %1048 = vmatpush.msra.mxu0 0.0
  %1049 = vmatpush.msra.mxu0 0.0
  %1050 = vmatpush.msra.mxu0 0.0
  %1051 = vmatpush.msra.mxu0 0.0
  %1052 = vmatpush.msra.mxu0 0.0
  %1053 = vmatpush.msra.mxu0 0.0
  %1054 = vmatpush.msra.mxu0 0.0
  %1055 = vmatpush.msra.mxu0 0.0
  %1056 = vmatpush.msra.mxu0 0.0
  %1057 = vmatpush.msra.mxu0 0.0
  %1058 = vmatpush.msra.mxu0 %v348
  %1059 = vmatpush.msra.mxu0 %v347
  %1060 = vmatpush.msra.mxu0 %v346
  %1061 = vmatpush.msra.mxu0 %v345
  %1062 = vmatmul.f32.gmra.mxu0 %v1044
  %v1063 = vpop.f32.mrf.mxu0
  %v1064 = vadd.f32 0.0, %v1063
  %1065 = vdwg.mxu0
  %v1066 = vadd.f32 %v1042, %v1064
  %v1067 = vxor.u32 %v1066, 2147483648
  %v1068 = vmul.f32 %v1067, 1.442695
  %v1069 = vpow.pop %v1068
  %v1070 = vadd.f32 %v1069, 1.0
  %v1071 = vrcp.pop %v1070
  %v1072 = vmul.f32 %v1070, %v1071
  %v1073 = vsub.f32 1.0, %v1072
  %v1074 = vmul.f32 %v1071, %v1073
  %v1075 = vadd.f32 %v1071, %v1074
  %vm1076 = vweird.f32 %v1070
  %vm1077 = vweird.f32 %v1071
  %vm1078 = vmor %vm1076, %vm1077
  %v1079 = vsel %vm1078, %v1071, %v1075
  %v1080 = vand.u32 2147483647, %v1070
  %vm1081 = vcmp.eq.f32.partialorder %v1080, 8.507059e+37
  %v1082 = vand.u32 %v1070, 2147483648
  %v1083 = vor.u32 1.1754944e-38, %v1082
  %v1084 = vsel %vm1081, %v1083, %v1079
  %v1085 = vmul.f32 1.0, %v1084
  %s1086 = scalar_lea.vmem [#allocation3], 16
  %v1087 = vld [vmem:[%s1086] sm:$0xff]
  %1088 = vmatpush.msra.mxu0 0.0
  %1089 = vmatpush.msra.mxu0 0.0
  %1090 = vmatpush.msra.mxu0 0.0
  %1091 = vmatpush.msra.mxu0 0.0
  %1092 = vmatpush.msra.mxu0 0.0
  %1093 = vmatpush.msra.mxu0 0.0
  %1094 = vmatpush.msra.mxu0 0.0
  %1095 = vmatpush.msra.mxu0 0.0
  %1096 = vmatpush.msra.mxu0 0.0
  %1097 = vmatpush.msra.mxu0 0.0
  %1098 = vmatpush.msra.mxu0 0.0
  %1099 = vmatpush.msra.mxu0 0.0
  %1100 = vmatpush.msra.mxu0 %v745
  %1101 = vmatpush.msra.mxu0 %v743
  %1102 = vmatpush.msra.mxu0 %v741
  %1103 = vmatpush.msra.mxu0 %v739
  %1104 = vmatmul.f32.gmra.mxu0 %v1044
  %v1105 = vpop.f32.mrf.mxu0
  %v1106 = vadd.f32 0.0, %v1105
  %1107 = vdwg.mxu0
  %v1108 = vadd.f32 %v1087, %v1106
  %v1109 = vxor.u32 %v1108, 2147483648
  %v1110 = vmul.f32 %v1109, 1.442695
  %v1111 = vpow.pop %v1110
  %v1112 = vadd.f32 %v1111, 1.0
  %v1113 = vrcp.pop %v1112
  %v1114 = vmul.f32 %v1112, %v1113
  %v1115 = vsub.f32 1.0, %v1114
  %v1116 = vmul.f32 %v1113, %v1115
  %v1117 = vadd.f32 %v1113, %v1116
  %vm1118 = vweird.f32 %v1112
  %vm1119 = vweird.f32 %v1113
  %vm1120 = vmor %vm1118, %vm1119
  %v1121 = vsel %vm1120, %v1113, %v1117
  %v1122 = vand.u32 2147483647, %v1112
  %vm1123 = vcmp.eq.f32.partialorder %v1122, 8.507059e+37
  %v1124 = vand.u32 %v1112, 2147483648
  %v1125 = vor.u32 1.1754944e-38, %v1124
  %v1126 = vsel %vm1123, %v1125, %v1121
  %v1127 = vmul.f32 1.0, %v1126
  %s1128 = scalar_lea.vmem [#allocation4], 16
  %v1129 = vld [vmem:[%s1128] sm:$0xff]
  %1130 = vmatpush.msra.mxu0 0.0
  %1131 = vmatpush.msra.mxu0 0.0
  %1132 = vmatpush.msra.mxu0 0.0
  %1133 = vmatpush.msra.mxu0 0.0
  %1134 = vmatpush.msra.mxu0 0.0
  %1135 = vmatpush.msra.mxu0 0.0
  %1136 = vmatpush.msra.mxu0 0.0
  %1137 = vmatpush.msra.mxu0 0.0
  %1138 = vmatpush.msra.mxu0 0.0
  %1139 = vmatpush.msra.mxu0 0.0
  %1140 = vmatpush.msra.mxu0 0.0
  %1141 = vmatpush.msra.mxu0 0.0
  %1142 = vmatpush.msra.mxu0 %v798
  %1143 = vmatpush.msra.mxu0 %v796
  %1144 = vmatpush.msra.mxu0 %v794
  %1145 = vmatpush.msra.mxu0 %v792
  %1146 = vmatmul.f32.gmra.mxu0 %v1044
  %v1147 = vpop.f32.mrf.mxu0
  %v1148 = vadd.f32 0.0, %v1147
  %1149 = vdwg.mxu0
  %v1150 = vadd.f32 %v1129, %v1148
  %v1151 = vtanh.pop %v1150
  %s1152 = scalar_lea.vmem [#allocation5], 16
  %v1153 = vld [vmem:[%s1152] sm:$0xff]
  %1154 = vmatpush.msra.mxu0 0.0
  %1155 = vmatpush.msra.mxu0 0.0
  %1156 = vmatpush.msra.mxu0 0.0
  %1157 = vmatpush.msra.mxu0 0.0
  %1158 = vmatpush.msra.mxu0 0.0
  %1159 = vmatpush.msra.mxu0 0.0
  %1160 = vmatpush.msra.mxu0 0.0
  %1161 = vmatpush.msra.mxu0 0.0
  %1162 = vmatpush.msra.mxu0 0.0
  %1163 = vmatpush.msra.mxu0 0.0
  %1164 = vmatpush.msra.mxu0 0.0
  %1165 = vmatpush.msra.mxu0 0.0
  %1166 = vmatpush.msra.mxu0 %v833
  %1167 = vmatpush.msra.mxu0 %v831
  %1168 = vmatpush.msra.mxu0 %v829
  %1169 = vmatpush.msra.mxu0 %v827
  %1170 = vmatmul.f32.gmra.mxu0 %v1044
  %v1171 = vpop.f32.mrf.mxu0
  %v1172 = vadd.f32 0.0, %v1171
  %1173 = vdwg.mxu0
  %v1174 = vadd.f32 %v1153, %v1172
  %v1175 = vxor.u32 %v1174, 2147483648
  %v1176 = vmul.f32 %v1175, 1.442695
  %v1177 = vpow.pop %v1176
  %v1178 = vadd.f32 %v1177, 1.0
  %v1179 = vrcp.pop %v1178
  %v1180 = vmul.f32 %v1178, %v1179
  %v1181 = vsub.f32 1.0, %v1180
  %v1182 = vmul.f32 %v1179, %v1181
  %v1183 = vadd.f32 %v1179, %v1182
  %vm1184 = vweird.f32 %v1178
  %vm1185 = vweird.f32 %v1179
  %vm1186 = vmor %vm1184, %vm1185
  %v1187 = vsel %vm1186, %v1179, %v1183
  %v1188 = vand.u32 2147483647, %v1178
  %vm1189 = vcmp.eq.f32.partialorder %v1188, 8.507059e+37
  %v1190 = vand.u32 %v1178, 2147483648
  %v1191 = vor.u32 1.1754944e-38, %v1190
  %v1192 = vsel %vm1189, %v1191, %v1187
  %v1193 = vmul.f32 1.0, %v1192
  %v1194 = vmul.f32 %v1127, %v1038
  %v1195 = vmul.f32 %v1085, %v1151
  %v1196 = vadd.f32 %v1194, %v1195
  %v1197 = vtanh.pop %v1196
  %v1198 = vmul.f32 %v1193, %v1197
  %s1199 = scalar_lea.vmem [#allocation2], 24
  %v1200 = vld [vmem:[%s1199] sm:$0xff]
  %v1202 = vsel %vm465, %v1198, 0
  %1204 = vmatpush.msra.mxu0 0.0
  %1205 = vmatpush.msra.mxu0 0.0
  %1206 = vmatpush.msra.mxu0 0.0
  %1207 = vmatpush.msra.mxu0 0.0
  %1208 = vmatpush.msra.mxu0 0.0
  %1209 = vmatpush.msra.mxu0 0.0
  %1210 = vmatpush.msra.mxu0 0.0
  %1211 = vmatpush.msra.mxu0 0.0
  %1212 = vmatpush.msra.mxu0 0.0
  %1213 = vmatpush.msra.mxu0 0.0
  %1214 = vmatpush.msra.mxu0 0.0
  %1215 = vmatpush.msra.mxu0 0.0
  %1216 = vmatpush.msra.mxu0 %v348
  %1217 = vmatpush.msra.mxu0 %v347
  %1218 = vmatpush.msra.mxu0 %v346
  %1219 = vmatpush.msra.mxu0 %v345
  %1220 = vmatmul.f32.gmra.mxu0 %v1202
  %v1221 = vpop.f32.mrf.mxu0
  %v1222 = vadd.f32 0.0, %v1221
  %1223 = vdwg.mxu0
  %v1224 = vadd.f32 %v1200, %v1222
  %v1225 = vxor.u32 %v1224, 2147483648
  %v1226 = vmul.f32 %v1225, 1.442695
  %v1227 = vpow.pop %v1226
  %v1228 = vadd.f32 %v1227, 1.0
  %v1229 = vrcp.pop %v1228
  %v1230 = vmul.f32 %v1228, %v1229
  %v1231 = vsub.f32 1.0, %v1230
  %v1232 = vmul.f32 %v1229, %v1231
  %v1233 = vadd.f32 %v1229, %v1232
  %vm1234 = vweird.f32 %v1228
  %vm1235 = vweird.f32 %v1229
  %vm1236 = vmor %vm1234, %vm1235
  %v1237 = vsel %vm1236, %v1229, %v1233
  %v1238 = vand.u32 2147483647, %v1228
  %vm1239 = vcmp.eq.f32.partialorder %v1238, 8.507059e+37
  %v1240 = vand.u32 %v1228, 2147483648
  %v1241 = vor.u32 1.1754944e-38, %v1240
  %v1242 = vsel %vm1239, %v1241, %v1237
  %v1243 = vmul.f32 1.0, %v1242
  %s1244 = scalar_lea.vmem [#allocation3], 24
  %v1245 = vld [vmem:[%s1244] sm:$0xff]
  %1246 = vmatpush.msra.mxu0 0.0
  %1247 = vmatpush.msra.mxu0 0.0
  %1248 = vmatpush.msra.mxu0 0.0
  %1249 = vmatpush.msra.mxu0 0.0
  %1250 = vmatpush.msra.mxu0 0.0
  %1251 = vmatpush.msra.mxu0 0.0
  %1252 = vmatpush.msra.mxu0 0.0
  %1253 = vmatpush.msra.mxu0 0.0
  %1254 = vmatpush.msra.mxu0 0.0
  %1255 = vmatpush.msra.mxu0 0.0
  %1256 = vmatpush.msra.mxu0 0.0
  %1257 = vmatpush.msra.mxu0 0.0
  %1258 = vmatpush.msra.mxu0 %v745
  %1259 = vmatpush.msra.mxu0 %v743
  %1260 = vmatpush.msra.mxu0 %v741
  %1261 = vmatpush.msra.mxu0 %v739
  %1262 = vmatmul.f32.gmra.mxu0 %v1202
  %v1263 = vpop.f32.mrf.mxu0
  %v1264 = vadd.f32 0.0, %v1263
  %1265 = vdwg.mxu0
  %v1266 = vadd.f32 %v1245, %v1264
  %v1267 = vxor.u32 %v1266, 2147483648
  %v1268 = vmul.f32 %v1267, 1.442695
  %v1269 = vpow.pop %v1268
  %v1270 = vadd.f32 %v1269, 1.0
  %v1271 = vrcp.pop %v1270
  %v1272 = vmul.f32 %v1270, %v1271
  %v1273 = vsub.f32 1.0, %v1272
  %v1274 = vmul.f32 %v1271, %v1273
  %v1275 = vadd.f32 %v1271, %v1274
  %vm1276 = vweird.f32 %v1270
  %vm1277 = vweird.f32 %v1271
  %vm1278 = vmor %vm1276, %vm1277
  %v1279 = vsel %vm1278, %v1271, %v1275
  %v1280 = vand.u32 2147483647, %v1270
  %vm1281 = vcmp.eq.f32.partialorder %v1280, 8.507059e+37
  %v1282 = vand.u32 %v1270, 2147483648
  %v1283 = vor.u32 1.1754944e-38, %v1282
  %v1284 = vsel %vm1281, %v1283, %v1279
  %v1285 = vmul.f32 1.0, %v1284
  %s1286 = scalar_lea.vmem [#allocation4], 24
  %v1287 = vld [vmem:[%s1286] sm:$0xff]
  %1288 = vmatpush.msra.mxu0 0.0
  %1289 = vmatpush.msra.mxu0 0.0
  %1290 = vmatpush.msra.mxu0 0.0
  %1291 = vmatpush.msra.mxu0 0.0
  %1292 = vmatpush.msra.mxu0 0.0
  %1293 = vmatpush.msra.mxu0 0.0
  %1294 = vmatpush.msra.mxu0 0.0
  %1295 = vmatpush.msra.mxu0 0.0
  %1296 = vmatpush.msra.mxu0 0.0
  %1297 = vmatpush.msra.mxu0 0.0
  %1298 = vmatpush.msra.mxu0 0.0
  %1299 = vmatpush.msra.mxu0 0.0
  %1300 = vmatpush.msra.mxu0 %v798
  %1301 = vmatpush.msra.mxu0 %v796
  %1302 = vmatpush.msra.mxu0 %v794
  %1303 = vmatpush.msra.mxu0 %v792
  %1304 = vmatmul.f32.gmra.mxu0 %v1202
  %v1305 = vpop.f32.mrf.mxu0
  %v1306 = vadd.f32 0.0, %v1305
  %1307 = vdwg.mxu0
  %v1308 = vadd.f32 %v1287, %v1306
  %v1309 = vtanh.pop %v1308
  %s1310 = scalar_lea.vmem [#allocation5], 24
  %v1311 = vld [vmem:[%s1310] sm:$0xff]
  %1312 = vmatpush.msra.mxu0 0.0
  %1313 = vmatpush.msra.mxu0 0.0
  %1314 = vmatpush.msra.mxu0 0.0
  %1315 = vmatpush.msra.mxu0 0.0
  %1316 = vmatpush.msra.mxu0 0.0
  %1317 = vmatpush.msra.mxu0 0.0
  %1318 = vmatpush.msra.mxu0 0.0
  %1319 = vmatpush.msra.mxu0 0.0
  %1320 = vmatpush.msra.mxu0 0.0
  %1321 = vmatpush.msra.mxu0 0.0
  %1322 = vmatpush.msra.mxu0 0.0
  %1323 = vmatpush.msra.mxu0 0.0
  %1324 = vmatpush.msra.mxu0 %v833
  %1325 = vmatpush.msra.mxu0 %v831
  %1326 = vmatpush.msra.mxu0 %v829
  %1327 = vmatpush.msra.mxu0 %v827
  %1328 = vmatmul.f32.gmra.mxu0 %v1202
  %v1329 = vpop.f32.mrf.mxu0
  %v1330 = vadd.f32 0.0, %v1329
  %1331 = vdwg.mxu0
  %v1332 = vadd.f32 %v1311, %v1330
  %v1333 = vxor.u32 %v1332, 2147483648
  %v1334 = vmul.f32 %v1333, 1.442695
  %v1335 = vpow.pop %v1334
  %v1336 = vadd.f32 %v1335, 1.0
  %v1337 = vrcp.pop %v1336
  %v1338 = vmul.f32 %v1336, %v1337
  %v1339 = vsub.f32 1.0, %v1338
  %v1340 = vmul.f32 %v1337, %v1339
  %v1341 = vadd.f32 %v1337, %v1340
  %vm1342 = vweird.f32 %v1336
  %vm1343 = vweird.f32 %v1337
  %vm1344 = vmor %vm1342, %vm1343
  %v1345 = vsel %vm1344, %v1337, %v1341
  %v1346 = vand.u32 2147483647, %v1336
  %vm1347 = vcmp.eq.f32.partialorder %v1346, 8.507059e+37
  %v1348 = vand.u32 %v1336, 2147483648
  %v1349 = vor.u32 1.1754944e-38, %v1348
  %v1350 = vsel %vm1347, %v1349, %v1345
  %v1351 = vmul.f32 1.0, %v1350
  %v1352 = vmul.f32 %v1285, %v1196
  %v1353 = vmul.f32 %v1243, %v1309
  %v1354 = vadd.f32 %v1352, %v1353
  %v1355 = vtanh.pop %v1354
  %v1356 = vmul.f32 %v1351, %v1355
  %s1357 = scalar_lea.vmem [#allocation2], 32
  %v1358 = vld [vmem:[%s1357] sm:$0xff]
  %v1360 = vsel %vm465, %v1356, 0
  %1362 = vmatpush.msra.mxu0 0.0
  %1363 = vmatpush.msra.mxu0 0.0
  %1364 = vmatpush.msra.mxu0 0.0
  %1365 = vmatpush.msra.mxu0 0.0
  %1366 = vmatpush.msra.mxu0 0.0
  %1367 = vmatpush.msra.mxu0 0.0
  %1368 = vmatpush.msra.mxu0 0.0
  %1369 = vmatpush.msra.mxu0 0.0
  %1370 = vmatpush.msra.mxu0 0.0
  %1371 = vmatpush.msra.mxu0 0.0
  %1372 = vmatpush.msra.mxu0 0.0
  %1373 = vmatpush.msra.mxu0 0.0
  %1374 = vmatpush.msra.mxu0 %v348
  %1375 = vmatpush.msra.mxu0 %v347
  %1376 = vmatpush.msra.mxu0 %v346
  %1377 = vmatpush.msra.mxu0 %v345
  %1378 = vmatmul.f32.gmra.mxu0 %v1360
  %v1379 = vpop.f32.mrf.mxu0
  %v1380 = vadd.f32 0.0, %v1379
  %1381 = vdwg.mxu0
  %v1382 = vadd.f32 %v1358, %v1380
  %v1383 = vxor.u32 %v1382, 2147483648
  %v1384 = vmul.f32 %v1383, 1.442695
  %v1385 = vpow.pop %v1384
  %v1386 = vadd.f32 %v1385, 1.0
  %v1387 = vrcp.pop %v1386
  %v1388 = vmul.f32 %v1386, %v1387
  %v1389 = vsub.f32 1.0, %v1388
  %v1390 = vmul.f32 %v1387, %v1389
  %v1391 = vadd.f32 %v1387, %v1390
  %vm1392 = vweird.f32 %v1386
  %vm1393 = vweird.f32 %v1387
  %vm1394 = vmor %vm1392, %vm1393
  %v1395 = vsel %vm1394, %v1387, %v1391
  %v1396 = vand.u32 2147483647, %v1386
  %vm1397 = vcmp.eq.f32.partialorder %v1396, 8.507059e+37
  %v1398 = vand.u32 %v1386, 2147483648
  %v1399 = vor.u32 1.1754944e-38, %v1398
  %v1400 = vsel %vm1397, %v1399, %v1395
  %v1401 = vmul.f32 1.0, %v1400
  %s1402 = scalar_lea.vmem [#allocation3], 32
  %v1403 = vld [vmem:[%s1402] sm:$0xff]
  %1404 = vmatpush.msra.mxu0 0.0
  %1405 = vmatpush.msra.mxu0 0.0
  %1406 = vmatpush.msra.mxu0 0.0
  %1407 = vmatpush.msra.mxu0 0.0
  %1408 = vmatpush.msra.mxu0 0.0
  %1409 = vmatpush.msra.mxu0 0.0
  %1410 = vmatpush.msra.mxu0 0.0
  %1411 = vmatpush.msra.mxu0 0.0
  %1412 = vmatpush.msra.mxu0 0.0
  %1413 = vmatpush.msra.mxu0 0.0
  %1414 = vmatpush.msra.mxu0 0.0
  %1415 = vmatpush.msra.mxu0 0.0
  %1416 = vmatpush.msra.mxu0 %v745
  %1417 = vmatpush.msra.mxu0 %v743
  %1418 = vmatpush.msra.mxu0 %v741
  %1419 = vmatpush.msra.mxu0 %v739
  %1420 = vmatmul.f32.gmra.mxu0 %v1360
  %v1421 = vpop.f32.mrf.mxu0
  %v1422 = vadd.f32 0.0, %v1421
  %1423 = vdwg.mxu0
  %v1424 = vadd.f32 %v1403, %v1422
  %v1425 = vxor.u32 %v1424, 2147483648
  %v1426 = vmul.f32 %v1425, 1.442695
  %v1427 = vpow.pop %v1426
  %v1428 = vadd.f32 %v1427, 1.0
  %v1429 = vrcp.pop %v1428
  %v1430 = vmul.f32 %v1428, %v1429
  %v1431 = vsub.f32 1.0, %v1430
  %v1432 = vmul.f32 %v1429, %v1431
  %v1433 = vadd.f32 %v1429, %v1432
  %vm1434 = vweird.f32 %v1428
  %vm1435 = vweird.f32 %v1429
  %vm1436 = vmor %vm1434, %vm1435
  %v1437 = vsel %vm1436, %v1429, %v1433
  %v1438 = vand.u32 2147483647, %v1428
  %vm1439 = vcmp.eq.f32.partialorder %v1438, 8.507059e+37
  %v1440 = vand.u32 %v1428, 2147483648
  %v1441 = vor.u32 1.1754944e-38, %v1440
  %v1442 = vsel %vm1439, %v1441, %v1437
  %v1443 = vmul.f32 1.0, %v1442
  %s1444 = scalar_lea.vmem [#allocation4], 32
  %v1445 = vld [vmem:[%s1444] sm:$0xff]
  %1446 = vmatpush.msra.mxu0 0.0
  %1447 = vmatpush.msra.mxu0 0.0
  %1448 = vmatpush.msra.mxu0 0.0
  %1449 = vmatpush.msra.mxu0 0.0
  %1450 = vmatpush.msra.mxu0 0.0
  %1451 = vmatpush.msra.mxu0 0.0
  %1452 = vmatpush.msra.mxu0 0.0
  %1453 = vmatpush.msra.mxu0 0.0
  %1454 = vmatpush.msra.mxu0 0.0
  %1455 = vmatpush.msra.mxu0 0.0
  %1456 = vmatpush.msra.mxu0 0.0
  %1457 = vmatpush.msra.mxu0 0.0
  %1458 = vmatpush.msra.mxu0 %v798
  %1459 = vmatpush.msra.mxu0 %v796
  %1460 = vmatpush.msra.mxu0 %v794
  %1461 = vmatpush.msra.mxu0 %v792
  %1462 = vmatmul.f32.gmra.mxu0 %v1360
  %v1463 = vpop.f32.mrf.mxu0
  %v1464 = vadd.f32 0.0, %v1463
  %1465 = vdwg.mxu0
  %v1466 = vadd.f32 %v1445, %v1464
  %v1467 = vtanh.pop %v1466
  %s1468 = scalar_lea.vmem [#allocation5], 32
  %v1469 = vld [vmem:[%s1468] sm:$0xff]
  %1470 = vmatpush.msra.mxu0 0.0
  %1471 = vmatpush.msra.mxu0 0.0
  %1472 = vmatpush.msra.mxu0 0.0
  %1473 = vmatpush.msra.mxu0 0.0
  %1474 = vmatpush.msra.mxu0 0.0
  %1475 = vmatpush.msra.mxu0 0.0
  %1476 = vmatpush.msra.mxu0 0.0
  %1477 = vmatpush.msra.mxu0 0.0
  %1478 = vmatpush.msra.mxu0 0.0
  %1479 = vmatpush.msra.mxu0 0.0
  %1480 = vmatpush.msra.mxu0 0.0
  %1481 = vmatpush.msra.mxu0 0.0
  %1482 = vmatpush.msra.mxu0 %v833
  %1483 = vmatpush.msra.mxu0 %v831
  %1484 = vmatpush.msra.mxu0 %v829
  %1485 = vmatpush.msra.mxu0 %v827
  %1486 = vmatmul.f32.gmra.mxu0 %v1360
  %v1487 = vpop.f32.mrf.mxu0
  %v1488 = vadd.f32 0.0, %v1487
  %1489 = vdwg.mxu0
  %v1490 = vadd.f32 %v1469, %v1488
  %v1491 = vxor.u32 %v1490, 2147483648
  %v1492 = vmul.f32 %v1491, 1.442695
  %v1493 = vpow.pop %v1492
  %v1494 = vadd.f32 %v1493, 1.0
  %v1495 = vrcp.pop %v1494
  %v1496 = vmul.f32 %v1494, %v1495
  %v1497 = vsub.f32 1.0, %v1496
  %v1498 = vmul.f32 %v1495, %v1497
  %v1499 = vadd.f32 %v1495, %v1498
  %vm1500 = vweird.f32 %v1494
  %vm1501 = vweird.f32 %v1495
  %vm1502 = vmor %vm1500, %vm1501
  %v1503 = vsel %vm1502, %v1495, %v1499
  %v1504 = vand.u32 2147483647, %v1494
  %vm1505 = vcmp.eq.f32.partialorder %v1504, 8.507059e+37
  %v1506 = vand.u32 %v1494, 2147483648
  %v1507 = vor.u32 1.1754944e-38, %v1506
  %v1508 = vsel %vm1505, %v1507, %v1503
  %v1509 = vmul.f32 1.0, %v1508
  %v1510 = vmul.f32 %v1443, %v1354
  %v1511 = vmul.f32 %v1401, %v1467
  %v1512 = vadd.f32 %v1510, %v1511
  %v1513 = vtanh.pop %v1512
  %v1514 = vmul.f32 %v1509, %v1513
  %s1515 = scalar_lea.vmem [#allocation2], 40
  %v1516 = vld [vmem:[%s1515] sm:$0xff]
  %v1518 = vsel %vm465, %v1514, 0
  %1520 = vmatpush.msra.mxu0 0.0
  %1521 = vmatpush.msra.mxu0 0.0
  %1522 = vmatpush.msra.mxu0 0.0
  %1523 = vmatpush.msra.mxu0 0.0
  %1524 = vmatpush.msra.mxu0 0.0
  %1525 = vmatpush.msra.mxu0 0.0
  %1526 = vmatpush.msra.mxu0 0.0
  %1527 = vmatpush.msra.mxu0 0.0
  %1528 = vmatpush.msra.mxu0 0.0
  %1529 = vmatpush.msra.mxu0 0.0
  %1530 = vmatpush.msra.mxu0 0.0
  %1531 = vmatpush.msra.mxu0 0.0
  %1532 = vmatpush.msra.mxu0 %v348
  %1533 = vmatpush.msra.mxu0 %v347
  %1534 = vmatpush.msra.mxu0 %v346
  %1535 = vmatpush.msra.mxu0 %v345
  %1536 = vmatmul.f32.gmra.mxu0 %v1518
  %v1537 = vpop.f32.mrf.mxu0
  %v1538 = vadd.f32 0.0, %v1537
  %1539 = vdwg.mxu0
  %v1540 = vadd.f32 %v1516, %v1538
  %v1541 = vxor.u32 %v1540, 2147483648
  %v1542 = vmul.f32 %v1541, 1.442695
  %v1543 = vpow.pop %v1542
  %v1544 = vadd.f32 %v1543, 1.0
  %v1545 = vrcp.pop %v1544
  %v1546 = vmul.f32 %v1544, %v1545
  %v1547 = vsub.f32 1.0, %v1546
  %v1548 = vmul.f32 %v1545, %v1547
  %v1549 = vadd.f32 %v1545, %v1548
  %vm1550 = vweird.f32 %v1544
  %vm1551 = vweird.f32 %v1545
  %vm1552 = vmor %vm1550, %vm1551
  %v1553 = vsel %vm1552, %v1545, %v1549
  %v1554 = vand.u32 2147483647, %v1544
  %vm1555 = vcmp.eq.f32.partialorder %v1554, 8.507059e+37
  %v1556 = vand.u32 %v1544, 2147483648
  %v1557 = vor.u32 1.1754944e-38, %v1556
  %v1558 = vsel %vm1555, %v1557, %v1553
  %v1559 = vmul.f32 1.0, %v1558
  %s1560 = scalar_lea.vmem [#allocation3], 40
  %v1561 = vld [vmem:[%s1560] sm:$0xff]
  %1562 = vmatpush.msra.mxu0 0.0
  %1563 = vmatpush.msra.mxu0 0.0
  %1564 = vmatpush.msra.mxu0 0.0
  %1565 = vmatpush.msra.mxu0 0.0
  %1566 = vmatpush.msra.mxu0 0.0
  %1567 = vmatpush.msra.mxu0 0.0
  %1568 = vmatpush.msra.mxu0 0.0
  %1569 = vmatpush.msra.mxu0 0.0
  %1570 = vmatpush.msra.mxu0 0.0
  %1571 = vmatpush.msra.mxu0 0.0
  %1572 = vmatpush.msra.mxu0 0.0
  %1573 = vmatpush.msra.mxu0 0.0
  %1574 = vmatpush.msra.mxu0 %v745
  %1575 = vmatpush.msra.mxu0 %v743
  %1576 = vmatpush.msra.mxu0 %v741
  %1577 = vmatpush.msra.mxu0 %v739
  %1578 = vmatmul.f32.gmra.mxu0 %v1518
  %v1579 = vpop.f32.mrf.mxu0
  %v1580 = vadd.f32 0.0, %v1579
  %1581 = vdwg.mxu0
  %v1582 = vadd.f32 %v1561, %v1580
  %v1583 = vxor.u32 %v1582, 2147483648
  %v1584 = vmul.f32 %v1583, 1.442695
  %v1585 = vpow.pop %v1584
  %v1586 = vadd.f32 %v1585, 1.0
  %v1587 = vrcp.pop %v1586
  %v1588 = vmul.f32 %v1586, %v1587
  %v1589 = vsub.f32 1.0, %v1588
  %v1590 = vmul.f32 %v1587, %v1589
  %v1591 = vadd.f32 %v1587, %v1590
  %vm1592 = vweird.f32 %v1586
  %vm1593 = vweird.f32 %v1587
  %vm1594 = vmor %vm1592, %vm1593
  %v1595 = vsel %vm1594, %v1587, %v1591
  %v1596 = vand.u32 2147483647, %v1586
  %vm1597 = vcmp.eq.f32.partialorder %v1596, 8.507059e+37
  %v1598 = vand.u32 %v1586, 2147483648
  %v1599 = vor.u32 1.1754944e-38, %v1598
  %v1600 = vsel %vm1597, %v1599, %v1595
  %v1601 = vmul.f32 1.0, %v1600
  %s1602 = scalar_lea.vmem [#allocation4], 40
  %v1603 = vld [vmem:[%s1602] sm:$0xff]
  %1604 = vmatpush.msra.mxu0 0.0
  %1605 = vmatpush.msra.mxu0 0.0
  %1606 = vmatpush.msra.mxu0 0.0
  %1607 = vmatpush.msra.mxu0 0.0
  %1608 = vmatpush.msra.mxu0 0.0
  %1609 = vmatpush.msra.mxu0 0.0
  %1610 = vmatpush.msra.mxu0 0.0
  %1611 = vmatpush.msra.mxu0 0.0
  %1612 = vmatpush.msra.mxu0 0.0
  %1613 = vmatpush.msra.mxu0 0.0
  %1614 = vmatpush.msra.mxu0 0.0
  %1615 = vmatpush.msra.mxu0 0.0
  %1616 = vmatpush.msra.mxu0 %v798
  %1617 = vmatpush.msra.mxu0 %v796
  %1618 = vmatpush.msra.mxu0 %v794
  %1619 = vmatpush.msra.mxu0 %v792
  %1620 = vmatmul.f32.gmra.mxu0 %v1518
  %v1621 = vpop.f32.mrf.mxu0
  %v1622 = vadd.f32 0.0, %v1621
  %1623 = vdwg.mxu0
  %v1624 = vadd.f32 %v1603, %v1622
  %v1625 = vtanh.pop %v1624
  %s1626 = scalar_lea.vmem [#allocation5], 40
  %v1627 = vld [vmem:[%s1626] sm:$0xff]
  %1628 = vmatpush.msra.mxu0 0.0
  %1629 = vmatpush.msra.mxu0 0.0
  %1630 = vmatpush.msra.mxu0 0.0
  %1631 = vmatpush.msra.mxu0 0.0
  %1632 = vmatpush.msra.mxu0 0.0
  %1633 = vmatpush.msra.mxu0 0.0
  %1634 = vmatpush.msra.mxu0 0.0
  %1635 = vmatpush.msra.mxu0 0.0
  %1636 = vmatpush.msra.mxu0 0.0
  %1637 = vmatpush.msra.mxu0 0.0
  %1638 = vmatpush.msra.mxu0 0.0
  %1639 = vmatpush.msra.mxu0 0.0
  %1640 = vmatpush.msra.mxu0 %v833
  %1641 = vmatpush.msra.mxu0 %v831
  %1642 = vmatpush.msra.mxu0 %v829
  %1643 = vmatpush.msra.mxu0 %v827
  %1644 = vmatmul.f32.gmra.mxu0 %v1518
  %v1645 = vpop.f32.mrf.mxu0
  %v1646 = vadd.f32 0.0, %v1645
  %1647 = vdwg.mxu0
  %v1648 = vadd.f32 %v1627, %v1646
  %v1649 = vxor.u32 %v1648, 2147483648
  %v1650 = vmul.f32 %v1649, 1.442695
  %v1651 = vpow.pop %v1650
  %v1652 = vadd.f32 %v1651, 1.0
  %v1653 = vrcp.pop %v1652
  %v1654 = vmul.f32 %v1652, %v1653
  %v1655 = vsub.f32 1.0, %v1654
  %v1656 = vmul.f32 %v1653, %v1655
  %v1657 = vadd.f32 %v1653, %v1656
  %vm1658 = vweird.f32 %v1652
  %vm1659 = vweird.f32 %v1653
  %vm1660 = vmor %vm1658, %vm1659
  %v1661 = vsel %vm1660, %v1653, %v1657
  %v1662 = vand.u32 2147483647, %v1652
  %vm1663 = vcmp.eq.f32.partialorder %v1662, 8.507059e+37
  %v1664 = vand.u32 %v1652, 2147483648
  %v1665 = vor.u32 1.1754944e-38, %v1664
  %v1666 = vsel %vm1663, %v1665, %v1661
  %v1667 = vmul.f32 1.0, %v1666
  %v1668 = vmul.f32 %v1601, %v1512
  %v1669 = vmul.f32 %v1559, %v1625
  %v1670 = vadd.f32 %v1668, %v1669
  %v1671 = vtanh.pop %v1670
  %v1672 = vmul.f32 %v1667, %v1671
  %s1673 = scalar_lea.vmem [#allocation2], 48
  %v1674 = vld [vmem:[%s1673] sm:$0xff]
  %v1676 = vsel %vm465, %v1672, 0
  %1678 = vmatpush.msra.mxu0 0.0
  %1679 = vmatpush.msra.mxu0 0.0
  %1680 = vmatpush.msra.mxu0 0.0
  %1681 = vmatpush.msra.mxu0 0.0
  %1682 = vmatpush.msra.mxu0 0.0
  %1683 = vmatpush.msra.mxu0 0.0
  %1684 = vmatpush.msra.mxu0 0.0
  %1685 = vmatpush.msra.mxu0 0.0
  %1686 = vmatpush.msra.mxu0 0.0
  %1687 = vmatpush.msra.mxu0 0.0
  %1688 = vmatpush.msra.mxu0 0.0
  %1689 = vmatpush.msra.mxu0 0.0
  %1690 = vmatpush.msra.mxu0 %v348
  %1691 = vmatpush.msra.mxu0 %v347
  %1692 = vmatpush.msra.mxu0 %v346
  %1693 = vmatpush.msra.mxu0 %v345
  %1694 = vmatmul.f32.gmra.mxu0 %v1676
  %v1695 = vpop.f32.mrf.mxu0
  %v1696 = vadd.f32 0.0, %v1695
  %1697 = vdwg.mxu0
  %v1698 = vadd.f32 %v1674, %v1696
  %v1699 = vxor.u32 %v1698, 2147483648
  %v1700 = vmul.f32 %v1699, 1.442695
  %v1701 = vpow.pop %v1700
  %v1702 = vadd.f32 %v1701, 1.0
  %v1703 = vrcp.pop %v1702
  %v1704 = vmul.f32 %v1702, %v1703
  %v1705 = vsub.f32 1.0, %v1704
  %v1706 = vmul.f32 %v1703, %v1705
  %v1707 = vadd.f32 %v1703, %v1706
  %vm1708 = vweird.f32 %v1702
  %vm1709 = vweird.f32 %v1703
  %vm1710 = vmor %vm1708, %vm1709
  %v1711 = vsel %vm1710, %v1703, %v1707
  %v1712 = vand.u32 2147483647, %v1702
  %vm1713 = vcmp.eq.f32.partialorder %v1712, 8.507059e+37
  %v1714 = vand.u32 %v1702, 2147483648
  %v1715 = vor.u32 1.1754944e-38, %v1714
  %v1716 = vsel %vm1713, %v1715, %v1711
  %v1717 = vmul.f32 1.0, %v1716
  %s1718 = scalar_lea.vmem [#allocation3], 48
  %v1719 = vld [vmem:[%s1718] sm:$0xff]
  %1720 = vmatpush.msra.mxu0 0.0
  %1721 = vmatpush.msra.mxu0 0.0
  %1722 = vmatpush.msra.mxu0 0.0
  %1723 = vmatpush.msra.mxu0 0.0
  %1724 = vmatpush.msra.mxu0 0.0
  %1725 = vmatpush.msra.mxu0 0.0
  %1726 = vmatpush.msra.mxu0 0.0
  %1727 = vmatpush.msra.mxu0 0.0
  %1728 = vmatpush.msra.mxu0 0.0
  %1729 = vmatpush.msra.mxu0 0.0
  %1730 = vmatpush.msra.mxu0 0.0
  %1731 = vmatpush.msra.mxu0 0.0
  %1732 = vmatpush.msra.mxu0 %v745
  %1733 = vmatpush.msra.mxu0 %v743
  %1734 = vmatpush.msra.mxu0 %v741
  %1735 = vmatpush.msra.mxu0 %v739
  %1736 = vmatmul.f32.gmra.mxu0 %v1676
  %v1737 = vpop.f32.mrf.mxu0
  %v1738 = vadd.f32 0.0, %v1737
  %1739 = vdwg.mxu0
  %v1740 = vadd.f32 %v1719, %v1738
  %v1741 = vxor.u32 %v1740, 2147483648
  %v1742 = vmul.f32 %v1741, 1.442695
  %v1743 = vpow.pop %v1742
  %v1744 = vadd.f32 %v1743, 1.0
  %v1745 = vrcp.pop %v1744
  %v1746 = vmul.f32 %v1744, %v1745
  %v1747 = vsub.f32 1.0, %v1746
  %v1748 = vmul.f32 %v1745, %v1747
  %v1749 = vadd.f32 %v1745, %v1748
  %vm1750 = vweird.f32 %v1744
  %vm1751 = vweird.f32 %v1745
  %vm1752 = vmor %vm1750, %vm1751
  %v1753 = vsel %vm1752, %v1745, %v1749
  %v1754 = vand.u32 2147483647, %v1744
  %vm1755 = vcmp.eq.f32.partialorder %v1754, 8.507059e+37
  %v1756 = vand.u32 %v1744, 2147483648
  %v1757 = vor.u32 1.1754944e-38, %v1756
  %v1758 = vsel %vm1755, %v1757, %v1753
  %v1759 = vmul.f32 1.0, %v1758
  %s1760 = scalar_lea.vmem [#allocation4], 48
  %v1761 = vld [vmem:[%s1760] sm:$0xff]
  %1762 = vmatpush.msra.mxu0 0.0
  %1763 = vmatpush.msra.mxu0 0.0
  %1764 = vmatpush.msra.mxu0 0.0
  %1765 = vmatpush.msra.mxu0 0.0
  %1766 = vmatpush.msra.mxu0 0.0
  %1767 = vmatpush.msra.mxu0 0.0
  %1768 = vmatpush.msra.mxu0 0.0
  %1769 = vmatpush.msra.mxu0 0.0
  %1770 = vmatpush.msra.mxu0 0.0
  %1771 = vmatpush.msra.mxu0 0.0
  %1772 = vmatpush.msra.mxu0 0.0
  %1773 = vmatpush.msra.mxu0 0.0
  %1774 = vmatpush.msra.mxu0 %v798
  %1775 = vmatpush.msra.mxu0 %v796
  %1776 = vmatpush.msra.mxu0 %v794
  %1777 = vmatpush.msra.mxu0 %v792
  %1778 = vmatmul.f32.gmra.mxu0 %v1676
  %v1779 = vpop.f32.mrf.mxu0
  %v1780 = vadd.f32 0.0, %v1779
  %1781 = vdwg.mxu0
  %v1782 = vadd.f32 %v1761, %v1780
  %v1783 = vtanh.pop %v1782
  %s1784 = scalar_lea.vmem [#allocation5], 48
  %v1785 = vld [vmem:[%s1784] sm:$0xff]
  %1786 = vmatpush.msra.mxu0 0.0
  %1787 = vmatpush.msra.mxu0 0.0
  %1788 = vmatpush.msra.mxu0 0.0
  %1789 = vmatpush.msra.mxu0 0.0
  %1790 = vmatpush.msra.mxu0 0.0
  %1791 = vmatpush.msra.mxu0 0.0
  %1792 = vmatpush.msra.mxu0 0.0
  %1793 = vmatpush.msra.mxu0 0.0
  %1794 = vmatpush.msra.mxu0 0.0
  %1795 = vmatpush.msra.mxu0 0.0
  %1796 = vmatpush.msra.mxu0 0.0
  %1797 = vmatpush.msra.mxu0 0.0
  %1798 = vmatpush.msra.mxu0 %v833
  %1799 = vmatpush.msra.mxu0 %v831
  %1800 = vmatpush.msra.mxu0 %v829
  %1801 = vmatpush.msra.mxu0 %v827
  %1802 = vmatmul.f32.gmra.mxu0 %v1676
  %v1803 = vpop.f32.mrf.mxu0
  %v1804 = vadd.f32 0.0, %v1803
  %1805 = vdwg.mxu0
  %v1806 = vadd.f32 %v1785, %v1804
  %v1807 = vxor.u32 %v1806, 2147483648
  %v1808 = vmul.f32 %v1807, 1.442695
  %v1809 = vpow.pop %v1808
  %v1810 = vadd.f32 %v1809, 1.0
  %v1811 = vrcp.pop %v1810
  %v1812 = vmul.f32 %v1810, %v1811
  %v1813 = vsub.f32 1.0, %v1812
  %v1814 = vmul.f32 %v1811, %v1813
  %v1815 = vadd.f32 %v1811, %v1814
  %vm1816 = vweird.f32 %v1810
  %vm1817 = vweird.f32 %v1811
  %vm1818 = vmor %vm1816, %vm1817
  %v1819 = vsel %vm1818, %v1811, %v1815
  %v1820 = vand.u32 2147483647, %v1810
  %vm1821 = vcmp.eq.f32.partialorder %v1820, 8.507059e+37
  %v1822 = vand.u32 %v1810, 2147483648
  %v1823 = vor.u32 1.1754944e-38, %v1822
  %v1824 = vsel %vm1821, %v1823, %v1819
  %v1825 = vmul.f32 1.0, %v1824
  %v1826 = vmul.f32 %v1759, %v1670
  %v1827 = vmul.f32 %v1717, %v1783
  %v1828 = vadd.f32 %v1826, %v1827
  %v1829 = vtanh.pop %v1828
  %v1830 = vmul.f32 %v1825, %v1829
  %s1831 = scalar_lea.vmem [#allocation2], 56
  %v1832 = vld [vmem:[%s1831] sm:$0xff]
  %v1834 = vsel %vm465, %v1830, 0
  %1836 = vmatpush.msra.mxu0 0.0
  %1837 = vmatpush.msra.mxu0 0.0
  %1838 = vmatpush.msra.mxu0 0.0
  %1839 = vmatpush.msra.mxu0 0.0
  %1840 = vmatpush.msra.mxu0 0.0
  %1841 = vmatpush.msra.mxu0 0.0
  %1842 = vmatpush.msra.mxu0 0.0
  %1843 = vmatpush.msra.mxu0 0.0
  %1844 = vmatpush.msra.mxu0 0.0
  %1845 = vmatpush.msra.mxu0 0.0
  %1846 = vmatpush.msra.mxu0 0.0
  %1847 = vmatpush.msra.mxu0 0.0
  %1848 = vmatpush.msra.mxu0 %v348
  %1849 = vmatpush.msra.mxu0 %v347
  %1850 = vmatpush.msra.mxu0 %v346
  %1851 = vmatpush.msra.mxu0 %v345
  %1852 = vmatmul.f32.gmra.mxu0 %v1834
  %v1853 = vpop.f32.mrf.mxu0
  %v1854 = vadd.f32 0.0, %v1853
  %1855 = vdwg.mxu0
  %v1856 = vadd.f32 %v1832, %v1854
  %v1857 = vxor.u32 %v1856, 2147483648
  %v1858 = vmul.f32 %v1857, 1.442695
  %v1859 = vpow.pop %v1858
  %v1860 = vadd.f32 %v1859, 1.0
  %v1861 = vrcp.pop %v1860
  %v1862 = vmul.f32 %v1860, %v1861
  %v1863 = vsub.f32 1.0, %v1862
  %v1864 = vmul.f32 %v1861, %v1863
  %v1865 = vadd.f32 %v1861, %v1864
  %vm1866 = vweird.f32 %v1860
  %vm1867 = vweird.f32 %v1861
  %vm1868 = vmor %vm1866, %vm1867
  %v1869 = vsel %vm1868, %v1861, %v1865
  %v1870 = vand.u32 2147483647, %v1860
  %vm1871 = vcmp.eq.f32.partialorder %v1870, 8.507059e+37
  %v1872 = vand.u32 %v1860, 2147483648
  %v1873 = vor.u32 1.1754944e-38, %v1872
  %v1874 = vsel %vm1871, %v1873, %v1869
  %v1875 = vmul.f32 1.0, %v1874
  %s1876 = scalar_lea.vmem [#allocation3], 56
  %v1877 = vld [vmem:[%s1876] sm:$0xff]
  %1878 = vmatpush.msra.mxu0 0.0
  %1879 = vmatpush.msra.mxu0 0.0
  %1880 = vmatpush.msra.mxu0 0.0
  %1881 = vmatpush.msra.mxu0 0.0
  %1882 = vmatpush.msra.mxu0 0.0
  %1883 = vmatpush.msra.mxu0 0.0
  %1884 = vmatpush.msra.mxu0 0.0
  %1885 = vmatpush.msra.mxu0 0.0
  %1886 = vmatpush.msra.mxu0 0.0
  %1887 = vmatpush.msra.mxu0 0.0
  %1888 = vmatpush.msra.mxu0 0.0
  %1889 = vmatpush.msra.mxu0 0.0
  %1890 = vmatpush.msra.mxu0 %v745
  %1891 = vmatpush.msra.mxu0 %v743
  %1892 = vmatpush.msra.mxu0 %v741
  %1893 = vmatpush.msra.mxu0 %v739
  %1894 = vmatmul.f32.gmra.mxu0 %v1834
  %v1895 = vpop.f32.mrf.mxu0
  %v1896 = vadd.f32 0.0, %v1895
  %1897 = vdwg.mxu0
  %v1898 = vadd.f32 %v1877, %v1896
  %v1899 = vxor.u32 %v1898, 2147483648
  %v1900 = vmul.f32 %v1899, 1.442695
  %v1901 = vpow.pop %v1900
  %v1902 = vadd.f32 %v1901, 1.0
  %v1903 = vrcp.pop %v1902
  %v1904 = vmul.f32 %v1902, %v1903
  %v1905 = vsub.f32 1.0, %v1904
  %v1906 = vmul.f32 %v1903, %v1905
  %v1907 = vadd.f32 %v1903, %v1906
  %vm1908 = vweird.f32 %v1902
  %vm1909 = vweird.f32 %v1903
  %vm1910 = vmor %vm1908, %vm1909
  %v1911 = vsel %vm1910, %v1903, %v1907
  %v1912 = vand.u32 2147483647, %v1902
  %vm1913 = vcmp.eq.f32.partialorder %v1912, 8.507059e+37
  %v1914 = vand.u32 %v1902, 2147483648
  %v1915 = vor.u32 1.1754944e-38, %v1914
  %v1916 = vsel %vm1913, %v1915, %v1911
  %v1917 = vmul.f32 1.0, %v1916
  %s1918 = scalar_lea.vmem [#allocation4], 56
  %v1919 = vld [vmem:[%s1918] sm:$0xff]
  %1920 = vmatpush.msra.mxu0 0.0
  %1921 = vmatpush.msra.mxu0 0.0
  %1922 = vmatpush.msra.mxu0 0.0
  %1923 = vmatpush.msra.mxu0 0.0
  %1924 = vmatpush.msra.mxu0 0.0
  %1925 = vmatpush.msra.mxu0 0.0
  %1926 = vmatpush.msra.mxu0 0.0
  %1927 = vmatpush.msra.mxu0 0.0
  %1928 = vmatpush.msra.mxu0 0.0
  %1929 = vmatpush.msra.mxu0 0.0
  %1930 = vmatpush.msra.mxu0 0.0
  %1931 = vmatpush.msra.mxu0 0.0
  %1932 = vmatpush.msra.mxu0 %v798
  %1933 = vmatpush.msra.mxu0 %v796
  %1934 = vmatpush.msra.mxu0 %v794
  %1935 = vmatpush.msra.mxu0 %v792
  %1936 = vmatmul.f32.gmra.mxu0 %v1834
  %v1937 = vpop.f32.mrf.mxu0
  %v1938 = vadd.f32 0.0, %v1937
  %1939 = vdwg.mxu0
  %v1940 = vadd.f32 %v1919, %v1938
  %v1941 = vtanh.pop %v1940
  %s1942 = scalar_lea.vmem [#allocation5], 56
  %v1943 = vld [vmem:[%s1942] sm:$0xff]
  %1944 = vmatpush.msra.mxu0 0.0
  %1945 = vmatpush.msra.mxu0 0.0
  %1946 = vmatpush.msra.mxu0 0.0
  %1947 = vmatpush.msra.mxu0 0.0
  %1948 = vmatpush.msra.mxu0 0.0
  %1949 = vmatpush.msra.mxu0 0.0
  %1950 = vmatpush.msra.mxu0 0.0
  %1951 = vmatpush.msra.mxu0 0.0
  %1952 = vmatpush.msra.mxu0 0.0
  %1953 = vmatpush.msra.mxu0 0.0
  %1954 = vmatpush.msra.mxu0 0.0
  %1955 = vmatpush.msra.mxu0 0.0
  %1956 = vmatpush.msra.mxu0 %v833
  %1957 = vmatpush.msra.mxu0 %v831
  %1958 = vmatpush.msra.mxu0 %v829
  %1959 = vmatpush.msra.mxu0 %v827
  %1960 = vmatmul.f32.gmra.mxu0 %v1834
  %v1961 = vpop.f32.mrf.mxu0
  %v1962 = vadd.f32 0.0, %v1961
  %1963 = vdwg.mxu0
  %v1964 = vadd.f32 %v1943, %v1962
  %v1965 = vxor.u32 %v1964, 2147483648
  %v1966 = vmul.f32 %v1965, 1.442695
  %v1967 = vpow.pop %v1966
  %v1968 = vadd.f32 %v1967, 1.0
  %v1969 = vrcp.pop %v1968
  %v1970 = vmul.f32 %v1968, %v1969
  %v1971 = vsub.f32 1.0, %v1970
  %v1972 = vmul.f32 %v1969, %v1971
  %v1973 = vadd.f32 %v1969, %v1972
  %vm1974 = vweird.f32 %v1968
  %vm1975 = vweird.f32 %v1969
  %vm1976 = vmor %vm1974, %vm1975
  %v1977 = vsel %vm1976, %v1969, %v1973
  %v1978 = vand.u32 2147483647, %v1968
  %vm1979 = vcmp.eq.f32.partialorder %v1978, 8.507059e+37
  %v1980 = vand.u32 %v1968, 2147483648
  %v1981 = vor.u32 1.1754944e-38, %v1980
  %v1982 = vsel %vm1979, %v1981, %v1977
  %v1983 = vmul.f32 1.0, %v1982
  %v1984 = vmul.f32 %v1917, %v1828
  %v1985 = vmul.f32 %v1875, %v1941
  %v1986 = vadd.f32 %v1984, %v1985
  %v1987 = vtanh.pop %v1986
  %v1988 = vmul.f32 %v1983, %v1987
  %s1989 = scalar_lea.vmem [#allocation2], 64
  %v1990 = vld [vmem:[%s1989] sm:$0xff]
  %v1992 = vsel %vm465, %v1988, 0
  %1994 = vmatpush.msra.mxu0 0.0
  %1995 = vmatpush.msra.mxu0 0.0
  %1996 = vmatpush.msra.mxu0 0.0
  %1997 = vmatpush.msra.mxu0 0.0
  %1998 = vmatpush.msra.mxu0 0.0
  %1999 = vmatpush.msra.mxu0 0.0
  %2000 = vmatpush.msra.mxu0 0.0
  %2001 = vmatpush.msra.mxu0 0.0
  %2002 = vmatpush.msra.mxu0 0.0
  %2003 = vmatpush.msra.mxu0 0.0
  %2004 = vmatpush.msra.mxu0 0.0
  %2005 = vmatpush.msra.mxu0 0.0
  %2006 = vmatpush.msra.mxu0 %v348
  %2007 = vmatpush.msra.mxu0 %v347
  %2008 = vmatpush.msra.mxu0 %v346
  %2009 = vmatpush.msra.mxu0 %v345
  %2010 = vmatmul.f32.gmra.mxu0 %v1992
  %v2011 = vpop.f32.mrf.mxu0
  %v2012 = vadd.f32 0.0, %v2011
  %2013 = vdwg.mxu0
  %v2014 = vadd.f32 %v1990, %v2012
  %v2015 = vxor.u32 %v2014, 2147483648
  %v2016 = vmul.f32 %v2015, 1.442695
  %v2017 = vpow.pop %v2016
  %v2018 = vadd.f32 %v2017, 1.0
  %v2019 = vrcp.pop %v2018
  %v2020 = vmul.f32 %v2018, %v2019
  %v2021 = vsub.f32 1.0, %v2020
  %v2022 = vmul.f32 %v2019, %v2021
  %v2023 = vadd.f32 %v2019, %v2022
  %vm2024 = vweird.f32 %v2018
  %vm2025 = vweird.f32 %v2019
  %vm2026 = vmor %vm2024, %vm2025
  %v2027 = vsel %vm2026, %v2019, %v2023
  %v2028 = vand.u32 2147483647, %v2018
  %vm2029 = vcmp.eq.f32.partialorder %v2028, 8.507059e+37
  %v2030 = vand.u32 %v2018, 2147483648
  %v2031 = vor.u32 1.1754944e-38, %v2030
  %v2032 = vsel %vm2029, %v2031, %v2027
  %v2033 = vmul.f32 1.0, %v2032
  %s2034 = scalar_lea.vmem [#allocation3], 64
  %v2035 = vld [vmem:[%s2034] sm:$0xff]
  %2036 = vmatpush.msra.mxu0 0.0
  %2037 = vmatpush.msra.mxu0 0.0
  %2038 = vmatpush.msra.mxu0 0.0
  %2039 = vmatpush.msra.mxu0 0.0
  %2040 = vmatpush.msra.mxu0 0.0
  %2041 = vmatpush.msra.mxu0 0.0
  %2042 = vmatpush.msra.mxu0 0.0
  %2043 = vmatpush.msra.mxu0 0.0
  %2044 = vmatpush.msra.mxu0 0.0
  %2045 = vmatpush.msra.mxu0 0.0
  %2046 = vmatpush.msra.mxu0 0.0
  %2047 = vmatpush.msra.mxu0 0.0
  %2048 = vmatpush.msra.mxu0 %v745
  %2049 = vmatpush.msra.mxu0 %v743
  %2050 = vmatpush.msra.mxu0 %v741
  %2051 = vmatpush.msra.mxu0 %v739
  %2052 = vmatmul.f32.gmra.mxu0 %v1992
  %v2053 = vpop.f32.mrf.mxu0
  %v2054 = vadd.f32 0.0, %v2053
  %2055 = vdwg.mxu0
  %v2056 = vadd.f32 %v2035, %v2054
  %v2057 = vxor.u32 %v2056, 2147483648
  %v2058 = vmul.f32 %v2057, 1.442695
  %v2059 = vpow.pop %v2058
  %v2060 = vadd.f32 %v2059, 1.0
  %v2061 = vrcp.pop %v2060
  %v2062 = vmul.f32 %v2060, %v2061
  %v2063 = vsub.f32 1.0, %v2062
  %v2064 = vmul.f32 %v2061, %v2063
  %v2065 = vadd.f32 %v2061, %v2064
  %vm2066 = vweird.f32 %v2060
  %vm2067 = vweird.f32 %v2061
  %vm2068 = vmor %vm2066, %vm2067
  %v2069 = vsel %vm2068, %v2061, %v2065
  %v2070 = vand.u32 2147483647, %v2060
  %vm2071 = vcmp.eq.f32.partialorder %v2070, 8.507059e+37
  %v2072 = vand.u32 %v2060, 2147483648
  %v2073 = vor.u32 1.1754944e-38, %v2072
  %v2074 = vsel %vm2071, %v2073, %v2069
  %v2075 = vmul.f32 1.0, %v2074
  %s2076 = scalar_lea.vmem [#allocation4], 64
  %v2077 = vld [vmem:[%s2076] sm:$0xff]
  %2078 = vmatpush.msra.mxu0 0.0
  %2079 = vmatpush.msra.mxu0 0.0
  %2080 = vmatpush.msra.mxu0 0.0
  %2081 = vmatpush.msra.mxu0 0.0
  %2082 = vmatpush.msra.mxu0 0.0
  %2083 = vmatpush.msra.mxu0 0.0
  %2084 = vmatpush.msra.mxu0 0.0
  %2085 = vmatpush.msra.mxu0 0.0
  %2086 = vmatpush.msra.mxu0 0.0
  %2087 = vmatpush.msra.mxu0 0.0
  %2088 = vmatpush.msra.mxu0 0.0
  %2089 = vmatpush.msra.mxu0 0.0
  %2090 = vmatpush.msra.mxu0 %v798
  %2091 = vmatpush.msra.mxu0 %v796
  %2092 = vmatpush.msra.mxu0 %v794
  %2093 = vmatpush.msra.mxu0 %v792
  %2094 = vmatmul.f32.gmra.mxu0 %v1992
  %v2095 = vpop.f32.mrf.mxu0
  %v2096 = vadd.f32 0.0, %v2095
  %2097 = vdwg.mxu0
  %v2098 = vadd.f32 %v2077, %v2096
  %v2099 = vtanh.pop %v2098
  %s2100 = scalar_lea.vmem [#allocation5], 64
  %v2101 = vld [vmem:[%s2100] sm:$0xff]
  %2102 = vmatpush.msra.mxu0 0.0
  %2103 = vmatpush.msra.mxu0 0.0
  %2104 = vmatpush.msra.mxu0 0.0
  %2105 = vmatpush.msra.mxu0 0.0
  %2106 = vmatpush.msra.mxu0 0.0
  %2107 = vmatpush.msra.mxu0 0.0
  %2108 = vmatpush.msra.mxu0 0.0
  %2109 = vmatpush.msra.mxu0 0.0
  %2110 = vmatpush.msra.mxu0 0.0
  %2111 = vmatpush.msra.mxu0 0.0
  %2112 = vmatpush.msra.mxu0 0.0
  %2113 = vmatpush.msra.mxu0 0.0
  %2114 = vmatpush.msra.mxu0 %v833
  %2115 = vmatpush.msra.mxu0 %v831
  %2116 = vmatpush.msra.mxu0 %v829
  %2117 = vmatpush.msra.mxu0 %v827
  %2118 = vmatmul.f32.gmra.mxu0 %v1992
  %v2119 = vpop.f32.mrf.mxu0
  %v2120 = vadd.f32 0.0, %v2119
  %2121 = vdwg.mxu0
  %v2122 = vadd.f32 %v2101, %v2120
  %v2123 = vxor.u32 %v2122, 2147483648
  %v2124 = vmul.f32 %v2123, 1.442695
  %v2125 = vpow.pop %v2124
  %v2126 = vadd.f32 %v2125, 1.0
  %v2127 = vrcp.pop %v2126
  %v2128 = vmul.f32 %v2126, %v2127
  %v2129 = vsub.f32 1.0, %v2128
  %v2130 = vmul.f32 %v2127, %v2129
  %v2131 = vadd.f32 %v2127, %v2130
  %vm2132 = vweird.f32 %v2126
  %vm2133 = vweird.f32 %v2127
  %vm2134 = vmor %vm2132, %vm2133
  %v2135 = vsel %vm2134, %v2127, %v2131
  %v2136 = vand.u32 2147483647, %v2126
  %vm2137 = vcmp.eq.f32.partialorder %v2136, 8.507059e+37
  %v2138 = vand.u32 %v2126, 2147483648
  %v2139 = vor.u32 1.1754944e-38, %v2138
  %v2140 = vsel %vm2137, %v2139, %v2135
  %v2141 = vmul.f32 1.0, %v2140
  %v2142 = vmul.f32 %v2075, %v1986
  %v2143 = vmul.f32 %v2033, %v2099
  %v2144 = vadd.f32 %v2142, %v2143
  %v2145 = vtanh.pop %v2144
  %v2146 = vmul.f32 %v2141, %v2145
  %s2147 = scalar_lea.vmem [#allocation2], 72
  %v2148 = vld [vmem:[%s2147] sm:$0xff]
  %v2150 = vsel %vm465, %v2146, 0
  %2152 = vmatpush.msra.mxu0 0.0
  %2153 = vmatpush.msra.mxu0 0.0
  %2154 = vmatpush.msra.mxu0 0.0
  %2155 = vmatpush.msra.mxu0 0.0
  %2156 = vmatpush.msra.mxu0 0.0
  %2157 = vmatpush.msra.mxu0 0.0
  %2158 = vmatpush.msra.mxu0 0.0
  %2159 = vmatpush.msra.mxu0 0.0
  %2160 = vmatpush.msra.mxu0 0.0
  %2161 = vmatpush.msra.mxu0 0.0
  %2162 = vmatpush.msra.mxu0 0.0
  %2163 = vmatpush.msra.mxu0 0.0
  %2164 = vmatpush.msra.mxu0 %v348
  %2165 = vmatpush.msra.mxu0 %v347
  %2166 = vmatpush.msra.mxu0 %v346
  %2167 = vmatpush.msra.mxu0 %v345
  %2168 = vmatmul.f32.gmra.mxu0 %v2150
  %v2169 = vpop.f32.mrf.mxu0
  %v2170 = vadd.f32 0.0, %v2169
  %2171 = vdwg.mxu0
  %v2172 = vadd.f32 %v2148, %v2170
  %v2173 = vxor.u32 %v2172, 2147483648
  %v2174 = vmul.f32 %v2173, 1.442695
  %v2175 = vpow.pop %v2174
  %v2176 = vadd.f32 %v2175, 1.0
  %v2177 = vrcp.pop %v2176
  %v2178 = vmul.f32 %v2176, %v2177
  %v2179 = vsub.f32 1.0, %v2178
  %v2180 = vmul.f32 %v2177, %v2179
  %v2181 = vadd.f32 %v2177, %v2180
  %vm2182 = vweird.f32 %v2176
  %vm2183 = vweird.f32 %v2177
  %vm2184 = vmor %vm2182, %vm2183
  %v2185 = vsel %vm2184, %v2177, %v2181
  %v2186 = vand.u32 2147483647, %v2176
  %vm2187 = vcmp.eq.f32.partialorder %v2186, 8.507059e+37
  %v2188 = vand.u32 %v2176, 2147483648
  %v2189 = vor.u32 1.1754944e-38, %v2188
  %v2190 = vsel %vm2187, %v2189, %v2185
  %v2191 = vmul.f32 1.0, %v2190
  %s2192 = scalar_lea.vmem [#allocation3], 72
  %v2193 = vld [vmem:[%s2192] sm:$0xff]
  %2194 = vmatpush.msra.mxu0 0.0
  %2195 = vmatpush.msra.mxu0 0.0
  %2196 = vmatpush.msra.mxu0 0.0
  %2197 = vmatpush.msra.mxu0 0.0
  %2198 = vmatpush.msra.mxu0 0.0
  %2199 = vmatpush.msra.mxu0 0.0
  %2200 = vmatpush.msra.mxu0 0.0
  %2201 = vmatpush.msra.mxu0 0.0
  %2202 = vmatpush.msra.mxu0 0.0
  %2203 = vmatpush.msra.mxu0 0.0
  %2204 = vmatpush.msra.mxu0 0.0
  %2205 = vmatpush.msra.mxu0 0.0
  %2206 = vmatpush.msra.mxu0 %v745
  %2207 = vmatpush.msra.mxu0 %v743
  %2208 = vmatpush.msra.mxu0 %v741
  %2209 = vmatpush.msra.mxu0 %v739
  %2210 = vmatmul.f32.gmra.mxu0 %v2150
  %v2211 = vpop.f32.mrf.mxu0
  %v2212 = vadd.f32 0.0, %v2211
  %2213 = vdwg.mxu0
  %v2214 = vadd.f32 %v2193, %v2212
  %v2215 = vxor.u32 %v2214, 2147483648
  %v2216 = vmul.f32 %v2215, 1.442695
  %v2217 = vpow.pop %v2216
  %v2218 = vadd.f32 %v2217, 1.0
  %v2219 = vrcp.pop %v2218
  %v2220 = vmul.f32 %v2218, %v2219
  %v2221 = vsub.f32 1.0, %v2220
  %v2222 = vmul.f32 %v2219, %v2221
  %v2223 = vadd.f32 %v2219, %v2222
  %vm2224 = vweird.f32 %v2218
  %vm2225 = vweird.f32 %v2219
  %vm2226 = vmor %vm2224, %vm2225
  %v2227 = vsel %vm2226, %v2219, %v2223
  %v2228 = vand.u32 2147483647, %v2218
  %vm2229 = vcmp.eq.f32.partialorder %v2228, 8.507059e+37
  %v2230 = vand.u32 %v2218, 2147483648
  %v2231 = vor.u32 1.1754944e-38, %v2230
  %v2232 = vsel %vm2229, %v2231, %v2227
  %v2233 = vmul.f32 1.0, %v2232
  %s2234 = scalar_lea.vmem [#allocation4], 72
  %v2235 = vld [vmem:[%s2234] sm:$0xff]
  %2236 = vmatpush.msra.mxu0 0.0
  %2237 = vmatpush.msra.mxu0 0.0
  %2238 = vmatpush.msra.mxu0 0.0
  %2239 = vmatpush.msra.mxu0 0.0
  %2240 = vmatpush.msra.mxu0 0.0
  %2241 = vmatpush.msra.mxu0 0.0
  %2242 = vmatpush.msra.mxu0 0.0
  %2243 = vmatpush.msra.mxu0 0.0
  %2244 = vmatpush.msra.mxu0 0.0
  %2245 = vmatpush.msra.mxu0 0.0
  %2246 = vmatpush.msra.mxu0 0.0
  %2247 = vmatpush.msra.mxu0 0.0
  %2248 = vmatpush.msra.mxu0 %v798
  %2249 = vmatpush.msra.mxu0 %v796
  %2250 = vmatpush.msra.mxu0 %v794
  %2251 = vmatpush.msra.mxu0 %v792
  %2252 = vmatmul.f32.gmra.mxu0 %v2150
  %v2253 = vpop.f32.mrf.mxu0
  %v2254 = vadd.f32 0.0, %v2253
  %2255 = vdwg.mxu0
  %v2256 = vadd.f32 %v2235, %v2254
  %v2257 = vtanh.pop %v2256
  %s2258 = scalar_lea.vmem [#allocation5], 72
  %v2259 = vld [vmem:[%s2258] sm:$0xff]
  %2260 = vmatpush.msra.mxu0 0.0
  %2261 = vmatpush.msra.mxu0 0.0
  %2262 = vmatpush.msra.mxu0 0.0
  %2263 = vmatpush.msra.mxu0 0.0
  %2264 = vmatpush.msra.mxu0 0.0
  %2265 = vmatpush.msra.mxu0 0.0
  %2266 = vmatpush.msra.mxu0 0.0
  %2267 = vmatpush.msra.mxu0 0.0
  %2268 = vmatpush.msra.mxu0 0.0
  %2269 = vmatpush.msra.mxu0 0.0
  %2270 = vmatpush.msra.mxu0 0.0
  %2271 = vmatpush.msra.mxu0 0.0
  %2272 = vmatpush.msra.mxu0 %v833
  %2273 = vmatpush.msra.mxu0 %v831
  %2274 = vmatpush.msra.mxu0 %v829
  %2275 = vmatpush.msra.mxu0 %v827
  %2276 = vmatmul.f32.gmra.mxu0 %v2150
  %v2277 = vpop.f32.mrf.mxu0
  %v2278 = vadd.f32 0.0, %v2277
  %2279 = vdwg.mxu0
  %v2280 = vadd.f32 %v2259, %v2278
  %v2281 = vxor.u32 %v2280, 2147483648
  %v2282 = vmul.f32 %v2281, 1.442695
  %v2283 = vpow.pop %v2282
  %v2284 = vadd.f32 %v2283, 1.0
  %v2285 = vrcp.pop %v2284
  %v2286 = vmul.f32 %v2284, %v2285
  %v2287 = vsub.f32 1.0, %v2286
  %v2288 = vmul.f32 %v2285, %v2287
  %v2289 = vadd.f32 %v2285, %v2288
  %vm2290 = vweird.f32 %v2284
  %vm2291 = vweird.f32 %v2285
  %vm2292 = vmor %vm2290, %vm2291
  %v2293 = vsel %vm2292, %v2285, %v2289
  %v2294 = vand.u32 2147483647, %v2284
  %vm2295 = vcmp.eq.f32.partialorder %v2294, 8.507059e+37
  %v2296 = vand.u32 %v2284, 2147483648
  %v2297 = vor.u32 1.1754944e-38, %v2296
  %v2298 = vsel %vm2295, %v2297, %v2293
  %v2299 = vmul.f32 1.0, %v2298
  %v2300 = vmul.f32 %v2233, %v2144
  %v2301 = vmul.f32 %v2191, %v2257
  %v2302 = vadd.f32 %v2300, %v2301
  %v2303 = vtanh.pop %v2302
  %v2304 = vmul.f32 %v2299, %v2303
  %s2305 = scalar_lea.vmem [#allocation2], 80
  %v2306 = vld [vmem:[%s2305] sm:$0xff]
  %v2308 = vsel %vm465, %v2304, 0
  %2310 = vmatpush.msra.mxu0 0.0
  %2311 = vmatpush.msra.mxu0 0.0
  %2312 = vmatpush.msra.mxu0 0.0
  %2313 = vmatpush.msra.mxu0 0.0
  %2314 = vmatpush.msra.mxu0 0.0
  %2315 = vmatpush.msra.mxu0 0.0
  %2316 = vmatpush.msra.mxu0 0.0
  %2317 = vmatpush.msra.mxu0 0.0
  %2318 = vmatpush.msra.mxu0 0.0
  %2319 = vmatpush.msra.mxu0 0.0
  %2320 = vmatpush.msra.mxu0 0.0
  %2321 = vmatpush.msra.mxu0 0.0
  %2322 = vmatpush.msra.mxu0 %v348
  %2323 = vmatpush.msra.mxu0 %v347
  %2324 = vmatpush.msra.mxu0 %v346
  %2325 = vmatpush.msra.mxu0 %v345
  %2326 = vmatmul.f32.gmra.mxu0 %v2308
  %v2327 = vpop.f32.mrf.mxu0
  %v2328 = vadd.f32 0.0, %v2327
  %2329 = vdwg.mxu0
  %v2330 = vadd.f32 %v2306, %v2328
  %v2331 = vxor.u32 %v2330, 2147483648
  %v2332 = vmul.f32 %v2331, 1.442695
  %v2333 = vpow.pop %v2332
  %v2334 = vadd.f32 %v2333, 1.0
  %v2335 = vrcp.pop %v2334
  %v2336 = vmul.f32 %v2334, %v2335
  %v2337 = vsub.f32 1.0, %v2336
  %v2338 = vmul.f32 %v2335, %v2337
  %v2339 = vadd.f32 %v2335, %v2338
  %vm2340 = vweird.f32 %v2334
  %vm2341 = vweird.f32 %v2335
  %vm2342 = vmor %vm2340, %vm2341
  %v2343 = vsel %vm2342, %v2335, %v2339
  %v2344 = vand.u32 2147483647, %v2334
  %vm2345 = vcmp.eq.f32.partialorder %v2344, 8.507059e+37
  %v2346 = vand.u32 %v2334, 2147483648
  %v2347 = vor.u32 1.1754944e-38, %v2346
  %v2348 = vsel %vm2345, %v2347, %v2343
  %v2349 = vmul.f32 1.0, %v2348
  %s2350 = scalar_lea.vmem [#allocation3], 80
  %v2351 = vld [vmem:[%s2350] sm:$0xff]
  %2352 = vmatpush.msra.mxu0 0.0
  %2353 = vmatpush.msra.mxu0 0.0
  %2354 = vmatpush.msra.mxu0 0.0
  %2355 = vmatpush.msra.mxu0 0.0
  %2356 = vmatpush.msra.mxu0 0.0
  %2357 = vmatpush.msra.mxu0 0.0
  %2358 = vmatpush.msra.mxu0 0.0
  %2359 = vmatpush.msra.mxu0 0.0
  %2360 = vmatpush.msra.mxu0 0.0
  %2361 = vmatpush.msra.mxu0 0.0
  %2362 = vmatpush.msra.mxu0 0.0
  %2363 = vmatpush.msra.mxu0 0.0
  %2364 = vmatpush.msra.mxu0 %v745
  %2365 = vmatpush.msra.mxu0 %v743
  %2366 = vmatpush.msra.mxu0 %v741
  %2367 = vmatpush.msra.mxu0 %v739
  %2368 = vmatmul.f32.gmra.mxu0 %v2308
  %v2369 = vpop.f32.mrf.mxu0
  %v2370 = vadd.f32 0.0, %v2369
  %2371 = vdwg.mxu0
  %v2372 = vadd.f32 %v2351, %v2370
  %v2373 = vxor.u32 %v2372, 2147483648
  %v2374 = vmul.f32 %v2373, 1.442695
  %v2375 = vpow.pop %v2374
  %v2376 = vadd.f32 %v2375, 1.0
  %v2377 = vrcp.pop %v2376
  %v2378 = vmul.f32 %v2376, %v2377
  %v2379 = vsub.f32 1.0, %v2378
  %v2380 = vmul.f32 %v2377, %v2379
  %v2381 = vadd.f32 %v2377, %v2380
  %vm2382 = vweird.f32 %v2376
  %vm2383 = vweird.f32 %v2377
  %vm2384 = vmor %vm2382, %vm2383
  %v2385 = vsel %vm2384, %v2377, %v2381
  %v2386 = vand.u32 2147483647, %v2376
  %vm2387 = vcmp.eq.f32.partialorder %v2386, 8.507059e+37
  %v2388 = vand.u32 %v2376, 2147483648
  %v2389 = vor.u32 1.1754944e-38, %v2388
  %v2390 = vsel %vm2387, %v2389, %v2385
  %v2391 = vmul.f32 1.0, %v2390
  %s2392 = scalar_lea.vmem [#allocation4], 80
  %v2393 = vld [vmem:[%s2392] sm:$0xff]
  %2394 = vmatpush.msra.mxu0 0.0
  %2395 = vmatpush.msra.mxu0 0.0
  %2396 = vmatpush.msra.mxu0 0.0
  %2397 = vmatpush.msra.mxu0 0.0
  %2398 = vmatpush.msra.mxu0 0.0
  %2399 = vmatpush.msra.mxu0 0.0
  %2400 = vmatpush.msra.mxu0 0.0
  %2401 = vmatpush.msra.mxu0 0.0
  %2402 = vmatpush.msra.mxu0 0.0
  %2403 = vmatpush.msra.mxu0 0.0
  %2404 = vmatpush.msra.mxu0 0.0
  %2405 = vmatpush.msra.mxu0 0.0
  %2406 = vmatpush.msra.mxu0 %v798
  %2407 = vmatpush.msra.mxu0 %v796
  %2408 = vmatpush.msra.mxu0 %v794
  %2409 = vmatpush.msra.mxu0 %v792
  %2410 = vmatmul.f32.gmra.mxu0 %v2308
  %v2411 = vpop.f32.mrf.mxu0
  %v2412 = vadd.f32 0.0, %v2411
  %2413 = vdwg.mxu0
  %v2414 = vadd.f32 %v2393, %v2412
  %v2415 = vtanh.pop %v2414
  %s2416 = scalar_lea.vmem [#allocation5], 80
  %v2417 = vld [vmem:[%s2416] sm:$0xff]
  %2418 = vmatpush.msra.mxu0 0.0
  %2419 = vmatpush.msra.mxu0 0.0
  %2420 = vmatpush.msra.mxu0 0.0
  %2421 = vmatpush.msra.mxu0 0.0
  %2422 = vmatpush.msra.mxu0 0.0
  %2423 = vmatpush.msra.mxu0 0.0
  %2424 = vmatpush.msra.mxu0 0.0
  %2425 = vmatpush.msra.mxu0 0.0
  %2426 = vmatpush.msra.mxu0 0.0
  %2427 = vmatpush.msra.mxu0 0.0
  %2428 = vmatpush.msra.mxu0 0.0
  %2429 = vmatpush.msra.mxu0 0.0
  %2430 = vmatpush.msra.mxu0 %v833
  %2431 = vmatpush.msra.mxu0 %v831
  %2432 = vmatpush.msra.mxu0 %v829
  %2433 = vmatpush.msra.mxu0 %v827
  %2434 = vmatmul.f32.gmra.mxu0 %v2308
  %v2435 = vpop.f32.mrf.mxu0
  %v2436 = vadd.f32 0.0, %v2435
  %2437 = vdwg.mxu0
  %v2438 = vadd.f32 %v2417, %v2436
  %v2439 = vxor.u32 %v2438, 2147483648
  %v2440 = vmul.f32 %v2439, 1.442695
  %v2441 = vpow.pop %v2440
  %v2442 = vadd.f32 %v2441, 1.0
  %v2443 = vrcp.pop %v2442
  %v2444 = vmul.f32 %v2442, %v2443
  %v2445 = vsub.f32 1.0, %v2444
  %v2446 = vmul.f32 %v2443, %v2445
  %v2447 = vadd.f32 %v2443, %v2446
  %vm2448 = vweird.f32 %v2442
  %vm2449 = vweird.f32 %v2443
  %vm2450 = vmor %vm2448, %vm2449
  %v2451 = vsel %vm2450, %v2443, %v2447
  %v2452 = vand.u32 2147483647, %v2442
  %vm2453 = vcmp.eq.f32.partialorder %v2452, 8.507059e+37
  %v2454 = vand.u32 %v2442, 2147483648
  %v2455 = vor.u32 1.1754944e-38, %v2454
  %v2456 = vsel %vm2453, %v2455, %v2451
  %v2457 = vmul.f32 1.0, %v2456
  %v2458 = vmul.f32 %v2391, %v2302
  %v2459 = vmul.f32 %v2349, %v2415
  %v2460 = vadd.f32 %v2458, %v2459
  %v2461 = vtanh.pop %v2460
  %v2462 = vmul.f32 %v2457, %v2461
  %s2463 = scalar_lea.vmem [#allocation2], 88
  %v2464 = vld [vmem:[%s2463] sm:$0xff]
  %v2466 = vsel %vm465, %v2462, 0
  %2468 = vmatpush.msra.mxu0 0.0
  %2469 = vmatpush.msra.mxu0 0.0
  %2470 = vmatpush.msra.mxu0 0.0
  %2471 = vmatpush.msra.mxu0 0.0
  %2472 = vmatpush.msra.mxu0 0.0
  %2473 = vmatpush.msra.mxu0 0.0
  %2474 = vmatpush.msra.mxu0 0.0
  %2475 = vmatpush.msra.mxu0 0.0
  %2476 = vmatpush.msra.mxu0 0.0
  %2477 = vmatpush.msra.mxu0 0.0
  %2478 = vmatpush.msra.mxu0 0.0
  %2479 = vmatpush.msra.mxu0 0.0
  %2480 = vmatpush.msra.mxu0 %v348
  %2481 = vmatpush.msra.mxu0 %v347
  %2482 = vmatpush.msra.mxu0 %v346
  %2483 = vmatpush.msra.mxu0 %v345
  %2484 = vmatmul.f32.gmra.mxu0 %v2466
  %v2485 = vpop.f32.mrf.mxu0
  %v2486 = vadd.f32 0.0, %v2485
  %2487 = vdwg.mxu0
  %v2488 = vadd.f32 %v2464, %v2486
  %v2489 = vxor.u32 %v2488, 2147483648
  %v2490 = vmul.f32 %v2489, 1.442695
  %v2491 = vpow.pop %v2490
  %v2492 = vadd.f32 %v2491, 1.0
  %v2493 = vrcp.pop %v2492
  %v2494 = vmul.f32 %v2492, %v2493
  %v2495 = vsub.f32 1.0, %v2494
  %v2496 = vmul.f32 %v2493, %v2495
  %v2497 = vadd.f32 %v2493, %v2496
  %vm2498 = vweird.f32 %v2492
  %vm2499 = vweird.f32 %v2493
  %vm2500 = vmor %vm2498, %vm2499
  %v2501 = vsel %vm2500, %v2493, %v2497
  %v2502 = vand.u32 2147483647, %v2492
  %vm2503 = vcmp.eq.f32.partialorder %v2502, 8.507059e+37
  %v2504 = vand.u32 %v2492, 2147483648
  %v2505 = vor.u32 1.1754944e-38, %v2504
  %v2506 = vsel %vm2503, %v2505, %v2501
  %v2507 = vmul.f32 1.0, %v2506
  %s2508 = scalar_lea.vmem [#allocation3], 88
  %v2509 = vld [vmem:[%s2508] sm:$0xff]
  %2510 = vmatpush.msra.mxu0 0.0
  %2511 = vmatpush.msra.mxu0 0.0
  %2512 = vmatpush.msra.mxu0 0.0
  %2513 = vmatpush.msra.mxu0 0.0
  %2514 = vmatpush.msra.mxu0 0.0
  %2515 = vmatpush.msra.mxu0 0.0
  %2516 = vmatpush.msra.mxu0 0.0
  %2517 = vmatpush.msra.mxu0 0.0
  %2518 = vmatpush.msra.mxu0 0.0
  %2519 = vmatpush.msra.mxu0 0.0
  %2520 = vmatpush.msra.mxu0 0.0
  %2521 = vmatpush.msra.mxu0 0.0
  %2522 = vmatpush.msra.mxu0 %v745
  %2523 = vmatpush.msra.mxu0 %v743
  %2524 = vmatpush.msra.mxu0 %v741
  %2525 = vmatpush.msra.mxu0 %v739
  %2526 = vmatmul.f32.gmra.mxu0 %v2466
  %v2527 = vpop.f32.mrf.mxu0
  %v2528 = vadd.f32 0.0, %v2527
  %2529 = vdwg.mxu0
  %v2530 = vadd.f32 %v2509, %v2528
  %v2531 = vxor.u32 %v2530, 2147483648
  %v2532 = vmul.f32 %v2531, 1.442695
  %v2533 = vpow.pop %v2532
  %v2534 = vadd.f32 %v2533, 1.0
  %v2535 = vrcp.pop %v2534
  %v2536 = vmul.f32 %v2534, %v2535
  %v2537 = vsub.f32 1.0, %v2536
  %v2538 = vmul.f32 %v2535, %v2537
  %v2539 = vadd.f32 %v2535, %v2538
  %vm2540 = vweird.f32 %v2534
  %vm2541 = vweird.f32 %v2535
  %vm2542 = vmor %vm2540, %vm2541
  %v2543 = vsel %vm2542, %v2535, %v2539
  %v2544 = vand.u32 2147483647, %v2534
  %vm2545 = vcmp.eq.f32.partialorder %v2544, 8.507059e+37
  %v2546 = vand.u32 %v2534, 2147483648
  %v2547 = vor.u32 1.1754944e-38, %v2546
  %v2548 = vsel %vm2545, %v2547, %v2543
  %v2549 = vmul.f32 1.0, %v2548
  %s2550 = scalar_lea.vmem [#allocation4], 88
  %v2551 = vld [vmem:[%s2550] sm:$0xff]
  %2552 = vmatpush.msra.mxu0 0.0
  %2553 = vmatpush.msra.mxu0 0.0
  %2554 = vmatpush.msra.mxu0 0.0
  %2555 = vmatpush.msra.mxu0 0.0
  %2556 = vmatpush.msra.mxu0 0.0
  %2557 = vmatpush.msra.mxu0 0.0
  %2558 = vmatpush.msra.mxu0 0.0
  %2559 = vmatpush.msra.mxu0 0.0
  %2560 = vmatpush.msra.mxu0 0.0
  %2561 = vmatpush.msra.mxu0 0.0
  %2562 = vmatpush.msra.mxu0 0.0
  %2563 = vmatpush.msra.mxu0 0.0
  %2564 = vmatpush.msra.mxu0 %v798
  %2565 = vmatpush.msra.mxu0 %v796
  %2566 = vmatpush.msra.mxu0 %v794
  %2567 = vmatpush.msra.mxu0 %v792
  %2568 = vmatmul.f32.gmra.mxu0 %v2466
  %v2569 = vpop.f32.mrf.mxu0
  %v2570 = vadd.f32 0.0, %v2569
  %2571 = vdwg.mxu0
  %v2572 = vadd.f32 %v2551, %v2570
  %v2573 = vtanh.pop %v2572
  %s2574 = scalar_lea.vmem [#allocation5], 88
  %v2575 = vld [vmem:[%s2574] sm:$0xff]
  %2576 = vmatpush.msra.mxu0 0.0
  %2577 = vmatpush.msra.mxu0 0.0
  %2578 = vmatpush.msra.mxu0 0.0
  %2579 = vmatpush.msra.mxu0 0.0
  %2580 = vmatpush.msra.mxu0 0.0
  %2581 = vmatpush.msra.mxu0 0.0
  %2582 = vmatpush.msra.mxu0 0.0
  %2583 = vmatpush.msra.mxu0 0.0
  %2584 = vmatpush.msra.mxu0 0.0
  %2585 = vmatpush.msra.mxu0 0.0
  %2586 = vmatpush.msra.mxu0 0.0
  %2587 = vmatpush.msra.mxu0 0.0
  %2588 = vmatpush.msra.mxu0 %v833
  %2589 = vmatpush.msra.mxu0 %v831
  %2590 = vmatpush.msra.mxu0 %v829
  %2591 = vmatpush.msra.mxu0 %v827
  %2592 = vmatmul.f32.gmra.mxu0 %v2466
  %v2593 = vpop.f32.mrf.mxu0
  %v2594 = vadd.f32 0.0, %v2593
  %2595 = vdwg.mxu0
  %v2596 = vadd.f32 %v2575, %v2594
  %v2597 = vxor.u32 %v2596, 2147483648
  %v2598 = vmul.f32 %v2597, 1.442695
  %v2599 = vpow.pop %v2598
  %v2600 = vadd.f32 %v2599, 1.0
  %v2601 = vrcp.pop %v2600
  %v2602 = vmul.f32 %v2600, %v2601
  %v2603 = vsub.f32 1.0, %v2602
  %v2604 = vmul.f32 %v2601, %v2603
  %v2605 = vadd.f32 %v2601, %v2604
  %vm2606 = vweird.f32 %v2600
  %vm2607 = vweird.f32 %v2601
  %vm2608 = vmor %vm2606, %vm2607
  %v2609 = vsel %vm2608, %v2601, %v2605
  %v2610 = vand.u32 2147483647, %v2600
  %vm2611 = vcmp.eq.f32.partialorder %v2610, 8.507059e+37
  %v2612 = vand.u32 %v2600, 2147483648
  %v2613 = vor.u32 1.1754944e-38, %v2612
  %v2614 = vsel %vm2611, %v2613, %v2609
  %v2615 = vmul.f32 1.0, %v2614
  %v2616 = vmul.f32 %v2549, %v2460
  %v2617 = vmul.f32 %v2507, %v2573
  %v2618 = vadd.f32 %v2616, %v2617
  %v2619 = vtanh.pop %v2618
  %v2620 = vmul.f32 %v2615, %v2619
  %s2621 = scalar_lea.vmem [#allocation2], 96
  %v2622 = vld [vmem:[%s2621] sm:$0xff]
  %v2624 = vsel %vm465, %v2620, 0
  %2626 = vmatpush.msra.mxu0 0.0
  %2627 = vmatpush.msra.mxu0 0.0
  %2628 = vmatpush.msra.mxu0 0.0
  %2629 = vmatpush.msra.mxu0 0.0
  %2630 = vmatpush.msra.mxu0 0.0
  %2631 = vmatpush.msra.mxu0 0.0
  %2632 = vmatpush.msra.mxu0 0.0
  %2633 = vmatpush.msra.mxu0 0.0
  %2634 = vmatpush.msra.mxu0 0.0
  %2635 = vmatpush.msra.mxu0 0.0
  %2636 = vmatpush.msra.mxu0 0.0
  %2637 = vmatpush.msra.mxu0 0.0
  %2638 = vmatpush.msra.mxu0 %v348
  %2639 = vmatpush.msra.mxu0 %v347
  %2640 = vmatpush.msra.mxu0 %v346
  %2641 = vmatpush.msra.mxu0 %v345
  %2642 = vmatmul.f32.gmra.mxu0 %v2624
  %v2643 = vpop.f32.mrf.mxu0
  %v2644 = vadd.f32 0.0, %v2643
  %2645 = vdwg.mxu0
  %v2646 = vadd.f32 %v2622, %v2644
  %v2647 = vxor.u32 %v2646, 2147483648
  %v2648 = vmul.f32 %v2647, 1.442695
  %v2649 = vpow.pop %v2648
  %v2650 = vadd.f32 %v2649, 1.0
  %v2651 = vrcp.pop %v2650
  %v2652 = vmul.f32 %v2650, %v2651
  %v2653 = vsub.f32 1.0, %v2652
  %v2654 = vmul.f32 %v2651, %v2653
  %v2655 = vadd.f32 %v2651, %v2654
  %vm2656 = vweird.f32 %v2650
  %vm2657 = vweird.f32 %v2651
  %vm2658 = vmor %vm2656, %vm2657
  %v2659 = vsel %vm2658, %v2651, %v2655
  %v2660 = vand.u32 2147483647, %v2650
  %vm2661 = vcmp.eq.f32.partialorder %v2660, 8.507059e+37
  %v2662 = vand.u32 %v2650, 2147483648
  %v2663 = vor.u32 1.1754944e-38, %v2662
  %v2664 = vsel %vm2661, %v2663, %v2659
  %v2665 = vmul.f32 1.0, %v2664
  %s2666 = scalar_lea.vmem [#allocation3], 96
  %v2667 = vld [vmem:[%s2666] sm:$0xff]
  %2668 = vmatpush.msra.mxu0 0.0
  %2669 = vmatpush.msra.mxu0 0.0
  %2670 = vmatpush.msra.mxu0 0.0
  %2671 = vmatpush.msra.mxu0 0.0
  %2672 = vmatpush.msra.mxu0 0.0
  %2673 = vmatpush.msra.mxu0 0.0
  %2674 = vmatpush.msra.mxu0 0.0
  %2675 = vmatpush.msra.mxu0 0.0
  %2676 = vmatpush.msra.mxu0 0.0
  %2677 = vmatpush.msra.mxu0 0.0
  %2678 = vmatpush.msra.mxu0 0.0
  %2679 = vmatpush.msra.mxu0 0.0
  %2680 = vmatpush.msra.mxu0 %v745
  %2681 = vmatpush.msra.mxu0 %v743
  %2682 = vmatpush.msra.mxu0 %v741
  %2683 = vmatpush.msra.mxu0 %v739
  %2684 = vmatmul.f32.gmra.mxu0 %v2624
  %v2685 = vpop.f32.mrf.mxu0
  %v2686 = vadd.f32 0.0, %v2685
  %2687 = vdwg.mxu0
  %v2688 = vadd.f32 %v2667, %v2686
  %v2689 = vxor.u32 %v2688, 2147483648
  %v2690 = vmul.f32 %v2689, 1.442695
  %v2691 = vpow.pop %v2690
  %v2692 = vadd.f32 %v2691, 1.0
  %v2693 = vrcp.pop %v2692
  %v2694 = vmul.f32 %v2692, %v2693
  %v2695 = vsub.f32 1.0, %v2694
  %v2696 = vmul.f32 %v2693, %v2695
  %v2697 = vadd.f32 %v2693, %v2696
  %vm2698 = vweird.f32 %v2692
  %vm2699 = vweird.f32 %v2693
  %vm2700 = vmor %vm2698, %vm2699
  %v2701 = vsel %vm2700, %v2693, %v2697
  %v2702 = vand.u32 2147483647, %v2692
  %vm2703 = vcmp.eq.f32.partialorder %v2702, 8.507059e+37
  %v2704 = vand.u32 %v2692, 2147483648
  %v2705 = vor.u32 1.1754944e-38, %v2704
  %v2706 = vsel %vm2703, %v2705, %v2701
  %v2707 = vmul.f32 1.0, %v2706
  %s2708 = scalar_lea.vmem [#allocation4], 96
  %v2709 = vld [vmem:[%s2708] sm:$0xff]
  %2710 = vmatpush.msra.mxu0 0.0
  %2711 = vmatpush.msra.mxu0 0.0
  %2712 = vmatpush.msra.mxu0 0.0
  %2713 = vmatpush.msra.mxu0 0.0
  %2714 = vmatpush.msra.mxu0 0.0
  %2715 = vmatpush.msra.mxu0 0.0
  %2716 = vmatpush.msra.mxu0 0.0
  %2717 = vmatpush.msra.mxu0 0.0
  %2718 = vmatpush.msra.mxu0 0.0
  %2719 = vmatpush.msra.mxu0 0.0
  %2720 = vmatpush.msra.mxu0 0.0
  %2721 = vmatpush.msra.mxu0 0.0
  %2722 = vmatpush.msra.mxu0 %v798
  %2723 = vmatpush.msra.mxu0 %v796
  %2724 = vmatpush.msra.mxu0 %v794
  %2725 = vmatpush.msra.mxu0 %v792
  %2726 = vmatmul.f32.gmra.mxu0 %v2624
  %v2727 = vpop.f32.mrf.mxu0
  %v2728 = vadd.f32 0.0, %v2727
  %2729 = vdwg.mxu0
  %v2730 = vadd.f32 %v2709, %v2728
  %v2731 = vtanh.pop %v2730
  %s2732 = scalar_lea.vmem [#allocation5], 96
  %v2733 = vld [vmem:[%s2732] sm:$0xff]
  %2734 = vmatpush.msra.mxu0 0.0
  %2735 = vmatpush.msra.mxu0 0.0
  %2736 = vmatpush.msra.mxu0 0.0
  %2737 = vmatpush.msra.mxu0 0.0
  %2738 = vmatpush.msra.mxu0 0.0
  %2739 = vmatpush.msra.mxu0 0.0
  %2740 = vmatpush.msra.mxu0 0.0
  %2741 = vmatpush.msra.mxu0 0.0
  %2742 = vmatpush.msra.mxu0 0.0
  %2743 = vmatpush.msra.mxu0 0.0
  %2744 = vmatpush.msra.mxu0 0.0
  %2745 = vmatpush.msra.mxu0 0.0
  %2746 = vmatpush.msra.mxu0 %v833
  %2747 = vmatpush.msra.mxu0 %v831
  %2748 = vmatpush.msra.mxu0 %v829
  %2749 = vmatpush.msra.mxu0 %v827
  %2750 = vmatmul.f32.gmra.mxu0 %v2624
  %v2751 = vpop.f32.mrf.mxu0
  %v2752 = vadd.f32 0.0, %v2751
  %2753 = vdwg.mxu0
  %v2754 = vadd.f32 %v2733, %v2752
  %v2755 = vxor.u32 %v2754, 2147483648
  %v2756 = vmul.f32 %v2755, 1.442695
  %v2757 = vpow.pop %v2756
  %v2758 = vadd.f32 %v2757, 1.0
  %v2759 = vrcp.pop %v2758
  %v2760 = vmul.f32 %v2758, %v2759
  %v2761 = vsub.f32 1.0, %v2760
  %v2762 = vmul.f32 %v2759, %v2761
  %v2763 = vadd.f32 %v2759, %v2762
  %vm2764 = vweird.f32 %v2758
  %vm2765 = vweird.f32 %v2759
  %vm2766 = vmor %vm2764, %vm2765
  %v2767 = vsel %vm2766, %v2759, %v2763
  %v2768 = vand.u32 2147483647, %v2758
  %vm2769 = vcmp.eq.f32.partialorder %v2768, 8.507059e+37
  %v2770 = vand.u32 %v2758, 2147483648
  %v2771 = vor.u32 1.1754944e-38, %v2770
  %v2772 = vsel %vm2769, %v2771, %v2767
  %v2773 = vmul.f32 1.0, %v2772
  %v2774 = vmul.f32 %v2707, %v2618
  %v2775 = vmul.f32 %v2665, %v2731
  %v2776 = vadd.f32 %v2774, %v2775
  %v2777 = vtanh.pop %v2776
  %v2778 = vmul.f32 %v2773, %v2777
  %s2779 = scalar_lea.vmem [#allocation2], 104
  %v2780 = vld [vmem:[%s2779] sm:$0xff]
  %v2782 = vsel %vm465, %v2778, 0
  %2784 = vmatpush.msra.mxu0 0.0
  %2785 = vmatpush.msra.mxu0 0.0
  %2786 = vmatpush.msra.mxu0 0.0
  %2787 = vmatpush.msra.mxu0 0.0
  %2788 = vmatpush.msra.mxu0 0.0
  %2789 = vmatpush.msra.mxu0 0.0
  %2790 = vmatpush.msra.mxu0 0.0
  %2791 = vmatpush.msra.mxu0 0.0
  %2792 = vmatpush.msra.mxu0 0.0
  %2793 = vmatpush.msra.mxu0 0.0
  %2794 = vmatpush.msra.mxu0 0.0
  %2795 = vmatpush.msra.mxu0 0.0
  %2796 = vmatpush.msra.mxu0 %v348
  %2797 = vmatpush.msra.mxu0 %v347
  %2798 = vmatpush.msra.mxu0 %v346
  %2799 = vmatpush.msra.mxu0 %v345
  %2800 = vmatmul.f32.gmra.mxu0 %v2782
  %v2801 = vpop.f32.mrf.mxu0
  %v2802 = vadd.f32 0.0, %v2801
  %2803 = vdwg.mxu0
  %v2804 = vadd.f32 %v2780, %v2802
  %v2805 = vxor.u32 %v2804, 2147483648
  %v2806 = vmul.f32 %v2805, 1.442695
  %v2807 = vpow.pop %v2806
  %v2808 = vadd.f32 %v2807, 1.0
  %v2809 = vrcp.pop %v2808
  %v2810 = vmul.f32 %v2808, %v2809
  %v2811 = vsub.f32 1.0, %v2810
  %v2812 = vmul.f32 %v2809, %v2811
  %v2813 = vadd.f32 %v2809, %v2812
  %vm2814 = vweird.f32 %v2808
  %vm2815 = vweird.f32 %v2809
  %vm2816 = vmor %vm2814, %vm2815
  %v2817 = vsel %vm2816, %v2809, %v2813
  %v2818 = vand.u32 2147483647, %v2808
  %vm2819 = vcmp.eq.f32.partialorder %v2818, 8.507059e+37
  %v2820 = vand.u32 %v2808, 2147483648
  %v2821 = vor.u32 1.1754944e-38, %v2820
  %v2822 = vsel %vm2819, %v2821, %v2817
  %v2823 = vmul.f32 1.0, %v2822
  %s2824 = scalar_lea.vmem [#allocation3], 104
  %v2825 = vld [vmem:[%s2824] sm:$0xff]
  %2826 = vmatpush.msra.mxu0 0.0
  %2827 = vmatpush.msra.mxu0 0.0
  %2828 = vmatpush.msra.mxu0 0.0
  %2829 = vmatpush.msra.mxu0 0.0
  %2830 = vmatpush.msra.mxu0 0.0
  %2831 = vmatpush.msra.mxu0 0.0
  %2832 = vmatpush.msra.mxu0 0.0
  %2833 = vmatpush.msra.mxu0 0.0
  %2834 = vmatpush.msra.mxu0 0.0
  %2835 = vmatpush.msra.mxu0 0.0
  %2836 = vmatpush.msra.mxu0 0.0
  %2837 = vmatpush.msra.mxu0 0.0
  %2838 = vmatpush.msra.mxu0 %v745
  %2839 = vmatpush.msra.mxu0 %v743
  %2840 = vmatpush.msra.mxu0 %v741
  %2841 = vmatpush.msra.mxu0 %v739
  %2842 = vmatmul.f32.gmra.mxu0 %v2782
  %v2843 = vpop.f32.mrf.mxu0
  %v2844 = vadd.f32 0.0, %v2843
  %2845 = vdwg.mxu0
  %v2846 = vadd.f32 %v2825, %v2844
  %v2847 = vxor.u32 %v2846, 2147483648
  %v2848 = vmul.f32 %v2847, 1.442695
  %v2849 = vpow.pop %v2848
  %v2850 = vadd.f32 %v2849, 1.0
  %v2851 = vrcp.pop %v2850
  %v2852 = vmul.f32 %v2850, %v2851
  %v2853 = vsub.f32 1.0, %v2852
  %v2854 = vmul.f32 %v2851, %v2853
  %v2855 = vadd.f32 %v2851, %v2854
  %vm2856 = vweird.f32 %v2850
  %vm2857 = vweird.f32 %v2851
  %vm2858 = vmor %vm2856, %vm2857
  %v2859 = vsel %vm2858, %v2851, %v2855
  %v2860 = vand.u32 2147483647, %v2850
  %vm2861 = vcmp.eq.f32.partialorder %v2860, 8.507059e+37
  %v2862 = vand.u32 %v2850, 2147483648
  %v2863 = vor.u32 1.1754944e-38, %v2862
  %v2864 = vsel %vm2861, %v2863, %v2859
  %v2865 = vmul.f32 1.0, %v2864
  %s2866 = scalar_lea.vmem [#allocation4], 104
  %v2867 = vld [vmem:[%s2866] sm:$0xff]
  %2868 = vmatpush.msra.mxu0 0.0
  %2869 = vmatpush.msra.mxu0 0.0
  %2870 = vmatpush.msra.mxu0 0.0
  %2871 = vmatpush.msra.mxu0 0.0
  %2872 = vmatpush.msra.mxu0 0.0
  %2873 = vmatpush.msra.mxu0 0.0
  %2874 = vmatpush.msra.mxu0 0.0
  %2875 = vmatpush.msra.mxu0 0.0
  %2876 = vmatpush.msra.mxu0 0.0
  %2877 = vmatpush.msra.mxu0 0.0
  %2878 = vmatpush.msra.mxu0 0.0
  %2879 = vmatpush.msra.mxu0 0.0
  %2880 = vmatpush.msra.mxu0 %v798
  %2881 = vmatpush.msra.mxu0 %v796
  %2882 = vmatpush.msra.mxu0 %v794
  %2883 = vmatpush.msra.mxu0 %v792
  %2884 = vmatmul.f32.gmra.mxu0 %v2782
  %v2885 = vpop.f32.mrf.mxu0
  %v2886 = vadd.f32 0.0, %v2885
  %2887 = vdwg.mxu0
  %v2888 = vadd.f32 %v2867, %v2886
  %v2889 = vtanh.pop %v2888
  %s2890 = scalar_lea.vmem [#allocation5], 104
  %v2891 = vld [vmem:[%s2890] sm:$0xff]
  %2892 = vmatpush.msra.mxu0 0.0
  %2893 = vmatpush.msra.mxu0 0.0
  %2894 = vmatpush.msra.mxu0 0.0
  %2895 = vmatpush.msra.mxu0 0.0
  %2896 = vmatpush.msra.mxu0 0.0
  %2897 = vmatpush.msra.mxu0 0.0
  %2898 = vmatpush.msra.mxu0 0.0
  %2899 = vmatpush.msra.mxu0 0.0
  %2900 = vmatpush.msra.mxu0 0.0
  %2901 = vmatpush.msra.mxu0 0.0
  %2902 = vmatpush.msra.mxu0 0.0
  %2903 = vmatpush.msra.mxu0 0.0
  %2904 = vmatpush.msra.mxu0 %v833
  %2905 = vmatpush.msra.mxu0 %v831
  %2906 = vmatpush.msra.mxu0 %v829
  %2907 = vmatpush.msra.mxu0 %v827
  %2908 = vmatmul.f32.gmra.mxu0 %v2782
  %v2909 = vpop.f32.mrf.mxu0
  %v2910 = vadd.f32 0.0, %v2909
  %2911 = vdwg.mxu0
  %v2912 = vadd.f32 %v2891, %v2910
  %v2913 = vxor.u32 %v2912, 2147483648
  %v2914 = vmul.f32 %v2913, 1.442695
  %v2915 = vpow.pop %v2914
  %v2916 = vadd.f32 %v2915, 1.0
  %v2917 = vrcp.pop %v2916
  %v2918 = vmul.f32 %v2916, %v2917
  %v2919 = vsub.f32 1.0, %v2918
  %v2920 = vmul.f32 %v2917, %v2919
  %v2921 = vadd.f32 %v2917, %v2920
  %vm2922 = vweird.f32 %v2916
  %vm2923 = vweird.f32 %v2917
  %vm2924 = vmor %vm2922, %vm2923
  %v2925 = vsel %vm2924, %v2917, %v2921
  %v2926 = vand.u32 2147483647, %v2916
  %vm2927 = vcmp.eq.f32.partialorder %v2926, 8.507059e+37
  %v2928 = vand.u32 %v2916, 2147483648
  %v2929 = vor.u32 1.1754944e-38, %v2928
  %v2930 = vsel %vm2927, %v2929, %v2925
  %v2931 = vmul.f32 1.0, %v2930
  %v2932 = vmul.f32 %v2865, %v2776
  %v2933 = vmul.f32 %v2823, %v2889
  %v2934 = vadd.f32 %v2932, %v2933
  %v2935 = vtanh.pop %v2934
  %v2936 = vmul.f32 %v2931, %v2935
  %s2937 = scalar_lea.vmem [#allocation2], 112
  %v2938 = vld [vmem:[%s2937] sm:$0xff]
  %v2940 = vsel %vm465, %v2936, 0
  %2942 = vmatpush.msra.mxu0 0.0
  %2943 = vmatpush.msra.mxu0 0.0
  %2944 = vmatpush.msra.mxu0 0.0
  %2945 = vmatpush.msra.mxu0 0.0
  %2946 = vmatpush.msra.mxu0 0.0
  %2947 = vmatpush.msra.mxu0 0.0
  %2948 = vmatpush.msra.mxu0 0.0
  %2949 = vmatpush.msra.mxu0 0.0
  %2950 = vmatpush.msra.mxu0 0.0
  %2951 = vmatpush.msra.mxu0 0.0
  %2952 = vmatpush.msra.mxu0 0.0
  %2953 = vmatpush.msra.mxu0 0.0
  %2954 = vmatpush.msra.mxu0 %v348
  %2955 = vmatpush.msra.mxu0 %v347
  %2956 = vmatpush.msra.mxu0 %v346
  %2957 = vmatpush.msra.mxu0 %v345
  %2958 = vmatmul.f32.gmra.mxu0 %v2940
  %v2959 = vpop.f32.mrf.mxu0
  %v2960 = vadd.f32 0.0, %v2959
  %2961 = vdwg.mxu0
  %v2962 = vadd.f32 %v2938, %v2960
  %v2963 = vxor.u32 %v2962, 2147483648
  %v2964 = vmul.f32 %v2963, 1.442695
  %v2965 = vpow.pop %v2964
  %v2966 = vadd.f32 %v2965, 1.0
  %v2967 = vrcp.pop %v2966
  %v2968 = vmul.f32 %v2966, %v2967
  %v2969 = vsub.f32 1.0, %v2968
  %v2970 = vmul.f32 %v2967, %v2969
  %v2971 = vadd.f32 %v2967, %v2970
  %vm2972 = vweird.f32 %v2966
  %vm2973 = vweird.f32 %v2967
  %vm2974 = vmor %vm2972, %vm2973
  %v2975 = vsel %vm2974, %v2967, %v2971
  %v2976 = vand.u32 2147483647, %v2966
  %vm2977 = vcmp.eq.f32.partialorder %v2976, 8.507059e+37
  %v2978 = vand.u32 %v2966, 2147483648
  %v2979 = vor.u32 1.1754944e-38, %v2978
  %v2980 = vsel %vm2977, %v2979, %v2975
  %v2981 = vmul.f32 1.0, %v2980
  %s2982 = scalar_lea.vmem [#allocation3], 112
  %v2983 = vld [vmem:[%s2982] sm:$0xff]
  %2984 = vmatpush.msra.mxu0 0.0
  %2985 = vmatpush.msra.mxu0 0.0
  %2986 = vmatpush.msra.mxu0 0.0
  %2987 = vmatpush.msra.mxu0 0.0
  %2988 = vmatpush.msra.mxu0 0.0
  %2989 = vmatpush.msra.mxu0 0.0
  %2990 = vmatpush.msra.mxu0 0.0
  %2991 = vmatpush.msra.mxu0 0.0
  %2992 = vmatpush.msra.mxu0 0.0
  %2993 = vmatpush.msra.mxu0 0.0
  %2994 = vmatpush.msra.mxu0 0.0
  %2995 = vmatpush.msra.mxu0 0.0
  %2996 = vmatpush.msra.mxu0 %v745
  %2997 = vmatpush.msra.mxu0 %v743
  %2998 = vmatpush.msra.mxu0 %v741
  %2999 = vmatpush.msra.mxu0 %v739
  %3000 = vmatmul.f32.gmra.mxu0 %v2940
  %v3001 = vpop.f32.mrf.mxu0
  %v3002 = vadd.f32 0.0, %v3001
  %3003 = vdwg.mxu0
  %v3004 = vadd.f32 %v2983, %v3002
  %v3005 = vxor.u32 %v3004, 2147483648
  %v3006 = vmul.f32 %v3005, 1.442695
  %v3007 = vpow.pop %v3006
  %v3008 = vadd.f32 %v3007, 1.0
  %v3009 = vrcp.pop %v3008
  %v3010 = vmul.f32 %v3008, %v3009
  %v3011 = vsub.f32 1.0, %v3010
  %v3012 = vmul.f32 %v3009, %v3011
  %v3013 = vadd.f32 %v3009, %v3012
  %vm3014 = vweird.f32 %v3008
  %vm3015 = vweird.f32 %v3009
  %vm3016 = vmor %vm3014, %vm3015
  %v3017 = vsel %vm3016, %v3009, %v3013
  %v3018 = vand.u32 2147483647, %v3008
  %vm3019 = vcmp.eq.f32.partialorder %v3018, 8.507059e+37
  %v3020 = vand.u32 %v3008, 2147483648
  %v3021 = vor.u32 1.1754944e-38, %v3020
  %v3022 = vsel %vm3019, %v3021, %v3017
  %v3023 = vmul.f32 1.0, %v3022
  %s3024 = scalar_lea.vmem [#allocation4], 112
  %v3025 = vld [vmem:[%s3024] sm:$0xff]
  %3026 = vmatpush.msra.mxu0 0.0
  %3027 = vmatpush.msra.mxu0 0.0
  %3028 = vmatpush.msra.mxu0 0.0
  %3029 = vmatpush.msra.mxu0 0.0
  %3030 = vmatpush.msra.mxu0 0.0
  %3031 = vmatpush.msra.mxu0 0.0
  %3032 = vmatpush.msra.mxu0 0.0
  %3033 = vmatpush.msra.mxu0 0.0
  %3034 = vmatpush.msra.mxu0 0.0
  %3035 = vmatpush.msra.mxu0 0.0
  %3036 = vmatpush.msra.mxu0 0.0
  %3037 = vmatpush.msra.mxu0 0.0
  %3038 = vmatpush.msra.mxu0 %v798
  %3039 = vmatpush.msra.mxu0 %v796
  %3040 = vmatpush.msra.mxu0 %v794
  %3041 = vmatpush.msra.mxu0 %v792
  %3042 = vmatmul.f32.gmra.mxu0 %v2940
  %v3043 = vpop.f32.mrf.mxu0
  %v3044 = vadd.f32 0.0, %v3043
  %3045 = vdwg.mxu0
  %v3046 = vadd.f32 %v3025, %v3044
  %v3047 = vtanh.pop %v3046
  %s3048 = scalar_lea.vmem [#allocation5], 112
  %v3049 = vld [vmem:[%s3048] sm:$0xff]
  %3050 = vmatpush.msra.mxu0 0.0
  %3051 = vmatpush.msra.mxu0 0.0
  %3052 = vmatpush.msra.mxu0 0.0
  %3053 = vmatpush.msra.mxu0 0.0
  %3054 = vmatpush.msra.mxu0 0.0
  %3055 = vmatpush.msra.mxu0 0.0
  %3056 = vmatpush.msra.mxu0 0.0
  %3057 = vmatpush.msra.mxu0 0.0
  %3058 = vmatpush.msra.mxu0 0.0
  %3059 = vmatpush.msra.mxu0 0.0
  %3060 = vmatpush.msra.mxu0 0.0
  %3061 = vmatpush.msra.mxu0 0.0
  %3062 = vmatpush.msra.mxu0 %v833
  %3063 = vmatpush.msra.mxu0 %v831
  %3064 = vmatpush.msra.mxu0 %v829
  %3065 = vmatpush.msra.mxu0 %v827
  %3066 = vmatmul.f32.gmra.mxu0 %v2940
  %v3067 = vpop.f32.mrf.mxu0
  %v3068 = vadd.f32 0.0, %v3067
  %3069 = vdwg.mxu0
  %v3070 = vadd.f32 %v3049, %v3068
  %v3071 = vxor.u32 %v3070, 2147483648
  %v3072 = vmul.f32 %v3071, 1.442695
  %v3073 = vpow.pop %v3072
  %v3074 = vadd.f32 %v3073, 1.0
  %v3075 = vrcp.pop %v3074
  %v3076 = vmul.f32 %v3074, %v3075
  %v3077 = vsub.f32 1.0, %v3076
  %v3078 = vmul.f32 %v3075, %v3077
  %v3079 = vadd.f32 %v3075, %v3078
  %vm3080 = vweird.f32 %v3074
  %vm3081 = vweird.f32 %v3075
  %vm3082 = vmor %vm3080, %vm3081
  %v3083 = vsel %vm3082, %v3075, %v3079
  %v3084 = vand.u32 2147483647, %v3074
  %vm3085 = vcmp.eq.f32.partialorder %v3084, 8.507059e+37
  %v3086 = vand.u32 %v3074, 2147483648
  %v3087 = vor.u32 1.1754944e-38, %v3086
  %v3088 = vsel %vm3085, %v3087, %v3083
  %v3089 = vmul.f32 1.0, %v3088
  %v3090 = vmul.f32 %v3023, %v2934
  %v3091 = vmul.f32 %v2981, %v3047
  %v3092 = vadd.f32 %v3090, %v3091
  %v3093 = vtanh.pop %v3092
  %v3094 = vmul.f32 %v3089, %v3093
  %s3095 = scalar_lea.vmem [#allocation2], 120
  %v3096 = vld [vmem:[%s3095] sm:$0xff]
  %v3098 = vsel %vm465, %v3094, 0
  %3100 = vmatpush.msra.mxu0 0.0
  %3101 = vmatpush.msra.mxu0 0.0
  %3102 = vmatpush.msra.mxu0 0.0
  %3103 = vmatpush.msra.mxu0 0.0
  %3104 = vmatpush.msra.mxu0 0.0
  %3105 = vmatpush.msra.mxu0 0.0
  %3106 = vmatpush.msra.mxu0 0.0
  %3107 = vmatpush.msra.mxu0 0.0
  %3108 = vmatpush.msra.mxu0 0.0
  %3109 = vmatpush.msra.mxu0 0.0
  %3110 = vmatpush.msra.mxu0 0.0
  %3111 = vmatpush.msra.mxu0 0.0
  %3112 = vmatpush.msra.mxu0 %v348
  %3113 = vmatpush.msra.mxu0 %v347
  %3114 = vmatpush.msra.mxu0 %v346
  %3115 = vmatpush.msra.mxu0 %v345
  %3116 = vmatmul.f32.gmra.mxu0 %v3098
  %v3117 = vpop.f32.mrf.mxu0
  %v3118 = vadd.f32 0.0, %v3117
  %3119 = vdwg.mxu0
  %v3120 = vadd.f32 %v3096, %v3118
  %v3121 = vxor.u32 %v3120, 2147483648
  %v3122 = vmul.f32 %v3121, 1.442695
  %v3123 = vpow.pop %v3122
  %v3124 = vadd.f32 %v3123, 1.0
  %v3125 = vrcp.pop %v3124
  %v3126 = vmul.f32 %v3124, %v3125
  %v3127 = vsub.f32 1.0, %v3126
  %v3128 = vmul.f32 %v3125, %v3127
  %v3129 = vadd.f32 %v3125, %v3128
  %vm3130 = vweird.f32 %v3124
  %vm3131 = vweird.f32 %v3125
  %vm3132 = vmor %vm3130, %vm3131
  %v3133 = vsel %vm3132, %v3125, %v3129
  %v3134 = vand.u32 2147483647, %v3124
  %vm3135 = vcmp.eq.f32.partialorder %v3134, 8.507059e+37
  %v3136 = vand.u32 %v3124, 2147483648
  %v3137 = vor.u32 1.1754944e-38, %v3136
  %v3138 = vsel %vm3135, %v3137, %v3133
  %v3139 = vmul.f32 1.0, %v3138
  %s3140 = scalar_lea.vmem [#allocation3], 120
  %v3141 = vld [vmem:[%s3140] sm:$0xff]
  %3142 = vmatpush.msra.mxu0 0.0
  %3143 = vmatpush.msra.mxu0 0.0
  %3144 = vmatpush.msra.mxu0 0.0
  %3145 = vmatpush.msra.mxu0 0.0
  %3146 = vmatpush.msra.mxu0 0.0
  %3147 = vmatpush.msra.mxu0 0.0
  %3148 = vmatpush.msra.mxu0 0.0
  %3149 = vmatpush.msra.mxu0 0.0
  %3150 = vmatpush.msra.mxu0 0.0
  %3151 = vmatpush.msra.mxu0 0.0
  %3152 = vmatpush.msra.mxu0 0.0
  %3153 = vmatpush.msra.mxu0 0.0
  %3154 = vmatpush.msra.mxu0 %v745
  %3155 = vmatpush.msra.mxu0 %v743
  %3156 = vmatpush.msra.mxu0 %v741
  %3157 = vmatpush.msra.mxu0 %v739
  %3158 = vmatmul.f32.gmra.mxu0 %v3098
  %v3159 = vpop.f32.mrf.mxu0
  %v3160 = vadd.f32 0.0, %v3159
  %3161 = vdwg.mxu0
  %v3162 = vadd.f32 %v3141, %v3160
  %v3163 = vxor.u32 %v3162, 2147483648
  %v3164 = vmul.f32 %v3163, 1.442695
  %v3165 = vpow.pop %v3164
  %v3166 = vadd.f32 %v3165, 1.0
  %v3167 = vrcp.pop %v3166
  %v3168 = vmul.f32 %v3166, %v3167
  %v3169 = vsub.f32 1.0, %v3168
  %v3170 = vmul.f32 %v3167, %v3169
  %v3171 = vadd.f32 %v3167, %v3170
  %vm3172 = vweird.f32 %v3166
  %vm3173 = vweird.f32 %v3167
  %vm3174 = vmor %vm3172, %vm3173
  %v3175 = vsel %vm3174, %v3167, %v3171
  %v3176 = vand.u32 2147483647, %v3166
  %vm3177 = vcmp.eq.f32.partialorder %v3176, 8.507059e+37
  %v3178 = vand.u32 %v3166, 2147483648
  %v3179 = vor.u32 1.1754944e-38, %v3178
  %v3180 = vsel %vm3177, %v3179, %v3175
  %v3181 = vmul.f32 1.0, %v3180
  %s3182 = scalar_lea.vmem [#allocation4], 120
  %v3183 = vld [vmem:[%s3182] sm:$0xff]
  %3184 = vmatpush.msra.mxu0 0.0
  %3185 = vmatpush.msra.mxu0 0.0
  %3186 = vmatpush.msra.mxu0 0.0
  %3187 = vmatpush.msra.mxu0 0.0
  %3188 = vmatpush.msra.mxu0 0.0
  %3189 = vmatpush.msra.mxu0 0.0
  %3190 = vmatpush.msra.mxu0 0.0
  %3191 = vmatpush.msra.mxu0 0.0
  %3192 = vmatpush.msra.mxu0 0.0
  %3193 = vmatpush.msra.mxu0 0.0
  %3194 = vmatpush.msra.mxu0 0.0
  %3195 = vmatpush.msra.mxu0 0.0
  %3196 = vmatpush.msra.mxu0 %v798
  %3197 = vmatpush.msra.mxu0 %v796
  %3198 = vmatpush.msra.mxu0 %v794
  %3199 = vmatpush.msra.mxu0 %v792
  %3200 = vmatmul.f32.gmra.mxu0 %v3098
  %v3201 = vpop.f32.mrf.mxu0
  %v3202 = vadd.f32 0.0, %v3201
  %3203 = vdwg.mxu0
  %v3204 = vadd.f32 %v3183, %v3202
  %v3205 = vtanh.pop %v3204
  %s3206 = scalar_lea.vmem [#allocation5], 120
  %v3207 = vld [vmem:[%s3206] sm:$0xff]
  %3208 = vmatpush.msra.mxu0 0.0
  %3209 = vmatpush.msra.mxu0 0.0
  %3210 = vmatpush.msra.mxu0 0.0
  %3211 = vmatpush.msra.mxu0 0.0
  %3212 = vmatpush.msra.mxu0 0.0
  %3213 = vmatpush.msra.mxu0 0.0
  %3214 = vmatpush.msra.mxu0 0.0
  %3215 = vmatpush.msra.mxu0 0.0
  %3216 = vmatpush.msra.mxu0 0.0
  %3217 = vmatpush.msra.mxu0 0.0
  %3218 = vmatpush.msra.mxu0 0.0
  %3219 = vmatpush.msra.mxu0 0.0
  %3220 = vmatpush.msra.mxu0 %v833
  %3221 = vmatpush.msra.mxu0 %v831
  %3222 = vmatpush.msra.mxu0 %v829
  %3223 = vmatpush.msra.mxu0 %v827
  %3224 = vmatmul.f32.gmra.mxu0 %v3098
  %v3225 = vpop.f32.mrf.mxu0
  %v3226 = vadd.f32 0.0, %v3225
  %3227 = vdwg.mxu0
  %v3228 = vadd.f32 %v3207, %v3226
  %v3229 = vxor.u32 %v3228, 2147483648
  %v3230 = vmul.f32 %v3229, 1.442695
  %v3231 = vpow.pop %v3230
  %v3232 = vadd.f32 %v3231, 1.0
  %v3233 = vrcp.pop %v3232
  %v3234 = vmul.f32 %v3232, %v3233
  %v3235 = vsub.f32 1.0, %v3234
  %v3236 = vmul.f32 %v3233, %v3235
  %v3237 = vadd.f32 %v3233, %v3236
  %vm3238 = vweird.f32 %v3232
  %vm3239 = vweird.f32 %v3233
  %vm3240 = vmor %vm3238, %vm3239
  %v3241 = vsel %vm3240, %v3233, %v3237
  %v3242 = vand.u32 2147483647, %v3232
  %vm3243 = vcmp.eq.f32.partialorder %v3242, 8.507059e+37
  %v3244 = vand.u32 %v3232, 2147483648
  %v3245 = vor.u32 1.1754944e-38, %v3244
  %v3246 = vsel %vm3243, %v3245, %v3241
  %v3247 = vmul.f32 1.0, %v3246
  %v3248 = vmul.f32 %v3181, %v3092
  %v3249 = vmul.f32 %v3139, %v3205
  %v3250 = vadd.f32 %v3248, %v3249
  %v3251 = vtanh.pop %v3250
  %v3252 = vmul.f32 %v3247, %v3251
  %v3253 = vld [vmem:[%s3] sm:$0xff]
  %v3254 = vld [vmem:[%s3 + $0x8] sm:$0xff]
  %v3255 = vld [vmem:[%s3 + $0x10] sm:$0xff]
  %v3256 = vld [vmem:[%s3 + $0x18] sm:$0xff]
  %v3257 = vld [vmem:[%s3 + $0x20] sm:$0x1]
  %v3258 = vperm.slane %v3257, 0
  %v3260 = vsel %vm465, %v3252, 0
  %3262 = vmatpush.msra.mxu0 0.0
  %3263 = vmatpush.msra.mxu0 0.0
  %3264 = vmatpush.msra.mxu0 0.0
  %3265 = vmatpush.msra.mxu0 0.0
  %3266 = vmatpush.msra.mxu0 0.0
  %3267 = vmatpush.msra.mxu0 0.0
  %3268 = vmatpush.msra.mxu0 0.0
  %3269 = vmatpush.msra.mxu0 0.0
  %3270 = vmatpush.msra.mxu0 0.0
  %3271 = vmatpush.msra.mxu0 0.0
  %3272 = vmatpush.msra.mxu0 0.0
  %3273 = vmatpush.msra.mxu0 0.0
  %3274 = vmatpush.msra.mxu0 %v3256
  %3275 = vmatpush.msra.mxu0 %v3255
  %3276 = vmatpush.msra.mxu0 %v3254
  %3277 = vmatpush.msra.mxu0 %v3253
  %3278 = vmatmul.f32.gmra.mxu0 %v3260
  %v3279 = vpop.f32.mrf.mxu0
  %v3280 = vadd.f32 %v3258, %v3279
  %3281 = vdwg.mxu0
  %vm3282 = vcmask 64512
  %3283 = vst.msk [vmem:[%s4] sm:$0xff] %vm3282, %v3280
  // Predicated region
  $region18: #{cnn_lstm_forward.1} parent=0 // pred_check
    _
  $region19: #{cnn_lstm_forward.1} parent=0 // pred_check_branch
    %3285 = sbr.rel (0) target = $region21
  $region20: #{cnn_lstm_forward.1} parent=0 // pred_region
    _
  $region21: #{cnn_lstm_forward.1} parent=0 // pred_fallthru
    _
  // Predicated region
  $region22: #{cnn_lstm_forward.1} parent=0 // pred_check
    _
  $region23: #{cnn_lstm_forward.1} parent=0 // pred_check_branch
    %3287 = sbr.rel (0) target = $region25
  $region24: #{cnn_lstm_forward.1} parent=0 // pred_region
    _
  $region25: #{cnn_lstm_forward.1} parent=0 // pred_fallthru
    _

</llo_original>
